<compile_context>
chip_gen: v7x
topology: tpu7x:2x2x1
jax: 0.10.0
libtpu: 0.0.40
codegen_flags: <defaults>
</compile_context>

<pallas_src>
import jax
import jax.numpy as jnp
from jax.experimental import pallas as pl
from jax.experimental.pallas import tpu as pltpu

MAX_LEVEL = 4
HIDDEN = 8                       # hidden width of per-subband pointwise MLP
NSUB = MAX_LEVEL + 1             # [approx_L, detail_1, ..., detail_L]
LANE = 128
INV_SQRT2 = 0.7071067811865476   # orthonormal Haar tap


def haar_nn_1d_kernel(x_ref, w1_ref, b1_ref, w2_ref, b2_ref, o_ref):
    s = jnp.float32(INV_SQRT2)

    # (L, lanes): length on sublanes, independent rows on lanes.
    a = x_ref[...].astype(jnp.float32)
    lanes = a.shape[1]

    # ---- forward wavelet transform (analysis), MAX_LEVEL levels -------------
    # lo = (s, s), hi = (s, -s)  ->  approx = (even+odd)*s, detail = (even-odd)*s
    details = []
    for _ in range(MAX_LEVEL):
        half = a.shape[0] // 2
        pair = a.reshape(half, 2, lanes)       # even/odd split along sublanes
        even = pair[:, 0, :]
        odd = pair[:, 1, :]
        details.append((even - odd) * s)       # high-pass, stride 2
        a = (even + odd) * s                   # low-pass,  stride 2

    # ---- denoising network: per-subband pointwise MLP (residual) ------------
    def denoise(c, sub):
        acc = jnp.zeros_like(c)
        for h in range(HIDDEN):
            hid = jnp.maximum(c * w1_ref[sub, h] + b1_ref[sub, h], 0.0)
            acc = acc + hid * w2_ref[sub, h]
        return c + acc + b2_ref[sub]

    a = denoise(a, 0)                                         # coarsest approx
    details = [denoise(d, lvl + 1) for lvl, d in enumerate(details)]

    # ---- inverse wavelet transform (synthesis), exact reconstruction --------
    rec = a
    for lvl in range(MAX_LEVEL - 1, -1, -1):
        d = details[lvl]
        even = (rec + d) * s
        odd = (rec - d) * s
        rec = jnp.stack([even, odd], axis=1).reshape(rec.shape[0] * 2, lanes)

    o_ref[...] = rec.astype(o_ref.dtype)


def _lane_tile(L, R):
    # Rows (B*C) live on the lane axis; pick the tile of lanes per grid step.
    # ~4 MiB per in/out block keeps double-buffering comfortable on v7x's
    # 64 MiB VMEM while being big enough to amortize per-step overhead.
    r128 = ((R + LANE - 1) // LANE) * LANE
    budget = (4 * 1024 * 1024) // (4 * L)
    budget = max(LANE, (budget // LANE) * LANE)
    return int(min(r128, budget, 2048))


@jax.jit
def haar_learnable_nn_1d(x, w1, b1, w2, b2):
    B, C, L = x.shape
    assert L % (2 ** MAX_LEVEL) == 0, "length must be divisible by 2**max_level"

    R = B * C
    lane_tile = _lane_tile(L, R)
    R_pad = ((R + lane_tile - 1) // lane_tile) * lane_tile

    # Lane-dense layout: (L, R_pad) — rows on lanes, signal length on sublanes.
    xf = jnp.transpose(x.reshape(R, L))
    if R_pad != R:
        # Padded rows produce garbage (biases through the MLP); they are
        # sliced off below — do not reduce over rows without masking them.
        xf = jnp.pad(xf, ((0, 0), (0, R_pad - R)))

    grid = (R_pad // lane_tile,)
    itemsize = jnp.dtype(x.dtype).itemsize
    cost = pl.CostEstimate(
        flops=int(R_pad * L * (4 * MAX_LEVEL + 5 * HIDDEN + 4)),
        transcendentals=0,
        bytes_accessed=int(2 * R_pad * L * itemsize),
    )

    out = pl.pallas_call(
        haar_nn_1d_kernel,
        out_shape=jax.ShapeDtypeStruct((L, R_pad), x.dtype),
        grid_spec=pltpu.PrefetchScalarGridSpec(
            num_scalar_prefetch=0,
            grid=grid,
            in_specs=[
                pl.BlockSpec((L, lane_tile), lambda i: (0, i)),
                pl.BlockSpec(memory_space=pltpu.MemorySpace.SMEM),  # w1 (NSUB,H)
                pl.BlockSpec(memory_space=pltpu.MemorySpace.SMEM),  # b1 (NSUB,H)
                pl.BlockSpec(memory_space=pltpu.MemorySpace.SMEM),  # w2 (NSUB,H)
                pl.BlockSpec(memory_space=pltpu.MemorySpace.SMEM),  # b2 (NSUB,)
            ],
            out_specs=pl.BlockSpec((L, lane_tile), lambda i: (0, i)),
        ),
        compiler_params=pltpu.CompilerParams(
            dimension_semantics=("parallel",),
            vmem_limit_bytes=48 * 1024 * 1024,
        ),
        cost_estimate=cost,
    )(xf, w1, b1, w2, b2)

    return jnp.transpose(out[:, :R]).reshape(B, C, L)


def init_params():
    # Deterministic denoising-net parameters (one pointwise MLP per subband).
    kp = jax.random.PRNGKey(42)
    k1, k2, k3 = jax.random.split(kp, 3)
    w1 = (0.1 * jax.random.normal(k1, (NSUB, HIDDEN))).astype(jnp.float32)
    b1 = (0.1 * jax.random.normal(k2, (NSUB, HIDDEN))).astype(jnp.float32)
    w2 = (0.1 * jax.random.normal(k3, (NSUB, HIDDEN))).astype(jnp.float32)
    b2 = jnp.zeros((NSUB,), dtype=jnp.float32)
    return w1, b1, w2, b2


if __name__ == "__main__":
    # Small shapes: batch=2, channels=4, length=32 (divisible by 2**max_level=16).
    x = jax.random.normal(jax.random.PRNGKey(0), (2, 4, 32), dtype=jnp.float32)
    w1, b1, w2, b2 = init_params()

    y = haar_learnable_nn_1d(x, w1, b1, w2, b2)
    jax.block_until_ready(y)
    assert y.shape == x.shape and y.dtype == x.dtype
    print("KERNEL_OK")
</pallas_src>

<mosaic_0001>
module attributes {stable_mosaic.version = 11 : i64} {
  func.func @haar_nn_1d_kernel(%arg0: i32, %arg1: memref<32x128xf32, #tpu.memory_space<vmem>>, %arg2: memref<5x8xf32, #tpu.memory_space<smem>>, %arg3: memref<5x8xf32, #tpu.memory_space<smem>>, %arg4: memref<5x8xf32, #tpu.memory_space<smem>>, %arg5: memref<5xf32, #tpu.memory_space<smem>>, %arg6: memref<32x128xf32, #tpu.memory_space<vmem>>) attributes {dimension_semantics = [#tpu.dimension_semantics<parallel>], iteration_bounds = array<i64: 1>, scalar_prefetch = 0 : i64, scratch_operands = 0 : i64, tpu.core_type = #tpu.core_type<tc>, window_params = [{transform_indices = @transform_0, window_bounds = array<i64: 32, 128>}, {transform_indices = @transform_1, window_bounds = array<i64: 5, 8>}, {transform_indices = @transform_2, window_bounds = array<i64: 5, 8>}, {transform_indices = @transform_3, window_bounds = array<i64: 5, 8>}, {transform_indices = @transform_4, window_bounds = array<i64: 5>}, {transform_indices = @transform_5, window_bounds = array<i64: 32, 128>}]} {
    %c0 = arith.constant 0 : index
    %c0_0 = arith.constant 0 : index
    %0 = vector.load %arg1[%c0, %c0_0] : memref<32x128xf32, #tpu.memory_space<vmem>>, vector<32x128xf32>
    %1 = vector.shape_cast %0 : vector<32x128xf32> to vector<16x2x128xf32>
    %2 = vector.extract_strided_slice %1 {offsets = [0, 0, 0], sizes = [16, 1, 128], strides = [1, 1, 1]} : vector<16x2x128xf32> to vector<16x1x128xf32>
    %3 = vector.shape_cast %2 : vector<16x1x128xf32> to vector<16x128xf32>
    %4 = vector.extract_strided_slice %1 {offsets = [0, 1, 0], sizes = [16, 1, 128], strides = [1, 1, 1]} : vector<16x2x128xf32> to vector<16x1x128xf32>
    %5 = vector.shape_cast %4 : vector<16x1x128xf32> to vector<16x128xf32>
    %6 = arith.subf %3, %5 : vector<16x128xf32>
    %cst = arith.constant 0.707106769 : f32
    %7 = vector.broadcast %cst : f32 to vector<16x128xf32>
    %8 = arith.mulf %6, %7 : vector<16x128xf32>
    %9 = arith.addf %3, %5 : vector<16x128xf32>
    %cst_1 = arith.constant 0.707106769 : f32
    %10 = vector.broadcast %cst_1 : f32 to vector<16x128xf32>
    %11 = arith.mulf %9, %10 : vector<16x128xf32>
    %12 = vector.shape_cast %11 : vector<16x128xf32> to vector<8x2x128xf32>
    %13 = vector.extract_strided_slice %12 {offsets = [0, 0, 0], sizes = [8, 1, 128], strides = [1, 1, 1]} : vector<8x2x128xf32> to vector<8x1x128xf32>
    %14 = vector.shape_cast %13 : vector<8x1x128xf32> to vector<8x128xf32>
    %15 = vector.extract_strided_slice %12 {offsets = [0, 1, 0], sizes = [8, 1, 128], strides = [1, 1, 1]} : vector<8x2x128xf32> to vector<8x1x128xf32>
    %16 = vector.shape_cast %15 : vector<8x1x128xf32> to vector<8x128xf32>
    %17 = arith.subf %14, %16 : vector<8x128xf32>
    %cst_2 = arith.constant 0.707106769 : f32
    %18 = vector.broadcast %cst_2 : f32 to vector<8x128xf32>
    %19 = arith.mulf %17, %18 : vector<8x128xf32>
    %20 = arith.addf %14, %16 : vector<8x128xf32>
    %cst_3 = arith.constant 0.707106769 : f32
    %21 = vector.broadcast %cst_3 : f32 to vector<8x128xf32>
    %22 = arith.mulf %20, %21 : vector<8x128xf32>
    %23 = vector.shape_cast %22 : vector<8x128xf32> to vector<4x2x128xf32>
    %24 = vector.extract_strided_slice %23 {offsets = [0, 0, 0], sizes = [4, 1, 128], strides = [1, 1, 1]} : vector<4x2x128xf32> to vector<4x1x128xf32>
    %25 = vector.shape_cast %24 : vector<4x1x128xf32> to vector<4x128xf32>
    %26 = vector.extract_strided_slice %23 {offsets = [0, 1, 0], sizes = [4, 1, 128], strides = [1, 1, 1]} : vector<4x2x128xf32> to vector<4x1x128xf32>
    %27 = vector.shape_cast %26 : vector<4x1x128xf32> to vector<4x128xf32>
    %28 = arith.subf %25, %27 : vector<4x128xf32>
    %cst_4 = arith.constant 0.707106769 : f32
    %29 = vector.broadcast %cst_4 : f32 to vector<4x128xf32>
    %30 = arith.mulf %28, %29 : vector<4x128xf32>
    %31 = arith.addf %25, %27 : vector<4x128xf32>
    %cst_5 = arith.constant 0.707106769 : f32
    %32 = vector.broadcast %cst_5 : f32 to vector<4x128xf32>
    %33 = arith.mulf %31, %32 : vector<4x128xf32>
    %34 = vector.shape_cast %33 : vector<4x128xf32> to vector<2x2x128xf32>
    %35 = vector.extract_strided_slice %34 {offsets = [0, 0, 0], sizes = [2, 1, 128], strides = [1, 1, 1]} : vector<2x2x128xf32> to vector<2x1x128xf32>
    %36 = vector.shape_cast %35 : vector<2x1x128xf32> to vector<2x128xf32>
    %37 = vector.extract_strided_slice %34 {offsets = [0, 1, 0], sizes = [2, 1, 128], strides = [1, 1, 1]} : vector<2x2x128xf32> to vector<2x1x128xf32>
    %38 = vector.shape_cast %37 : vector<2x1x128xf32> to vector<2x128xf32>
    %39 = arith.subf %36, %38 : vector<2x128xf32>
    %cst_6 = arith.constant 0.707106769 : f32
    %40 = vector.broadcast %cst_6 : f32 to vector<2x128xf32>
    %41 = arith.mulf %39, %40 : vector<2x128xf32>
    %42 = arith.addf %36, %38 : vector<2x128xf32>
    %cst_7 = arith.constant 0.707106769 : f32
    %43 = vector.broadcast %cst_7 : f32 to vector<2x128xf32>
    %44 = arith.mulf %42, %43 : vector<2x128xf32>
    %cst_8 = arith.constant 0.000000e+00 : f32
    %45 = vector.broadcast %cst_8 : f32 to vector<2x128xf32>
    %c0_9 = arith.constant 0 : index
    %c0_10 = arith.constant 0 : index
    %46 = memref.load %arg2[%c0_9, %c0_10] : memref<5x8xf32, #tpu.memory_space<smem>>
    %47 = vector.broadcast %46 : f32 to vector<2x128xf32>
    %48 = arith.mulf %44, %47 : vector<2x128xf32>
    %c0_11 = arith.constant 0 : index
    %c0_12 = arith.constant 0 : index
    %49 = memref.load %arg3[%c0_11, %c0_12] : memref<5x8xf32, #tpu.memory_space<smem>>
    %50 = vector.broadcast %49 : f32 to vector<2x128xf32>
    %51 = arith.addf %48, %50 : vector<2x128xf32>
    %cst_13 = arith.constant 0.000000e+00 : f32
    %52 = vector.broadcast %cst_13 : f32 to vector<2x128xf32>
    %53 = arith.maximumf %51, %52 : vector<2x128xf32>
    %c0_14 = arith.constant 0 : index
    %c0_15 = arith.constant 0 : index
    %54 = memref.load %arg4[%c0_14, %c0_15] : memref<5x8xf32, #tpu.memory_space<smem>>
    %55 = vector.broadcast %54 : f32 to vector<2x128xf32>
    %56 = arith.mulf %53, %55 : vector<2x128xf32>
    %57 = arith.addf %45, %56 : vector<2x128xf32>
    %c0_16 = arith.constant 0 : index
    %c1 = arith.constant 1 : index
    %58 = memref.load %arg2[%c0_16, %c1] : memref<5x8xf32, #tpu.memory_space<smem>>
    %59 = vector.broadcast %58 : f32 to vector<2x128xf32>
    %60 = arith.mulf %44, %59 : vector<2x128xf32>
    %c0_17 = arith.constant 0 : index
    %c1_18 = arith.constant 1 : index
    %61 = memref.load %arg3[%c0_17, %c1_18] : memref<5x8xf32, #tpu.memory_space<smem>>
    %62 = vector.broadcast %61 : f32 to vector<2x128xf32>
    %63 = arith.addf %60, %62 : vector<2x128xf32>
    %cst_19 = arith.constant 0.000000e+00 : f32
    %64 = vector.broadcast %cst_19 : f32 to vector<2x128xf32>
    %65 = arith.maximumf %63, %64 : vector<2x128xf32>
    %c0_20 = arith.constant 0 : index
    %c1_21 = arith.constant 1 : index
    %66 = memref.load %arg4[%c0_20, %c1_21] : memref<5x8xf32, #tpu.memory_space<smem>>
    %67 = vector.broadcast %66 : f32 to vector<2x128xf32>
    %68 = arith.mulf %65, %67 : vector<2x128xf32>
    %69 = arith.addf %57, %68 : vector<2x128xf32>
    %c0_22 = arith.constant 0 : index
    %c2 = arith.constant 2 : index
    %70 = memref.load %arg2[%c0_22, %c2] : memref<5x8xf32, #tpu.memory_space<smem>>
    %71 = vector.broadcast %70 : f32 to vector<2x128xf32>
    %72 = arith.mulf %44, %71 : vector<2x128xf32>
    %c0_23 = arith.constant 0 : index
    %c2_24 = arith.constant 2 : index
    %73 = memref.load %arg3[%c0_23, %c2_24] : memref<5x8xf32, #tpu.memory_space<smem>>
    %74 = vector.broadcast %73 : f32 to vector<2x128xf32>
    %75 = arith.addf %72, %74 : vector<2x128xf32>
    %cst_25 = arith.constant 0.000000e+00 : f32
    %76 = vector.broadcast %cst_25 : f32 to vector<2x128xf32>
    %77 = arith.maximumf %75, %76 : vector<2x128xf32>
    %c0_26 = arith.constant 0 : index
    %c2_27 = arith.constant 2 : index
    %78 = memref.load %arg4[%c0_26, %c2_27] : memref<5x8xf32, #tpu.memory_space<smem>>
    %79 = vector.broadcast %78 : f32 to vector<2x128xf32>
    %80 = arith.mulf %77, %79 : vector<2x128xf32>
    %81 = arith.addf %69, %80 : vector<2x128xf32>
    %c0_28 = arith.constant 0 : index
    %c3 = arith.constant 3 : index
    %82 = memref.load %arg2[%c0_28, %c3] : memref<5x8xf32, #tpu.memory_space<smem>>
    %83 = vector.broadcast %82 : f32 to vector<2x128xf32>
    %84 = arith.mulf %44, %83 : vector<2x128xf32>
    %c0_29 = arith.constant 0 : index
    %c3_30 = arith.constant 3 : index
    %85 = memref.load %arg3[%c0_29, %c3_30] : memref<5x8xf32, #tpu.memory_space<smem>>
    %86 = vector.broadcast %85 : f32 to vector<2x128xf32>
    %87 = arith.addf %84, %86 : vector<2x128xf32>
    %cst_31 = arith.constant 0.000000e+00 : f32
    %88 = vector.broadcast %cst_31 : f32 to vector<2x128xf32>
    %89 = arith.maximumf %87, %88 : vector<2x128xf32>
    %c0_32 = arith.constant 0 : index
    %c3_33 = arith.constant 3 : index
    %90 = memref.load %arg4[%c0_32, %c3_33] : memref<5x8xf32, #tpu.memory_space<smem>>
    %91 = vector.broadcast %90 : f32 to vector<2x128xf32>
    %92 = arith.mulf %89, %91 : vector<2x128xf32>
    %93 = arith.addf %81, %92 : vector<2x128xf32>
    %c0_34 = arith.constant 0 : index
    %c4 = arith.constant 4 : index
    %94 = memref.load %arg2[%c0_34, %c4] : memref<5x8xf32, #tpu.memory_space<smem>>
    %95 = vector.broadcast %94 : f32 to vector<2x128xf32>
    %96 = arith.mulf %44, %95 : vector<2x128xf32>
    %c0_35 = arith.constant 0 : index
    %c4_36 = arith.constant 4 : index
    %97 = memref.load %arg3[%c0_35, %c4_36] : memref<5x8xf32, #tpu.memory_space<smem>>
    %98 = vector.broadcast %97 : f32 to vector<2x128xf32>
    %99 = arith.addf %96, %98 : vector<2x128xf32>
    %cst_37 = arith.constant 0.000000e+00 : f32
    %100 = vector.broadcast %cst_37 : f32 to vector<2x128xf32>
    %101 = arith.maximumf %99, %100 : vector<2x128xf32>
    %c0_38 = arith.constant 0 : index
    %c4_39 = arith.constant 4 : index
    %102 = memref.load %arg4[%c0_38, %c4_39] : memref<5x8xf32, #tpu.memory_space<smem>>
    %103 = vector.broadcast %102 : f32 to vector<2x128xf32>
    %104 = arith.mulf %101, %103 : vector<2x128xf32>
    %105 = arith.addf %93, %104 : vector<2x128xf32>
    %c0_40 = arith.constant 0 : index
    %c5 = arith.constant 5 : index
    %106 = memref.load %arg2[%c0_40, %c5] : memref<5x8xf32, #tpu.memory_space<smem>>
    %107 = vector.broadcast %106 : f32 to vector<2x128xf32>
    %108 = arith.mulf %44, %107 : vector<2x128xf32>
    %c0_41 = arith.constant 0 : index
    %c5_42 = arith.constant 5 : index
    %109 = memref.load %arg3[%c0_41, %c5_42] : memref<5x8xf32, #tpu.memory_space<smem>>
    %110 = vector.broadcast %109 : f32 to vector<2x128xf32>
    %111 = arith.addf %108, %110 : vector<2x128xf32>
    %cst_43 = arith.constant 0.000000e+00 : f32
    %112 = vector.broadcast %cst_43 : f32 to vector<2x128xf32>
    %113 = arith.maximumf %111, %112 : vector<2x128xf32>
    %c0_44 = arith.constant 0 : index
    %c5_45 = arith.constant 5 : index
    %114 = memref.load %arg4[%c0_44, %c5_45] : memref<5x8xf32, #tpu.memory_space<smem>>
    %115 = vector.broadcast %114 : f32 to vector<2x128xf32>
    %116 = arith.mulf %113, %115 : vector<2x128xf32>
    %117 = arith.addf %105, %116 : vector<2x128xf32>
    %c0_46 = arith.constant 0 : index
    %c6 = arith.constant 6 : index
    %118 = memref.load %arg2[%c0_46, %c6] : memref<5x8xf32, #tpu.memory_space<smem>>
    %119 = vector.broadcast %118 : f32 to vector<2x128xf32>
    %120 = arith.mulf %44, %119 : vector<2x128xf32>
    %c0_47 = arith.constant 0 : index
    %c6_48 = arith.constant 6 : index
    %121 = memref.load %arg3[%c0_47, %c6_48] : memref<5x8xf32, #tpu.memory_space<smem>>
    %122 = vector.broadcast %121 : f32 to vector<2x128xf32>
    %123 = arith.addf %120, %122 : vector<2x128xf32>
    %cst_49 = arith.constant 0.000000e+00 : f32
    %124 = vector.broadcast %cst_49 : f32 to vector<2x128xf32>
    %125 = arith.maximumf %123, %124 : vector<2x128xf32>
    %c0_50 = arith.constant 0 : index
    %c6_51 = arith.constant 6 : index
    %126 = memref.load %arg4[%c0_50, %c6_51] : memref<5x8xf32, #tpu.memory_space<smem>>
    %127 = vector.broadcast %126 : f32 to vector<2x128xf32>
    %128 = arith.mulf %125, %127 : vector<2x128xf32>
    %129 = arith.addf %117, %128 : vector<2x128xf32>
    %c0_52 = arith.constant 0 : index
    %c7 = arith.constant 7 : index
    %130 = memref.load %arg2[%c0_52, %c7] : memref<5x8xf32, #tpu.memory_space<smem>>
    %131 = vector.broadcast %130 : f32 to vector<2x128xf32>
    %132 = arith.mulf %44, %131 : vector<2x128xf32>
    %c0_53 = arith.constant 0 : index
    %c7_54 = arith.constant 7 : index
    %133 = memref.load %arg3[%c0_53, %c7_54] : memref<5x8xf32, #tpu.memory_space<smem>>
    %134 = vector.broadcast %133 : f32 to vector<2x128xf32>
    %135 = arith.addf %132, %134 : vector<2x128xf32>
    %cst_55 = arith.constant 0.000000e+00 : f32
    %136 = vector.broadcast %cst_55 : f32 to vector<2x128xf32>
    %137 = arith.maximumf %135, %136 : vector<2x128xf32>
    %c0_56 = arith.constant 0 : index
    %c7_57 = arith.constant 7 : index
    %138 = memref.load %arg4[%c0_56, %c7_57] : memref<5x8xf32, #tpu.memory_space<smem>>
    %139 = vector.broadcast %138 : f32 to vector<2x128xf32>
    %140 = arith.mulf %137, %139 : vector<2x128xf32>
    %141 = arith.addf %129, %140 : vector<2x128xf32>
    %142 = arith.addf %44, %141 : vector<2x128xf32>
    %c0_58 = arith.constant 0 : index
    %143 = memref.load %arg5[%c0_58] : memref<5xf32, #tpu.memory_space<smem>>
    %144 = vector.broadcast %143 : f32 to vector<2x128xf32>
    %145 = arith.addf %142, %144 : vector<2x128xf32>
    %cst_59 = arith.constant 0.000000e+00 : f32
    %146 = vector.broadcast %cst_59 : f32 to vector<16x128xf32>
    %c1_60 = arith.constant 1 : index
    %c0_61 = arith.constant 0 : index
    %147 = memref.load %arg2[%c1_60, %c0_61] : memref<5x8xf32, #tpu.memory_space<smem>>
    %148 = vector.broadcast %147 : f32 to vector<16x128xf32>
    %149 = arith.mulf %8, %148 : vector<16x128xf32>
    %c1_62 = arith.constant 1 : index
    %c0_63 = arith.constant 0 : index
    %150 = memref.load %arg3[%c1_62, %c0_63] : memref<5x8xf32, #tpu.memory_space<smem>>
    %151 = vector.broadcast %150 : f32 to vector<16x128xf32>
    %152 = arith.addf %149, %151 : vector<16x128xf32>
    %cst_64 = arith.constant 0.000000e+00 : f32
    %153 = vector.broadcast %cst_64 : f32 to vector<16x128xf32>
    %154 = arith.maximumf %152, %153 : vector<16x128xf32>
    %c1_65 = arith.constant 1 : index
    %c0_66 = arith.constant 0 : index
    %155 = memref.load %arg4[%c1_65, %c0_66] : memref<5x8xf32, #tpu.memory_space<smem>>
    %156 = vector.broadcast %155 : f32 to vector<16x128xf32>
    %157 = arith.mulf %154, %156 : vector<16x128xf32>
    %158 = arith.addf %146, %157 : vector<16x128xf32>
    %c1_67 = arith.constant 1 : index
    %c1_68 = arith.constant 1 : index
    %159 = memref.load %arg2[%c1_67, %c1_68] : memref<5x8xf32, #tpu.memory_space<smem>>
    %160 = vector.broadcast %159 : f32 to vector<16x128xf32>
    %161 = arith.mulf %8, %160 : vector<16x128xf32>
    %c1_69 = arith.constant 1 : index
    %c1_70 = arith.constant 1 : index
    %162 = memref.load %arg3[%c1_69, %c1_70] : memref<5x8xf32, #tpu.memory_space<smem>>
    %163 = vector.broadcast %162 : f32 to vector<16x128xf32>
    %164 = arith.addf %161, %163 : vector<16x128xf32>
    %cst_71 = arith.constant 0.000000e+00 : f32
    %165 = vector.broadcast %cst_71 : f32 to vector<16x128xf32>
    %166 = arith.maximumf %164, %165 : vector<16x128xf32>
    %c1_72 = arith.constant 1 : index
    %c1_73 = arith.constant 1 : index
    %167 = memref.load %arg4[%c1_72, %c1_73] : memref<5x8xf32, #tpu.memory_space<smem>>
    %168 = vector.broadcast %167 : f32 to vector<16x128xf32>
    %169 = arith.mulf %166, %168 : vector<16x128xf32>
    %170 = arith.addf %158, %169 : vector<16x128xf32>
    %c1_74 = arith.constant 1 : index
    %c2_75 = arith.constant 2 : index
    %171 = memref.load %arg2[%c1_74, %c2_75] : memref<5x8xf32, #tpu.memory_space<smem>>
    %172 = vector.broadcast %171 : f32 to vector<16x128xf32>
    %173 = arith.mulf %8, %172 : vector<16x128xf32>
    %c1_76 = arith.constant 1 : index
    %c2_77 = arith.constant 2 : index
    %174 = memref.load %arg3[%c1_76, %c2_77] : memref<5x8xf32, #tpu.memory_space<smem>>
    %175 = vector.broadcast %174 : f32 to vector<16x128xf32>
    %176 = arith.addf %173, %175 : vector<16x128xf32>
    %cst_78 = arith.constant 0.000000e+00 : f32
    %177 = vector.broadcast %cst_78 : f32 to vector<16x128xf32>
    %178 = arith.maximumf %176, %177 : vector<16x128xf32>
    %c1_79 = arith.constant 1 : index
    %c2_80 = arith.constant 2 : index
    %179 = memref.load %arg4[%c1_79, %c2_80] : memref<5x8xf32, #tpu.memory_space<smem>>
    %180 = vector.broadcast %179 : f32 to vector<16x128xf32>
    %181 = arith.mulf %178, %180 : vector<16x128xf32>
    %182 = arith.addf %170, %181 : vector<16x128xf32>
    %c1_81 = arith.constant 1 : index
    %c3_82 = arith.constant 3 : index
    %183 = memref.load %arg2[%c1_81, %c3_82] : memref<5x8xf32, #tpu.memory_space<smem>>
    %184 = vector.broadcast %183 : f32 to vector<16x128xf32>
    %185 = arith.mulf %8, %184 : vector<16x128xf32>
    %c1_83 = arith.constant 1 : index
    %c3_84 = arith.constant 3 : index
    %186 = memref.load %arg3[%c1_83, %c3_84] : memref<5x8xf32, #tpu.memory_space<smem>>
    %187 = vector.broadcast %186 : f32 to vector<16x128xf32>
    %188 = arith.addf %185, %187 : vector<16x128xf32>
    %cst_85 = arith.constant 0.000000e+00 : f32
    %189 = vector.broadcast %cst_85 : f32 to vector<16x128xf32>
    %190 = arith.maximumf %188, %189 : vector<16x128xf32>
    %c1_86 = arith.constant 1 : index
    %c3_87 = arith.constant 3 : index
    %191 = memref.load %arg4[%c1_86, %c3_87] : memref<5x8xf32, #tpu.memory_space<smem>>
    %192 = vector.broadcast %191 : f32 to vector<16x128xf32>
    %193 = arith.mulf %190, %192 : vector<16x128xf32>
    %194 = arith.addf %182, %193 : vector<16x128xf32>
    %c1_88 = arith.constant 1 : index
    %c4_89 = arith.constant 4 : index
    %195 = memref.load %arg2[%c1_88, %c4_89] : memref<5x8xf32, #tpu.memory_space<smem>>
    %196 = vector.broadcast %195 : f32 to vector<16x128xf32>
    %197 = arith.mulf %8, %196 : vector<16x128xf32>
    %c1_90 = arith.constant 1 : index
    %c4_91 = arith.constant 4 : index
    %198 = memref.load %arg3[%c1_90, %c4_91] : memref<5x8xf32, #tpu.memory_space<smem>>
    %199 = vector.broadcast %198 : f32 to vector<16x128xf32>
    %200 = arith.addf %197, %199 : vector<16x128xf32>
    %cst_92 = arith.constant 0.000000e+00 : f32
    %201 = vector.broadcast %cst_92 : f32 to vector<16x128xf32>
    %202 = arith.maximumf %200, %201 : vector<16x128xf32>
    %c1_93 = arith.constant 1 : index
    %c4_94 = arith.constant 4 : index
    %203 = memref.load %arg4[%c1_93, %c4_94] : memref<5x8xf32, #tpu.memory_space<smem>>
    %204 = vector.broadcast %203 : f32 to vector<16x128xf32>
    %205 = arith.mulf %202, %204 : vector<16x128xf32>
    %206 = arith.addf %194, %205 : vector<16x128xf32>
    %c1_95 = arith.constant 1 : index
    %c5_96 = arith.constant 5 : index
    %207 = memref.load %arg2[%c1_95, %c5_96] : memref<5x8xf32, #tpu.memory_space<smem>>
    %208 = vector.broadcast %207 : f32 to vector<16x128xf32>
    %209 = arith.mulf %8, %208 : vector<16x128xf32>
    %c1_97 = arith.constant 1 : index
    %c5_98 = arith.constant 5 : index
    %210 = memref.load %arg3[%c1_97, %c5_98] : memref<5x8xf32, #tpu.memory_space<smem>>
    %211 = vector.broadcast %210 : f32 to vector<16x128xf32>
    %212 = arith.addf %209, %211 : vector<16x128xf32>
    %cst_99 = arith.constant 0.000000e+00 : f32
    %213 = vector.broadcast %cst_99 : f32 to vector<16x128xf32>
    %214 = arith.maximumf %212, %213 : vector<16x128xf32>
    %c1_100 = arith.constant 1 : index
    %c5_101 = arith.constant 5 : index
    %215 = memref.load %arg4[%c1_100, %c5_101] : memref<5x8xf32, #tpu.memory_space<smem>>
    %216 = vector.broadcast %215 : f32 to vector<16x128xf32>
    %217 = arith.mulf %214, %216 : vector<16x128xf32>
    %218 = arith.addf %206, %217 : vector<16x128xf32>
    %c1_102 = arith.constant 1 : index
    %c6_103 = arith.constant 6 : index
    %219 = memref.load %arg2[%c1_102, %c6_103] : memref<5x8xf32, #tpu.memory_space<smem>>
    %220 = vector.broadcast %219 : f32 to vector<16x128xf32>
    %221 = arith.mulf %8, %220 : vector<16x128xf32>
    %c1_104 = arith.constant 1 : index
    %c6_105 = arith.constant 6 : index
    %222 = memref.load %arg3[%c1_104, %c6_105] : memref<5x8xf32, #tpu.memory_space<smem>>
    %223 = vector.broadcast %222 : f32 to vector<16x128xf32>
    %224 = arith.addf %221, %223 : vector<16x128xf32>
    %cst_106 = arith.constant 0.000000e+00 : f32
    %225 = vector.broadcast %cst_106 : f32 to vector<16x128xf32>
    %226 = arith.maximumf %224, %225 : vector<16x128xf32>
    %c1_107 = arith.constant 1 : index
    %c6_108 = arith.constant 6 : index
    %227 = memref.load %arg4[%c1_107, %c6_108] : memref<5x8xf32, #tpu.memory_space<smem>>
    %228 = vector.broadcast %227 : f32 to vector<16x128xf32>
    %229 = arith.mulf %226, %228 : vector<16x128xf32>
    %230 = arith.addf %218, %229 : vector<16x128xf32>
    %c1_109 = arith.constant 1 : index
    %c7_110 = arith.constant 7 : index
    %231 = memref.load %arg2[%c1_109, %c7_110] : memref<5x8xf32, #tpu.memory_space<smem>>
    %232 = vector.broadcast %231 : f32 to vector<16x128xf32>
    %233 = arith.mulf %8, %232 : vector<16x128xf32>
    %c1_111 = arith.constant 1 : index
    %c7_112 = arith.constant 7 : index
    %234 = memref.load %arg3[%c1_111, %c7_112] : memref<5x8xf32, #tpu.memory_space<smem>>
    %235 = vector.broadcast %234 : f32 to vector<16x128xf32>
    %236 = arith.addf %233, %235 : vector<16x128xf32>
    %cst_113 = arith.constant 0.000000e+00 : f32
    %237 = vector.broadcast %cst_113 : f32 to vector<16x128xf32>
    %238 = arith.maximumf %236, %237 : vector<16x128xf32>
    %c1_114 = arith.constant 1 : index
    %c7_115 = arith.constant 7 : index
    %239 = memref.load %arg4[%c1_114, %c7_115] : memref<5x8xf32, #tpu.memory_space<smem>>
    %240 = vector.broadcast %239 : f32 to vector<16x128xf32>
    %241 = arith.mulf %238, %240 : vector<16x128xf32>
    %242 = arith.addf %230, %241 : vector<16x128xf32>
    %243 = arith.addf %8, %242 : vector<16x128xf32>
    %c1_116 = arith.constant 1 : index
    %244 = memref.load %arg5[%c1_116] : memref<5xf32, #tpu.memory_space<smem>>
    %245 = vector.broadcast %244 : f32 to vector<16x128xf32>
    %246 = arith.addf %243, %245 : vector<16x128xf32>
    %cst_117 = arith.constant 0.000000e+00 : f32
    %247 = vector.broadcast %cst_117 : f32 to vector<8x128xf32>
    %c2_118 = arith.constant 2 : index
    %c0_119 = arith.constant 0 : index
    %248 = memref.load %arg2[%c2_118, %c0_119] : memref<5x8xf32, #tpu.memory_space<smem>>
    %249 = vector.broadcast %248 : f32 to vector<8x128xf32>
    %250 = arith.mulf %19, %249 : vector<8x128xf32>
    %c2_120 = arith.constant 2 : index
    %c0_121 = arith.constant 0 : index
    %251 = memref.load %arg3[%c2_120, %c0_121] : memref<5x8xf32, #tpu.memory_space<smem>>
    %252 = vector.broadcast %251 : f32 to vector<8x128xf32>
    %253 = arith.addf %250, %252 : vector<8x128xf32>
    %cst_122 = arith.constant 0.000000e+00 : f32
    %254 = vector.broadcast %cst_122 : f32 to vector<8x128xf32>
    %255 = arith.maximumf %253, %254 : vector<8x128xf32>
    %c2_123 = arith.constant 2 : index
    %c0_124 = arith.constant 0 : index
    %256 = memref.load %arg4[%c2_123, %c0_124] : memref<5x8xf32, #tpu.memory_space<smem>>
    %257 = vector.broadcast %256 : f32 to vector<8x128xf32>
    %258 = arith.mulf %255, %257 : vector<8x128xf32>
    %259 = arith.addf %247, %258 : vector<8x128xf32>
    %c2_125 = arith.constant 2 : index
    %c1_126 = arith.constant 1 : index
    %260 = memref.load %arg2[%c2_125, %c1_126] : memref<5x8xf32, #tpu.memory_space<smem>>
    %261 = vector.broadcast %260 : f32 to vector<8x128xf32>
    %262 = arith.mulf %19, %261 : vector<8x128xf32>
    %c2_127 = arith.constant 2 : index
    %c1_128 = arith.constant 1 : index
    %263 = memref.load %arg3[%c2_127, %c1_128] : memref<5x8xf32, #tpu.memory_space<smem>>
    %264 = vector.broadcast %263 : f32 to vector<8x128xf32>
    %265 = arith.addf %262, %264 : vector<8x128xf32>
    %cst_129 = arith.constant 0.000000e+00 : f32
    %266 = vector.broadcast %cst_129 : f32 to vector<8x128xf32>
    %267 = arith.maximumf %265, %266 : vector<8x128xf32>
    %c2_130 = arith.constant 2 : index
    %c1_131 = arith.constant 1 : index
    %268 = memref.load %arg4[%c2_130, %c1_131] : memref<5x8xf32, #tpu.memory_space<smem>>
    %269 = vector.broadcast %268 : f32 to vector<8x128xf32>
    %270 = arith.mulf %267, %269 : vector<8x128xf32>
    %271 = arith.addf %259, %270 : vector<8x128xf32>
    %c2_132 = arith.constant 2 : index
    %c2_133 = arith.constant 2 : index
    %272 = memref.load %arg2[%c2_132, %c2_133] : memref<5x8xf32, #tpu.memory_space<smem>>
    %273 = vector.broadcast %272 : f32 to vector<8x128xf32>
    %274 = arith.mulf %19, %273 : vector<8x128xf32>
    %c2_134 = arith.constant 2 : index
    %c2_135 = arith.constant 2 : index
    %275 = memref.load %arg3[%c2_134, %c2_135] : memref<5x8xf32, #tpu.memory_space<smem>>
    %276 = vector.broadcast %275 : f32 to vector<8x128xf32>
    %277 = arith.addf %274, %276 : vector<8x128xf32>
    %cst_136 = arith.constant 0.000000e+00 : f32
    %278 = vector.broadcast %cst_136 : f32 to vector<8x128xf32>
    %279 = arith.maximumf %277, %278 : vector<8x128xf32>
    %c2_137 = arith.constant 2 : index
    %c2_138 = arith.constant 2 : index
    %280 = memref.load %arg4[%c2_137, %c2_138] : memref<5x8xf32, #tpu.memory_space<smem>>
    %281 = vector.broadcast %280 : f32 to vector<8x128xf32>
    %282 = arith.mulf %279, %281 : vector<8x128xf32>
    %283 = arith.addf %271, %282 : vector<8x128xf32>
    %c2_139 = arith.constant 2 : index
    %c3_140 = arith.constant 3 : index
    %284 = memref.load %arg2[%c2_139, %c3_140] : memref<5x8xf32, #tpu.memory_space<smem>>
    %285 = vector.broadcast %284 : f32 to vector<8x128xf32>
    %286 = arith.mulf %19, %285 : vector<8x128xf32>
    %c2_141 = arith.constant 2 : index
    %c3_142 = arith.constant 3 : index
    %287 = memref.load %arg3[%c2_141, %c3_142] : memref<5x8xf32, #tpu.memory_space<smem>>
    %288 = vector.broadcast %287 : f32 to vector<8x128xf32>
    %289 = arith.addf %286, %288 : vector<8x128xf32>
    %cst_143 = arith.constant 0.000000e+00 : f32
    %290 = vector.broadcast %cst_143 : f32 to vector<8x128xf32>
    %291 = arith.maximumf %289, %290 : vector<8x128xf32>
    %c2_144 = arith.constant 2 : index
    %c3_145 = arith.constant 3 : index
    %292 = memref.load %arg4[%c2_144, %c3_145] : memref<5x8xf32, #tpu.memory_space<smem>>
    %293 = vector.broadcast %292 : f32 to vector<8x128xf32>
    %294 = arith.mulf %291, %293 : vector<8x128xf32>
    %295 = arith.addf %283, %294 : vector<8x128xf32>
    %c2_146 = arith.constant 2 : index
    %c4_147 = arith.constant 4 : index
    %296 = memref.load %arg2[%c2_146, %c4_147] : memref<5x8xf32, #tpu.memory_space<smem>>
    %297 = vector.broadcast %296 : f32 to vector<8x128xf32>
    %298 = arith.mulf %19, %297 : vector<8x128xf32>
    %c2_148 = arith.constant 2 : index
    %c4_149 = arith.constant 4 : index
    %299 = memref.load %arg3[%c2_148, %c4_149] : memref<5x8xf32, #tpu.memory_space<smem>>
    %300 = vector.broadcast %299 : f32 to vector<8x128xf32>
    %301 = arith.addf %298, %300 : vector<8x128xf32>
    %cst_150 = arith.constant 0.000000e+00 : f32
    %302 = vector.broadcast %cst_150 : f32 to vector<8x128xf32>
    %303 = arith.maximumf %301, %302 : vector<8x128xf32>
    %c2_151 = arith.constant 2 : index
    %c4_152 = arith.constant 4 : index
    %304 = memref.load %arg4[%c2_151, %c4_152] : memref<5x8xf32, #tpu.memory_space<smem>>
    %305 = vector.broadcast %304 : f32 to vector<8x128xf32>
    %306 = arith.mulf %303, %305 : vector<8x128xf32>
    %307 = arith.addf %295, %306 : vector<8x128xf32>
    %c2_153 = arith.constant 2 : index
    %c5_154 = arith.constant 5 : index
    %308 = memref.load %arg2[%c2_153, %c5_154] : memref<5x8xf32, #tpu.memory_space<smem>>
    %309 = vector.broadcast %308 : f32 to vector<8x128xf32>
    %310 = arith.mulf %19, %309 : vector<8x128xf32>
    %c2_155 = arith.constant 2 : index
    %c5_156 = arith.constant 5 : index
    %311 = memref.load %arg3[%c2_155, %c5_156] : memref<5x8xf32, #tpu.memory_space<smem>>
    %312 = vector.broadcast %311 : f32 to vector<8x128xf32>
    %313 = arith.addf %310, %312 : vector<8x128xf32>
    %cst_157 = arith.constant 0.000000e+00 : f32
    %314 = vector.broadcast %cst_157 : f32 to vector<8x128xf32>
    %315 = arith.maximumf %313, %314 : vector<8x128xf32>
    %c2_158 = arith.constant 2 : index
    %c5_159 = arith.constant 5 : index
    %316 = memref.load %arg4[%c2_158, %c5_159] : memref<5x8xf32, #tpu.memory_space<smem>>
    %317 = vector.broadcast %316 : f32 to vector<8x128xf32>
    %318 = arith.mulf %315, %317 : vector<8x128xf32>
    %319 = arith.addf %307, %318 : vector<8x128xf32>
    %c2_160 = arith.constant 2 : index
    %c6_161 = arith.constant 6 : index
    %320 = memref.load %arg2[%c2_160, %c6_161] : memref<5x8xf32, #tpu.memory_space<smem>>
    %321 = vector.broadcast %320 : f32 to vector<8x128xf32>
    %322 = arith.mulf %19, %321 : vector<8x128xf32>
    %c2_162 = arith.constant 2 : index
    %c6_163 = arith.constant 6 : index
    %323 = memref.load %arg3[%c2_162, %c6_163] : memref<5x8xf32, #tpu.memory_space<smem>>
    %324 = vector.broadcast %323 : f32 to vector<8x128xf32>
    %325 = arith.addf %322, %324 : vector<8x128xf32>
    %cst_164 = arith.constant 0.000000e+00 : f32
    %326 = vector.broadcast %cst_164 : f32 to vector<8x128xf32>
    %327 = arith.maximumf %325, %326 : vector<8x128xf32>
    %c2_165 = arith.constant 2 : index
    %c6_166 = arith.constant 6 : index
    %328 = memref.load %arg4[%c2_165, %c6_166] : memref<5x8xf32, #tpu.memory_space<smem>>
    %329 = vector.broadcast %328 : f32 to vector<8x128xf32>
    %330 = arith.mulf %327, %329 : vector<8x128xf32>
    %331 = arith.addf %319, %330 : vector<8x128xf32>
    %c2_167 = arith.constant 2 : index
    %c7_168 = arith.constant 7 : index
    %332 = memref.load %arg2[%c2_167, %c7_168] : memref<5x8xf32, #tpu.memory_space<smem>>
    %333 = vector.broadcast %332 : f32 to vector<8x128xf32>
    %334 = arith.mulf %19, %333 : vector<8x128xf32>
    %c2_169 = arith.constant 2 : index
    %c7_170 = arith.constant 7 : index
    %335 = memref.load %arg3[%c2_169, %c7_170] : memref<5x8xf32, #tpu.memory_space<smem>>
    %336 = vector.broadcast %335 : f32 to vector<8x128xf32>
    %337 = arith.addf %334, %336 : vector<8x128xf32>
    %cst_171 = arith.constant 0.000000e+00 : f32
    %338 = vector.broadcast %cst_171 : f32 to vector<8x128xf32>
    %339 = arith.maximumf %337, %338 : vector<8x128xf32>
    %c2_172 = arith.constant 2 : index
    %c7_173 = arith.constant 7 : index
    %340 = memref.load %arg4[%c2_172, %c7_173] : memref<5x8xf32, #tpu.memory_space<smem>>
    %341 = vector.broadcast %340 : f32 to vector<8x128xf32>
    %342 = arith.mulf %339, %341 : vector<8x128xf32>
    %343 = arith.addf %331, %342 : vector<8x128xf32>
    %344 = arith.addf %19, %343 : vector<8x128xf32>
    %c2_174 = arith.constant 2 : index
    %345 = memref.load %arg5[%c2_174] : memref<5xf32, #tpu.memory_space<smem>>
    %346 = vector.broadcast %345 : f32 to vector<8x128xf32>
    %347 = arith.addf %344, %346 : vector<8x128xf32>
    %cst_175 = arith.constant 0.000000e+00 : f32
    %348 = vector.broadcast %cst_175 : f32 to vector<4x128xf32>
    %c3_176 = arith.constant 3 : index
    %c0_177 = arith.constant 0 : index
    %349 = memref.load %arg2[%c3_176, %c0_177] : memref<5x8xf32, #tpu.memory_space<smem>>
    %350 = vector.broadcast %349 : f32 to vector<4x128xf32>
    %351 = arith.mulf %30, %350 : vector<4x128xf32>
    %c3_178 = arith.constant 3 : index
    %c0_179 = arith.constant 0 : index
    %352 = memref.load %arg3[%c3_178, %c0_179] : memref<5x8xf32, #tpu.memory_space<smem>>
    %353 = vector.broadcast %352 : f32 to vector<4x128xf32>
    %354 = arith.addf %351, %353 : vector<4x128xf32>
    %cst_180 = arith.constant 0.000000e+00 : f32
    %355 = vector.broadcast %cst_180 : f32 to vector<4x128xf32>
    %356 = arith.maximumf %354, %355 : vector<4x128xf32>
    %c3_181 = arith.constant 3 : index
    %c0_182 = arith.constant 0 : index
    %357 = memref.load %arg4[%c3_181, %c0_182] : memref<5x8xf32, #tpu.memory_space<smem>>
    %358 = vector.broadcast %357 : f32 to vector<4x128xf32>
    %359 = arith.mulf %356, %358 : vector<4x128xf32>
    %360 = arith.addf %348, %359 : vector<4x128xf32>
    %c3_183 = arith.constant 3 : index
    %c1_184 = arith.constant 1 : index
    %361 = memref.load %arg2[%c3_183, %c1_184] : memref<5x8xf32, #tpu.memory_space<smem>>
    %362 = vector.broadcast %361 : f32 to vector<4x128xf32>
    %363 = arith.mulf %30, %362 : vector<4x128xf32>
    %c3_185 = arith.constant 3 : index
    %c1_186 = arith.constant 1 : index
    %364 = memref.load %arg3[%c3_185, %c1_186] : memref<5x8xf32, #tpu.memory_space<smem>>
    %365 = vector.broadcast %364 : f32 to vector<4x128xf32>
    %366 = arith.addf %363, %365 : vector<4x128xf32>
    %cst_187 = arith.constant 0.000000e+00 : f32
    %367 = vector.broadcast %cst_187 : f32 to vector<4x128xf32>
    %368 = arith.maximumf %366, %367 : vector<4x128xf32>
    %c3_188 = arith.constant 3 : index
    %c1_189 = arith.constant 1 : index
    %369 = memref.load %arg4[%c3_188, %c1_189] : memref<5x8xf32, #tpu.memory_space<smem>>
    %370 = vector.broadcast %369 : f32 to vector<4x128xf32>
    %371 = arith.mulf %368, %370 : vector<4x128xf32>
    %372 = arith.addf %360, %371 : vector<4x128xf32>
    %c3_190 = arith.constant 3 : index
    %c2_191 = arith.constant 2 : index
    %373 = memref.load %arg2[%c3_190, %c2_191] : memref<5x8xf32, #tpu.memory_space<smem>>
    %374 = vector.broadcast %373 : f32 to vector<4x128xf32>
    %375 = arith.mulf %30, %374 : vector<4x128xf32>
    %c3_192 = arith.constant 3 : index
    %c2_193 = arith.constant 2 : index
    %376 = memref.load %arg3[%c3_192, %c2_193] : memref<5x8xf32, #tpu.memory_space<smem>>
    %377 = vector.broadcast %376 : f32 to vector<4x128xf32>
    %378 = arith.addf %375, %377 : vector<4x128xf32>
    %cst_194 = arith.constant 0.000000e+00 : f32
    %379 = vector.broadcast %cst_194 : f32 to vector<4x128xf32>
    %380 = arith.maximumf %378, %379 : vector<4x128xf32>
    %c3_195 = arith.constant 3 : index
    %c2_196 = arith.constant 2 : index
    %381 = memref.load %arg4[%c3_195, %c2_196] : memref<5x8xf32, #tpu.memory_space<smem>>
    %382 = vector.broadcast %381 : f32 to vector<4x128xf32>
    %383 = arith.mulf %380, %382 : vector<4x128xf32>
    %384 = arith.addf %372, %383 : vector<4x128xf32>
    %c3_197 = arith.constant 3 : index
    %c3_198 = arith.constant 3 : index
    %385 = memref.load %arg2[%c3_197, %c3_198] : memref<5x8xf32, #tpu.memory_space<smem>>
    %386 = vector.broadcast %385 : f32 to vector<4x128xf32>
    %387 = arith.mulf %30, %386 : vector<4x128xf32>
    %c3_199 = arith.constant 3 : index
    %c3_200 = arith.constant 3 : index
    %388 = memref.load %arg3[%c3_199, %c3_200] : memref<5x8xf32, #tpu.memory_space<smem>>
    %389 = vector.broadcast %388 : f32 to vector<4x128xf32>
    %390 = arith.addf %387, %389 : vector<4x128xf32>
    %cst_201 = arith.constant 0.000000e+00 : f32
    %391 = vector.broadcast %cst_201 : f32 to vector<4x128xf32>
    %392 = arith.maximumf %390, %391 : vector<4x128xf32>
    %c3_202 = arith.constant 3 : index
    %c3_203 = arith.constant 3 : index
    %393 = memref.load %arg4[%c3_202, %c3_203] : memref<5x8xf32, #tpu.memory_space<smem>>
    %394 = vector.broadcast %393 : f32 to vector<4x128xf32>
    %395 = arith.mulf %392, %394 : vector<4x128xf32>
    %396 = arith.addf %384, %395 : vector<4x128xf32>
    %c3_204 = arith.constant 3 : index
    %c4_205 = arith.constant 4 : index
    %397 = memref.load %arg2[%c3_204, %c4_205] : memref<5x8xf32, #tpu.memory_space<smem>>
    %398 = vector.broadcast %397 : f32 to vector<4x128xf32>
    %399 = arith.mulf %30, %398 : vector<4x128xf32>
    %c3_206 = arith.constant 3 : index
    %c4_207 = arith.constant 4 : index
    %400 = memref.load %arg3[%c3_206, %c4_207] : memref<5x8xf32, #tpu.memory_space<smem>>
    %401 = vector.broadcast %400 : f32 to vector<4x128xf32>
    %402 = arith.addf %399, %401 : vector<4x128xf32>
    %cst_208 = arith.constant 0.000000e+00 : f32
    %403 = vector.broadcast %cst_208 : f32 to vector<4x128xf32>
    %404 = arith.maximumf %402, %403 : vector<4x128xf32>
    %c3_209 = arith.constant 3 : index
    %c4_210 = arith.constant 4 : index
    %405 = memref.load %arg4[%c3_209, %c4_210] : memref<5x8xf32, #tpu.memory_space<smem>>
    %406 = vector.broadcast %405 : f32 to vector<4x128xf32>
    %407 = arith.mulf %404, %406 : vector<4x128xf32>
    %408 = arith.addf %396, %407 : vector<4x128xf32>
    %c3_211 = arith.constant 3 : index
    %c5_212 = arith.constant 5 : index
    %409 = memref.load %arg2[%c3_211, %c5_212] : memref<5x8xf32, #tpu.memory_space<smem>>
    %410 = vector.broadcast %409 : f32 to vector<4x128xf32>
    %411 = arith.mulf %30, %410 : vector<4x128xf32>
    %c3_213 = arith.constant 3 : index
    %c5_214 = arith.constant 5 : index
    %412 = memref.load %arg3[%c3_213, %c5_214] : memref<5x8xf32, #tpu.memory_space<smem>>
    %413 = vector.broadcast %412 : f32 to vector<4x128xf32>
    %414 = arith.addf %411, %413 : vector<4x128xf32>
    %cst_215 = arith.constant 0.000000e+00 : f32
    %415 = vector.broadcast %cst_215 : f32 to vector<4x128xf32>
    %416 = arith.maximumf %414, %415 : vector<4x128xf32>
    %c3_216 = arith.constant 3 : index
    %c5_217 = arith.constant 5 : index
    %417 = memref.load %arg4[%c3_216, %c5_217] : memref<5x8xf32, #tpu.memory_space<smem>>
    %418 = vector.broadcast %417 : f32 to vector<4x128xf32>
    %419 = arith.mulf %416, %418 : vector<4x128xf32>
    %420 = arith.addf %408, %419 : vector<4x128xf32>
    %c3_218 = arith.constant 3 : index
    %c6_219 = arith.constant 6 : index
    %421 = memref.load %arg2[%c3_218, %c6_219] : memref<5x8xf32, #tpu.memory_space<smem>>
    %422 = vector.broadcast %421 : f32 to vector<4x128xf32>
    %423 = arith.mulf %30, %422 : vector<4x128xf32>
    %c3_220 = arith.constant 3 : index
    %c6_221 = arith.constant 6 : index
    %424 = memref.load %arg3[%c3_220, %c6_221] : memref<5x8xf32, #tpu.memory_space<smem>>
    %425 = vector.broadcast %424 : f32 to vector<4x128xf32>
    %426 = arith.addf %423, %425 : vector<4x128xf32>
    %cst_222 = arith.constant 0.000000e+00 : f32
    %427 = vector.broadcast %cst_222 : f32 to vector<4x128xf32>
    %428 = arith.maximumf %426, %427 : vector<4x128xf32>
    %c3_223 = arith.constant 3 : index
    %c6_224 = arith.constant 6 : index
    %429 = memref.load %arg4[%c3_223, %c6_224] : memref<5x8xf32, #tpu.memory_space<smem>>
    %430 = vector.broadcast %429 : f32 to vector<4x128xf32>
    %431 = arith.mulf %428, %430 : vector<4x128xf32>
    %432 = arith.addf %420, %431 : vector<4x128xf32>
    %c3_225 = arith.constant 3 : index
    %c7_226 = arith.constant 7 : index
    %433 = memref.load %arg2[%c3_225, %c7_226] : memref<5x8xf32, #tpu.memory_space<smem>>
    %434 = vector.broadcast %433 : f32 to vector<4x128xf32>
    %435 = arith.mulf %30, %434 : vector<4x128xf32>
    %c3_227 = arith.constant 3 : index
    %c7_228 = arith.constant 7 : index
    %436 = memref.load %arg3[%c3_227, %c7_228] : memref<5x8xf32, #tpu.memory_space<smem>>
    %437 = vector.broadcast %436 : f32 to vector<4x128xf32>
    %438 = arith.addf %435, %437 : vector<4x128xf32>
    %cst_229 = arith.constant 0.000000e+00 : f32
    %439 = vector.broadcast %cst_229 : f32 to vector<4x128xf32>
    %440 = arith.maximumf %438, %439 : vector<4x128xf32>
    %c3_230 = arith.constant 3 : index
    %c7_231 = arith.constant 7 : index
    %441 = memref.load %arg4[%c3_230, %c7_231] : memref<5x8xf32, #tpu.memory_space<smem>>
    %442 = vector.broadcast %441 : f32 to vector<4x128xf32>
    %443 = arith.mulf %440, %442 : vector<4x128xf32>
    %444 = arith.addf %432, %443 : vector<4x128xf32>
    %445 = arith.addf %30, %444 : vector<4x128xf32>
    %c3_232 = arith.constant 3 : index
    %446 = memref.load %arg5[%c3_232] : memref<5xf32, #tpu.memory_space<smem>>
    %447 = vector.broadcast %446 : f32 to vector<4x128xf32>
    %448 = arith.addf %445, %447 : vector<4x128xf32>
    %cst_233 = arith.constant 0.000000e+00 : f32
    %449 = vector.broadcast %cst_233 : f32 to vector<2x128xf32>
    %c4_234 = arith.constant 4 : index
    %c0_235 = arith.constant 0 : index
    %450 = memref.load %arg2[%c4_234, %c0_235] : memref<5x8xf32, #tpu.memory_space<smem>>
    %451 = vector.broadcast %450 : f32 to vector<2x128xf32>
    %452 = arith.mulf %41, %451 : vector<2x128xf32>
    %c4_236 = arith.constant 4 : index
    %c0_237 = arith.constant 0 : index
    %453 = memref.load %arg3[%c4_236, %c0_237] : memref<5x8xf32, #tpu.memory_space<smem>>
    %454 = vector.broadcast %453 : f32 to vector<2x128xf32>
    %455 = arith.addf %452, %454 : vector<2x128xf32>
    %cst_238 = arith.constant 0.000000e+00 : f32
    %456 = vector.broadcast %cst_238 : f32 to vector<2x128xf32>
    %457 = arith.maximumf %455, %456 : vector<2x128xf32>
    %c4_239 = arith.constant 4 : index
    %c0_240 = arith.constant 0 : index
    %458 = memref.load %arg4[%c4_239, %c0_240] : memref<5x8xf32, #tpu.memory_space<smem>>
    %459 = vector.broadcast %458 : f32 to vector<2x128xf32>
    %460 = arith.mulf %457, %459 : vector<2x128xf32>
    %461 = arith.addf %449, %460 : vector<2x128xf32>
    %c4_241 = arith.constant 4 : index
    %c1_242 = arith.constant 1 : index
    %462 = memref.load %arg2[%c4_241, %c1_242] : memref<5x8xf32, #tpu.memory_space<smem>>
    %463 = vector.broadcast %462 : f32 to vector<2x128xf32>
    %464 = arith.mulf %41, %463 : vector<2x128xf32>
    %c4_243 = arith.constant 4 : index
    %c1_244 = arith.constant 1 : index
    %465 = memref.load %arg3[%c4_243, %c1_244] : memref<5x8xf32, #tpu.memory_space<smem>>
    %466 = vector.broadcast %465 : f32 to vector<2x128xf32>
    %467 = arith.addf %464, %466 : vector<2x128xf32>
    %cst_245 = arith.constant 0.000000e+00 : f32
    %468 = vector.broadcast %cst_245 : f32 to vector<2x128xf32>
    %469 = arith.maximumf %467, %468 : vector<2x128xf32>
    %c4_246 = arith.constant 4 : index
    %c1_247 = arith.constant 1 : index
    %470 = memref.load %arg4[%c4_246, %c1_247] : memref<5x8xf32, #tpu.memory_space<smem>>
    %471 = vector.broadcast %470 : f32 to vector<2x128xf32>
    %472 = arith.mulf %469, %471 : vector<2x128xf32>
    %473 = arith.addf %461, %472 : vector<2x128xf32>
    %c4_248 = arith.constant 4 : index
    %c2_249 = arith.constant 2 : index
    %474 = memref.load %arg2[%c4_248, %c2_249] : memref<5x8xf32, #tpu.memory_space<smem>>
    %475 = vector.broadcast %474 : f32 to vector<2x128xf32>
    %476 = arith.mulf %41, %475 : vector<2x128xf32>
    %c4_250 = arith.constant 4 : index
    %c2_251 = arith.constant 2 : index
    %477 = memref.load %arg3[%c4_250, %c2_251] : memref<5x8xf32, #tpu.memory_space<smem>>
    %478 = vector.broadcast %477 : f32 to vector<2x128xf32>
    %479 = arith.addf %476, %478 : vector<2x128xf32>
    %cst_252 = arith.constant 0.000000e+00 : f32
    %480 = vector.broadcast %cst_252 : f32 to vector<2x128xf32>
    %481 = arith.maximumf %479, %480 : vector<2x128xf32>
    %c4_253 = arith.constant 4 : index
    %c2_254 = arith.constant 2 : index
    %482 = memref.load %arg4[%c4_253, %c2_254] : memref<5x8xf32, #tpu.memory_space<smem>>
    %483 = vector.broadcast %482 : f32 to vector<2x128xf32>
    %484 = arith.mulf %481, %483 : vector<2x128xf32>
    %485 = arith.addf %473, %484 : vector<2x128xf32>
    %c4_255 = arith.constant 4 : index
    %c3_256 = arith.constant 3 : index
    %486 = memref.load %arg2[%c4_255, %c3_256] : memref<5x8xf32, #tpu.memory_space<smem>>
    %487 = vector.broadcast %486 : f32 to vector<2x128xf32>
    %488 = arith.mulf %41, %487 : vector<2x128xf32>
    %c4_257 = arith.constant 4 : index
    %c3_258 = arith.constant 3 : index
    %489 = memref.load %arg3[%c4_257, %c3_258] : memref<5x8xf32, #tpu.memory_space<smem>>
    %490 = vector.broadcast %489 : f32 to vector<2x128xf32>
    %491 = arith.addf %488, %490 : vector<2x128xf32>
    %cst_259 = arith.constant 0.000000e+00 : f32
    %492 = vector.broadcast %cst_259 : f32 to vector<2x128xf32>
    %493 = arith.maximumf %491, %492 : vector<2x128xf32>
    %c4_260 = arith.constant 4 : index
    %c3_261 = arith.constant 3 : index
    %494 = memref.load %arg4[%c4_260, %c3_261] : memref<5x8xf32, #tpu.memory_space<smem>>
    %495 = vector.broadcast %494 : f32 to vector<2x128xf32>
    %496 = arith.mulf %493, %495 : vector<2x128xf32>
    %497 = arith.addf %485, %496 : vector<2x128xf32>
    %c4_262 = arith.constant 4 : index
    %c4_263 = arith.constant 4 : index
    %498 = memref.load %arg2[%c4_262, %c4_263] : memref<5x8xf32, #tpu.memory_space<smem>>
    %499 = vector.broadcast %498 : f32 to vector<2x128xf32>
    %500 = arith.mulf %41, %499 : vector<2x128xf32>
    %c4_264 = arith.constant 4 : index
    %c4_265 = arith.constant 4 : index
    %501 = memref.load %arg3[%c4_264, %c4_265] : memref<5x8xf32, #tpu.memory_space<smem>>
    %502 = vector.broadcast %501 : f32 to vector<2x128xf32>
    %503 = arith.addf %500, %502 : vector<2x128xf32>
    %cst_266 = arith.constant 0.000000e+00 : f32
    %504 = vector.broadcast %cst_266 : f32 to vector<2x128xf32>
    %505 = arith.maximumf %503, %504 : vector<2x128xf32>
    %c4_267 = arith.constant 4 : index
    %c4_268 = arith.constant 4 : index
    %506 = memref.load %arg4[%c4_267, %c4_268] : memref<5x8xf32, #tpu.memory_space<smem>>
    %507 = vector.broadcast %506 : f32 to vector<2x128xf32>
    %508 = arith.mulf %505, %507 : vector<2x128xf32>
    %509 = arith.addf %497, %508 : vector<2x128xf32>
    %c4_269 = arith.constant 4 : index
    %c5_270 = arith.constant 5 : index
    %510 = memref.load %arg2[%c4_269, %c5_270] : memref<5x8xf32, #tpu.memory_space<smem>>
    %511 = vector.broadcast %510 : f32 to vector<2x128xf32>
    %512 = arith.mulf %41, %511 : vector<2x128xf32>
    %c4_271 = arith.constant 4 : index
    %c5_272 = arith.constant 5 : index
    %513 = memref.load %arg3[%c4_271, %c5_272] : memref<5x8xf32, #tpu.memory_space<smem>>
    %514 = vector.broadcast %513 : f32 to vector<2x128xf32>
    %515 = arith.addf %512, %514 : vector<2x128xf32>
    %cst_273 = arith.constant 0.000000e+00 : f32
    %516 = vector.broadcast %cst_273 : f32 to vector<2x128xf32>
    %517 = arith.maximumf %515, %516 : vector<2x128xf32>
    %c4_274 = arith.constant 4 : index
    %c5_275 = arith.constant 5 : index
    %518 = memref.load %arg4[%c4_274, %c5_275] : memref<5x8xf32, #tpu.memory_space<smem>>
    %519 = vector.broadcast %518 : f32 to vector<2x128xf32>
    %520 = arith.mulf %517, %519 : vector<2x128xf32>
    %521 = arith.addf %509, %520 : vector<2x128xf32>
    %c4_276 = arith.constant 4 : index
    %c6_277 = arith.constant 6 : index
    %522 = memref.load %arg2[%c4_276, %c6_277] : memref<5x8xf32, #tpu.memory_space<smem>>
    %523 = vector.broadcast %522 : f32 to vector<2x128xf32>
    %524 = arith.mulf %41, %523 : vector<2x128xf32>
    %c4_278 = arith.constant 4 : index
    %c6_279 = arith.constant 6 : index
    %525 = memref.load %arg3[%c4_278, %c6_279] : memref<5x8xf32, #tpu.memory_space<smem>>
    %526 = vector.broadcast %525 : f32 to vector<2x128xf32>
    %527 = arith.addf %524, %526 : vector<2x128xf32>
    %cst_280 = arith.constant 0.000000e+00 : f32
    %528 = vector.broadcast %cst_280 : f32 to vector<2x128xf32>
    %529 = arith.maximumf %527, %528 : vector<2x128xf32>
    %c4_281 = arith.constant 4 : index
    %c6_282 = arith.constant 6 : index
    %530 = memref.load %arg4[%c4_281, %c6_282] : memref<5x8xf32, #tpu.memory_space<smem>>
    %531 = vector.broadcast %530 : f32 to vector<2x128xf32>
    %532 = arith.mulf %529, %531 : vector<2x128xf32>
    %533 = arith.addf %521, %532 : vector<2x128xf32>
    %c4_283 = arith.constant 4 : index
    %c7_284 = arith.constant 7 : index
    %534 = memref.load %arg2[%c4_283, %c7_284] : memref<5x8xf32, #tpu.memory_space<smem>>
    %535 = vector.broadcast %534 : f32 to vector<2x128xf32>
    %536 = arith.mulf %41, %535 : vector<2x128xf32>
    %c4_285 = arith.constant 4 : index
    %c7_286 = arith.constant 7 : index
    %537 = memref.load %arg3[%c4_285, %c7_286] : memref<5x8xf32, #tpu.memory_space<smem>>
    %538 = vector.broadcast %537 : f32 to vector<2x128xf32>
    %539 = arith.addf %536, %538 : vector<2x128xf32>
    %cst_287 = arith.constant 0.000000e+00 : f32
    %540 = vector.broadcast %cst_287 : f32 to vector<2x128xf32>
    %541 = arith.maximumf %539, %540 : vector<2x128xf32>
    %c4_288 = arith.constant 4 : index
    %c7_289 = arith.constant 7 : index
    %542 = memref.load %arg4[%c4_288, %c7_289] : memref<5x8xf32, #tpu.memory_space<smem>>
    %543 = vector.broadcast %542 : f32 to vector<2x128xf32>
    %544 = arith.mulf %541, %543 : vector<2x128xf32>
    %545 = arith.addf %533, %544 : vector<2x128xf32>
    %546 = arith.addf %41, %545 : vector<2x128xf32>
    %c4_290 = arith.constant 4 : index
    %547 = memref.load %arg5[%c4_290] : memref<5xf32, #tpu.memory_space<smem>>
    %548 = vector.broadcast %547 : f32 to vector<2x128xf32>
    %549 = arith.addf %546, %548 : vector<2x128xf32>
    %550 = arith.addf %145, %549 : vector<2x128xf32>
    %cst_291 = arith.constant 0.707106769 : f32
    %551 = vector.broadcast %cst_291 : f32 to vector<2x128xf32>
    %552 = arith.mulf %550, %551 : vector<2x128xf32>
    %553 = arith.subf %145, %549 : vector<2x128xf32>
    %cst_292 = arith.constant 0.707106769 : f32
    %554 = vector.broadcast %cst_292 : f32 to vector<2x128xf32>
    %555 = arith.mulf %553, %554 : vector<2x128xf32>
    %556 = vector.shape_cast %552 : vector<2x128xf32> to vector<2x1x128xf32>
    %557 = vector.shape_cast %555 : vector<2x128xf32> to vector<2x1x128xf32>
    %558 = tpu.concatenate %556, %557 in 1 : vector<2x1x128xf32>, vector<2x1x128xf32> -> vector<2x2x128xf32>
    %559 = vector.shape_cast %558 : vector<2x2x128xf32> to vector<4x128xf32>
    %560 = arith.addf %559, %448 : vector<4x128xf32>
    %cst_293 = arith.constant 0.707106769 : f32
    %561 = vector.broadcast %cst_293 : f32 to vector<4x128xf32>
    %562 = arith.mulf %560, %561 : vector<4x128xf32>
    %563 = arith.subf %559, %448 : vector<4x128xf32>
    %cst_294 = arith.constant 0.707106769 : f32
    %564 = vector.broadcast %cst_294 : f32 to vector<4x128xf32>
    %565 = arith.mulf %563, %564 : vector<4x128xf32>
    %566 = vector.shape_cast %562 : vector<4x128xf32> to vector<4x1x128xf32>
    %567 = vector.shape_cast %565 : vector<4x128xf32> to vector<4x1x128xf32>
    %568 = tpu.concatenate %566, %567 in 1 : vector<4x1x128xf32>, vector<4x1x128xf32> -> vector<4x2x128xf32>
    %569 = vector.shape_cast %568 : vector<4x2x128xf32> to vector<8x128xf32>
    %570 = arith.addf %569, %347 : vector<8x128xf32>
    %cst_295 = arith.constant 0.707106769 : f32
    %571 = vector.broadcast %cst_295 : f32 to vector<8x128xf32>
    %572 = arith.mulf %570, %571 : vector<8x128xf32>
    %573 = arith.subf %569, %347 : vector<8x128xf32>
    %cst_296 = arith.constant 0.707106769 : f32
    %574 = vector.broadcast %cst_296 : f32 to vector<8x128xf32>
    %575 = arith.mulf %573, %574 : vector<8x128xf32>
    %576 = vector.shape_cast %572 : vector<8x128xf32> to vector<8x1x128xf32>
    %577 = vector.shape_cast %575 : vector<8x128xf32> to vector<8x1x128xf32>
    %578 = tpu.concatenate %576, %577 in 1 : vector<8x1x128xf32>, vector<8x1x128xf32> -> vector<8x2x128xf32>
    %579 = vector.shape_cast %578 : vector<8x2x128xf32> to vector<16x128xf32>
    %580 = arith.addf %579, %246 : vector<16x128xf32>
    %cst_297 = arith.constant 0.707106769 : f32
    %581 = vector.broadcast %cst_297 : f32 to vector<16x128xf32>
    %582 = arith.mulf %580, %581 : vector<16x128xf32>
    %583 = arith.subf %579, %246 : vector<16x128xf32>
    %cst_298 = arith.constant 0.707106769 : f32
    %584 = vector.broadcast %cst_298 : f32 to vector<16x128xf32>
    %585 = arith.mulf %583, %584 : vector<16x128xf32>
    %586 = vector.shape_cast %582 : vector<16x128xf32> to vector<16x1x128xf32>
    %587 = vector.shape_cast %585 : vector<16x128xf32> to vector<16x1x128xf32>
    %588 = tpu.concatenate %586, %587 in 1 : vector<16x1x128xf32>, vector<16x1x128xf32> -> vector<16x2x128xf32>
    %589 = vector.shape_cast %588 : vector<16x2x128xf32> to vector<32x128xf32>
    %c0_299 = arith.constant 0 : index
    %c0_300 = arith.constant 0 : index
    %590 = vector.load %arg6[%c0_299, %c0_300] : memref<32x128xf32, #tpu.memory_space<vmem>>, vector<32x128xf32>
    tpu.vector_store %arg6[%c0_299, %c0_300], %589 {strides = array<i32>} : memref<32x128xf32, #tpu.memory_space<vmem>>, vector<32x128xf32>,
    return
  }
  func.func @transform_0(%arg0: i32) -> (i32, i32) {
    %c0_i32 = arith.constant 0 : i32
    %c0_i32_0 = arith.constant 0 : i32
    return %c0_i32, %arg0 : i32, i32
  }
  func.func @transform_1(%arg0: i32) -> (i32, i32) {
    %c0_i32 = arith.constant 0 : i32
    %c0_i32_0 = arith.constant 0 : i32
    %c0_i32_1 = arith.constant 0 : i32
    return %c0_i32, %c0_i32_0 : i32, i32
  }
  func.func @transform_2(%arg0: i32) -> (i32, i32) {
    %c0_i32 = arith.constant 0 : i32
    %c0_i32_0 = arith.constant 0 : i32
    %c0_i32_1 = arith.constant 0 : i32
    return %c0_i32, %c0_i32_0 : i32, i32
  }
  func.func @transform_3(%arg0: i32) -> (i32, i32) {
    %c0_i32 = arith.constant 0 : i32
    %c0_i32_0 = arith.constant 0 : i32
    %c0_i32_1 = arith.constant 0 : i32
    return %c0_i32, %c0_i32_0 : i32, i32
  }
  func.func @transform_4(%arg0: i32) -> i32 {
    %c0_i32 = arith.constant 0 : i32
    %c0_i32_0 = arith.constant 0 : i32
    return %c0_i32 : i32
  }
  func.func @transform_5(%arg0: i32) -> (i32, i32) {
    %c0_i32 = arith.constant 0 : i32
    %c0_i32_0 = arith.constant 0 : i32
    return %c0_i32, %arg0 : i32, i32
  }
}

</mosaic_0001>

<llo_original>
// kernel: haar_learnable_nn_1d.1
$region0: #{haar_learnable_nn_1d.1}
  #allocation0 [shape = 'u32[]', space=smem, size = 0x4, offset = 0x4, fixed_abs, tag = 'smem constant byte address 0x4 - core index']
  #allocation1 [shape = 'u32[144,128]{1,0:T(1,128)}', space=vmem, size = 0x12000, scoped, tag = 'internal scratch']
  %s0 = inlined_call_operand.vmem [shape: f32[32,128], index: 0, kind: input, shape index: {}]
  %s1 = inlined_call_operand.vmem [shape: f32[5,8], index: 1, kind: input, shape index: {}]
  %s2 = inlined_call_operand.vmem [shape: f32[5,8], index: 2, kind: input, shape index: {}]
  %s3 = inlined_call_operand.vmem [shape: f32[5,8], index: 3, kind: input, shape index: {}]
  %s4 = inlined_call_operand.vmem [shape: f32[5], index: 4, kind: input, shape index: {}]
  %s5 = inlined_call_operand.vmem [shape: f32[32,128], index: 5, kind: output, shape index: {}]
  %s6 = sld [smem:[#allocation0]]
  $region46: #{haar_learnable_nn_1d.1} parent=0
    _
  %s8 = ssub.s32 1, %s6
  %s9 = scalar_select 0, %s8, %s6
  $region1: #{haar_learnable_nn_1d.1} parent=0
    #allocation2 [shape = 'u8[4096]{0}', space=smem, size = 0x1000, scoped, tag = 'input window, operand 1, single buffered']
    #allocation3 [shape = 's32[1]{0}', space=sflag, size = 0x4, scoped, tag = 'scoped memory for haar_learnable_nn_1d.1']
    #allocation4 [shape = 'u8[4096]{0}', space=smem, size = 0x1000, scoped, tag = 'input window, operand 2, single buffered']
    #allocation5 [shape = 's32[1]{0}', space=sflag, size = 0x4, scoped, tag = 'scoped memory for haar_learnable_nn_1d.1']
    #allocation6 [shape = 'u8[4096]{0}', space=smem, size = 0x1000, scoped, tag = 'input window, operand 3, single buffered']
    #allocation7 [shape = 'u8[512]{0}', space=smem, size = 0x200, scoped, tag = 'input window, operand 4, single buffered']
    #allocation8 [shape = 's32[1]{0}', space=sflag, size = 0x4, scoped, tag = 'scoped memory for haar_learnable_nn_1d.1']
    %10 = vsyncpa [#allocation3], 0
    %11 = vsyncpa [#allocation5], 0
    %12 = vsyncpa [#allocation8], 0
    // Predicated region
    $region2: #{haar_learnable_nn_1d.1} parent=1 // pred_check
      _
    $region3: #{haar_learnable_nn_1d.1} parent=1 // pred_check_branch
      %14 = sbr.rel (0) target = $region5
    $region4: #{haar_learnable_nn_1d.1} parent=1 // pred_region
      _
    $region5: #{haar_learnable_nn_1d.1} parent=1 // pred_fallthru
      _
    // Predicated region
    $region6: #{haar_learnable_nn_1d.1} parent=1 // pred_check
      _
    $region7: #{haar_learnable_nn_1d.1} parent=1 // pred_check_branch
      %16 = sbr.rel (0) target = $region9
    $region8: #{haar_learnable_nn_1d.1} parent=1 // pred_region
      %s18 = ssub.s32 128, 128
      %19 = vsyncadd [#allocation3], %s18
      %s21 = sshll.u32 %s1, 4
      %s22 = int_to_ptr.vmem [resolvable:$true] %s21
      %24 = dma.vmem_to_smem %s22, 128, [#allocation2], [#allocation3]
    $region9: #{haar_learnable_nn_1d.1} parent=1 // pred_fallthru
      _
    // Predicated region
    $region10: #{haar_learnable_nn_1d.1} parent=1 // pred_check
      _
    $region11: #{haar_learnable_nn_1d.1} parent=1 // pred_check_branch
      %26 = sbr.rel (0) target = $region13
    $region12: #{haar_learnable_nn_1d.1} parent=1 // pred_region
      %s28 = ssub.s32 128, 128
      %29 = vsyncadd [#allocation5], %s28
      %s31 = sshll.u32 %s2, 4
      %s32 = int_to_ptr.vmem [resolvable:$true] %s31
      %34 = dma.vmem_to_smem %s32, 128, [#allocation4], [#allocation5]
    $region13: #{haar_learnable_nn_1d.1} parent=1 // pred_fallthru
      _
    // Predicated region
    $region14: #{haar_learnable_nn_1d.1} parent=1 // pred_check
      _
    $region15: #{haar_learnable_nn_1d.1} parent=1 // pred_check_branch
      %36 = sbr.rel (0) target = $region17
    $region16: #{haar_learnable_nn_1d.1} parent=1 // pred_region
      %s38 = ssub.s32 128, 128
      %39 = vsyncadd [#allocation5], %s38
      %s41 = sshll.u32 %s3, 4
      %s42 = int_to_ptr.vmem [resolvable:$true] %s41
      %44 = dma.vmem_to_smem %s42, 128, [#allocation6], [#allocation5]
    $region17: #{haar_learnable_nn_1d.1} parent=1 // pred_fallthru
      _
    // Predicated region
    $region18: #{haar_learnable_nn_1d.1} parent=1 // pred_check
      _
    $region19: #{haar_learnable_nn_1d.1} parent=1 // pred_check_branch
      %46 = sbr.rel (0) target = $region21
    $region20: #{haar_learnable_nn_1d.1} parent=1 // pred_region
      %s48 = ssub.s32 16, 16
      %49 = vsyncadd [#allocation8], %s48
      %s51 = sshll.u32 %s4, 4
      %s52 = int_to_ptr.vmem [resolvable:$true] %s51
      %54 = dma.vmem_to_smem %s52, 16, [#allocation7], [#allocation8]
    $region21: #{haar_learnable_nn_1d.1} parent=1 // pred_fallthru
      _
    // Predicated region
    $region22: #{haar_learnable_nn_1d.1} parent=1 // pred_check
      _
    $region23: #{haar_learnable_nn_1d.1} parent=1 // pred_check_branch
      %56 = sbr.rel (0) target = $region25
    $region24: #{haar_learnable_nn_1d.1} parent=1 // pred_region
      %57 = dma.done [#allocation3], 128
    $region25: #{haar_learnable_nn_1d.1} parent=1 // pred_fallthru
      _
    // Predicated region
    $region26: #{haar_learnable_nn_1d.1} parent=1 // pred_check
      _
    $region27: #{haar_learnable_nn_1d.1} parent=1 // pred_check_branch
      %59 = sbr.rel (0) target = $region29
    $region28: #{haar_learnable_nn_1d.1} parent=1 // pred_region
      %60 = dma.done [#allocation5], 128
    $region29: #{haar_learnable_nn_1d.1} parent=1 // pred_fallthru
      _
    // Predicated region
    $region30: #{haar_learnable_nn_1d.1} parent=1 // pred_check
      _
    $region31: #{haar_learnable_nn_1d.1} parent=1 // pred_check_branch
      %62 = sbr.rel (0) target = $region33
    $region32: #{haar_learnable_nn_1d.1} parent=1 // pred_region
      %63 = dma.done [#allocation5], 128
    $region33: #{haar_learnable_nn_1d.1} parent=1 // pred_fallthru
      _
    // Predicated region
    $region34: #{haar_learnable_nn_1d.1} parent=1 // pred_check
      _
    $region35: #{haar_learnable_nn_1d.1} parent=1 // pred_check_branch
      %65 = sbr.rel (0) target = $region37
    $region36: #{haar_learnable_nn_1d.1} parent=1 // pred_region
      %66 = dma.done [#allocation8], 16
    $region37: #{haar_learnable_nn_1d.1} parent=1 // pred_fallthru
      _
    %67 = sfence
    %v68 = vld [vmem:[%s0] sm:$0xff]
    %v69 = vld [vmem:[%s0 + $0x8] sm:$0xff]
    %v70 = vld [vmem:[%s0 + $0x10] sm:$0xff]
    %v71 = vld [vmem:[%s0 + $0x18] sm:$0xff]
    %v76 = vcombine.high %v68, %v68
    %v78 = vunpack.c.l.s4 1983009808
    %v79 = vunpack.c.0.s8 %v78
    %v80 = vlaneseq
    %v81 = vshrl.u32 %v80, 7
    %v82 = vsub.s32 %v79, %v81
    %v83 = vrot.slane %v68, %v82
    %v85 = vunpack.c.l.s4 1983009808
    %v86 = vunpack.c.0.s8 %v85
    %v87 = vlaneseq
    %v88 = vshrl.u32 %v87, 7
    %v89 = vsub.s32 %v86, %v88
    %v90 = vrot.slane %v76, %v89
    %v91 = vcombine.high %v83, %v83
    %v92 = vcombine.high %v90, %v90
    %v93 = vcombine.high %v69, %v69
    %v95 = vunpack.c.l.s4 1983009808
    %v96 = vunpack.c.0.s8 %v95
    %v97 = vlaneseq
    %v98 = vshrl.u32 %v97, 7
    %v99 = vsub.s32 %v96, %v98
    %v100 = vrot.slane %v69, %v99
    %v102 = vunpack.c.l.s4 1983009808
    %v103 = vunpack.c.0.s8 %v102
    %v104 = vlaneseq
    %v105 = vshrl.u32 %v104, 7
    %v106 = vsub.s32 %v103, %v105
    %v107 = vrot.slane %v93, %v106
    %v108 = vcombine.high %v100, %v100
    %v109 = vcombine.high %v107, %v107
    %v110 = vcombine.high %v70, %v70
    %v112 = vunpack.c.l.s4 1983009808
    %v113 = vunpack.c.0.s8 %v112
    %v114 = vlaneseq
    %v115 = vshrl.u32 %v114, 7
    %v116 = vsub.s32 %v113, %v115
    %v117 = vrot.slane %v70, %v116
    %v119 = vunpack.c.l.s4 1983009808
    %v120 = vunpack.c.0.s8 %v119
    %v121 = vlaneseq
    %v122 = vshrl.u32 %v121, 7
    %v123 = vsub.s32 %v120, %v122
    %v124 = vrot.slane %v110, %v123
    %v125 = vcombine.high %v117, %v117
    %v126 = vcombine.high %v124, %v124
    %v127 = vcombine.high %v71, %v71
    %v129 = vunpack.c.l.s4 1983009808
    %v130 = vunpack.c.0.s8 %v129
    %v131 = vlaneseq
    %v132 = vshrl.u32 %v131, 7
    %v133 = vsub.s32 %v130, %v132
    %v134 = vrot.slane %v71, %v133
    %v136 = vunpack.c.l.s4 1983009808
    %v137 = vunpack.c.0.s8 %v136
    %v138 = vlaneseq
    %v139 = vshrl.u32 %v138, 7
    %v140 = vsub.s32 %v137, %v139
    %v141 = vrot.slane %v127, %v140
    %v142 = vcombine.high %v134, %v134
    %v143 = vcombine.high %v141, %v141
    %v160 = vrot.slane %v83, 7
    %v161 = vrot.slane %v160, 2
    %v162 = vrot.slane %v91, 7
    %v163 = vrot.slane %v162, 2
    %v164 = vrot.slane %v90, 7
    %v165 = vrot.slane %v164, 2
    %v166 = vrot.slane %v92, 7
    %v167 = vrot.slane %v166, 2
    %v168 = vrot.slane %v100, 7
    %v169 = vrot.slane %v168, 2
    %v170 = vrot.slane %v108, 7
    %v171 = vrot.slane %v170, 2
    %v172 = vrot.slane %v107, 7
    %v173 = vrot.slane %v172, 2
    %v174 = vrot.slane %v109, 7
    %v175 = vrot.slane %v174, 2
    %v176 = vrot.slane %v117, 7
    %v177 = vrot.slane %v176, 2
    %v178 = vrot.slane %v125, 7
    %v179 = vrot.slane %v178, 2
    %v180 = vrot.slane %v124, 7
    %v181 = vrot.slane %v180, 2
    %v182 = vrot.slane %v126, 7
    %v183 = vrot.slane %v182, 2
    %v184 = vrot.slane %v134, 7
    %v185 = vrot.slane %v184, 2
    %v186 = vrot.slane %v142, 7
    %v187 = vrot.slane %v186, 2
    %v188 = vrot.slane %v141, 7
    %v189 = vrot.slane %v188, 2
    %v190 = vrot.slane %v143, 7
    %v191 = vrot.slane %v190, 2
    %v208 = vsub.f32 %v83, %v161
    %v209 = vsub.f32 %v91, %v163
    %v210 = vsub.f32 %v90, %v165
    %v211 = vsub.f32 %v92, %v167
    %v212 = vsub.f32 %v100, %v169
    %v213 = vsub.f32 %v108, %v171
    %v214 = vsub.f32 %v107, %v173
    %v215 = vsub.f32 %v109, %v175
    %v216 = vsub.f32 %v117, %v177
    %v217 = vsub.f32 %v125, %v179
    %v218 = vsub.f32 %v124, %v181
    %v219 = vsub.f32 %v126, %v183
    %v220 = vsub.f32 %v134, %v185
    %v221 = vsub.f32 %v142, %v187
    %v222 = vsub.f32 %v141, %v189
    %v223 = vsub.f32 %v143, %v191
    %v224 = vmul.f32 %v208, 0.70710677
    %v225 = vmul.f32 %v209, 0.70710677
    %v226 = vmul.f32 %v210, 0.70710677
    %v227 = vmul.f32 %v211, 0.70710677
    %v228 = vmul.f32 %v212, 0.70710677
    %v229 = vmul.f32 %v213, 0.70710677
    %v230 = vmul.f32 %v214, 0.70710677
    %v231 = vmul.f32 %v215, 0.70710677
    %v232 = vmul.f32 %v216, 0.70710677
    %v233 = vmul.f32 %v217, 0.70710677
    %v234 = vmul.f32 %v218, 0.70710677
    %v235 = vmul.f32 %v219, 0.70710677
    %v236 = vmul.f32 %v220, 0.70710677
    %v237 = vmul.f32 %v221, 0.70710677
    %v238 = vmul.f32 %v222, 0.70710677
    %v239 = vmul.f32 %v223, 0.70710677
    %v240 = vadd.f32 %v83, %v161
    %v241 = vadd.f32 %v91, %v163
    %v242 = vadd.f32 %v90, %v165
    %v243 = vadd.f32 %v92, %v167
    %v244 = vadd.f32 %v100, %v169
    %v245 = vadd.f32 %v108, %v171
    %v246 = vadd.f32 %v107, %v173
    %v247 = vadd.f32 %v109, %v175
    %v248 = vadd.f32 %v117, %v177
    %v249 = vadd.f32 %v125, %v179
    %v250 = vadd.f32 %v124, %v181
    %v251 = vadd.f32 %v126, %v183
    %v252 = vadd.f32 %v134, %v185
    %v253 = vadd.f32 %v142, %v187
    %v254 = vadd.f32 %v141, %v189
    %v255 = vadd.f32 %v143, %v191
    %v256 = vmul.f32 %v240, 0.70710677
    %v257 = vmul.f32 %v241, 0.70710677
    %v258 = vmul.f32 %v242, 0.70710677
    %v259 = vmul.f32 %v243, 0.70710677
    %v260 = vmul.f32 %v244, 0.70710677
    %v261 = vmul.f32 %v245, 0.70710677
    %v262 = vmul.f32 %v246, 0.70710677
    %v263 = vmul.f32 %v247, 0.70710677
    %v264 = vmul.f32 %v248, 0.70710677
    %v265 = vmul.f32 %v249, 0.70710677
    %v266 = vmul.f32 %v250, 0.70710677
    %v267 = vmul.f32 %v251, 0.70710677
    %v268 = vmul.f32 %v252, 0.70710677
    %v269 = vmul.f32 %v253, 0.70710677
    %v270 = vmul.f32 %v254, 0.70710677
    %v271 = vmul.f32 %v255, 0.70710677
    %v272 = vsub.f32 %v256, %v257
    %v273 = vsub.f32 %v258, %v259
    %v274 = vsub.f32 %v260, %v261
    %v275 = vsub.f32 %v262, %v263
    %v276 = vsub.f32 %v264, %v265
    %v277 = vsub.f32 %v266, %v267
    %v278 = vsub.f32 %v268, %v269
    %v279 = vsub.f32 %v270, %v271
    %v280 = vmul.f32 %v272, 0.70710677
    %v281 = vmul.f32 %v273, 0.70710677
    %v282 = vmul.f32 %v274, 0.70710677
    %v283 = vmul.f32 %v275, 0.70710677
    %v284 = vmul.f32 %v276, 0.70710677
    %v285 = vmul.f32 %v277, 0.70710677
    %v286 = vmul.f32 %v278, 0.70710677
    %v287 = vmul.f32 %v279, 0.70710677
    %v288 = vadd.f32 %v256, %v257
    %v289 = vadd.f32 %v258, %v259
    %v290 = vadd.f32 %v260, %v261
    %v291 = vadd.f32 %v262, %v263
    %v292 = vadd.f32 %v264, %v265
    %v293 = vadd.f32 %v266, %v267
    %v294 = vadd.f32 %v268, %v269
    %v295 = vadd.f32 %v270, %v271
    %v296 = vmul.f32 %v288, 0.70710677
    %v297 = vmul.f32 %v289, 0.70710677
    %v298 = vmul.f32 %v290, 0.70710677
    %v299 = vmul.f32 %v291, 0.70710677
    %v300 = vmul.f32 %v292, 0.70710677
    %v301 = vmul.f32 %v293, 0.70710677
    %v302 = vmul.f32 %v294, 0.70710677
    %v303 = vmul.f32 %v295, 0.70710677
    %v304 = vsub.f32 %v296, %v297
    %v305 = vsub.f32 %v298, %v299
    %v306 = vsub.f32 %v300, %v301
    %v307 = vsub.f32 %v302, %v303
    %v308 = vmul.f32 %v304, 0.70710677
    %v309 = vmul.f32 %v305, 0.70710677
    %v310 = vmul.f32 %v306, 0.70710677
    %v311 = vmul.f32 %v307, 0.70710677
    %v312 = vadd.f32 %v296, %v297
    %v313 = vadd.f32 %v298, %v299
    %v314 = vadd.f32 %v300, %v301
    %v315 = vadd.f32 %v302, %v303
    %v316 = vmul.f32 %v312, 0.70710677
    %v317 = vmul.f32 %v313, 0.70710677
    %v318 = vmul.f32 %v314, 0.70710677
    %v319 = vmul.f32 %v315, 0.70710677
    %v320 = vsub.f32 %v316, %v317
    %v321 = vsub.f32 %v318, %v319
    %v322 = vmul.f32 %v320, 0.70710677
    %v323 = vmul.f32 %v321, 0.70710677
    %v324 = vadd.f32 %v316, %v317
    %v325 = vadd.f32 %v318, %v319
    %v326 = vmul.f32 %v324, 0.70710677
    %v327 = vmul.f32 %v325, 0.70710677
    %s328 = sld [smem:[#allocation2]]
    %v329 = vstv %s328
    %v330 = vmul.f32 %v326, %v329
    %v331 = vmul.f32 %v327, %v329
    %s332 = sld [smem:[#allocation4]]
    %v333 = vstv %s332
    %v334 = vadd.f32 %v330, %v333
    %v335 = vadd.f32 %v331, %v333
    %v336 = vmax.f32 %v334, 0.0
    %v337 = vmax.f32 %v335, 0.0
    %s338 = sld [smem:[#allocation6]]
    %v339 = vstv %s338
    %v340 = vmul.f32 %v336, %v339
    %v341 = vmul.f32 %v337, %v339
    %v342 = vadd.f32 %v340, 0.0
    %v343 = vadd.f32 %v341, 0.0
    %s344 = sld [smem:[#allocation2 + $0x1]]
    %v345 = vstv %s344
    %v346 = vmul.f32 %v326, %v345
    %v347 = vmul.f32 %v327, %v345
    %s348 = sld [smem:[#allocation4 + $0x1]]
    %v349 = vstv %s348
    %v350 = vadd.f32 %v346, %v349
    %v351 = vadd.f32 %v347, %v349
    %v352 = vmax.f32 %v350, 0.0
    %v353 = vmax.f32 %v351, 0.0
    %s354 = sld [smem:[#allocation6 + $0x1]]
    %v355 = vstv %s354
    %v356 = vmul.f32 %v352, %v355
    %v357 = vmul.f32 %v353, %v355
    %v358 = vadd.f32 %v342, %v356
    %v359 = vadd.f32 %v343, %v357
    %s360 = sld [smem:[#allocation2 + $0x2]]
    %v361 = vstv %s360
    %v362 = vmul.f32 %v326, %v361
    %v363 = vmul.f32 %v327, %v361
    %s364 = sld [smem:[#allocation4 + $0x2]]
    %v365 = vstv %s364
    %v366 = vadd.f32 %v362, %v365
    %v367 = vadd.f32 %v363, %v365
    %v368 = vmax.f32 %v366, 0.0
    %v369 = vmax.f32 %v367, 0.0
    %s370 = sld [smem:[#allocation6 + $0x2]]
    %v371 = vstv %s370
    %v372 = vmul.f32 %v368, %v371
    %v373 = vmul.f32 %v369, %v371
    %v374 = vadd.f32 %v358, %v372
    %v375 = vadd.f32 %v359, %v373
    %s376 = sld [smem:[#allocation2 + $0x3]]
    %v377 = vstv %s376
    %v378 = vmul.f32 %v326, %v377
    %v379 = vmul.f32 %v327, %v377
    %s380 = sld [smem:[#allocation4 + $0x3]]
    %v381 = vstv %s380
    %v382 = vadd.f32 %v378, %v381
    %v383 = vadd.f32 %v379, %v381
    %v384 = vmax.f32 %v382, 0.0
    %v385 = vmax.f32 %v383, 0.0
    %s386 = sld [smem:[#allocation6 + $0x3]]
    %v387 = vstv %s386
    %v388 = vmul.f32 %v384, %v387
    %v389 = vmul.f32 %v385, %v387
    %v390 = vadd.f32 %v374, %v388
    %v391 = vadd.f32 %v375, %v389
    %s392 = sld [smem:[#allocation2 + $0x4]]
    %v393 = vstv %s392
    %v394 = vmul.f32 %v326, %v393
    %v395 = vmul.f32 %v327, %v393
    %s396 = sld [smem:[#allocation4 + $0x4]]
    %v397 = vstv %s396
    %v398 = vadd.f32 %v394, %v397
    %v399 = vadd.f32 %v395, %v397
    %v400 = vmax.f32 %v398, 0.0
    %v401 = vmax.f32 %v399, 0.0
    %s402 = sld [smem:[#allocation6 + $0x4]]
    %v403 = vstv %s402
    %v404 = vmul.f32 %v400, %v403
    %v405 = vmul.f32 %v401, %v403
    %v406 = vadd.f32 %v390, %v404
    %v407 = vadd.f32 %v391, %v405
    %s408 = sld [smem:[#allocation2 + $0x5]]
    %v409 = vstv %s408
    %v410 = vmul.f32 %v326, %v409
    %v411 = vmul.f32 %v327, %v409
    %s412 = sld [smem:[#allocation4 + $0x5]]
    %v413 = vstv %s412
    %v414 = vadd.f32 %v410, %v413
    %v415 = vadd.f32 %v411, %v413
    %v416 = vmax.f32 %v414, 0.0
    %v417 = vmax.f32 %v415, 0.0
    %s418 = sld [smem:[#allocation6 + $0x5]]
    %v419 = vstv %s418
    %v420 = vmul.f32 %v416, %v419
    %v421 = vmul.f32 %v417, %v419
    %v422 = vadd.f32 %v406, %v420
    %v423 = vadd.f32 %v407, %v421
    %s424 = sld [smem:[#allocation2 + $0x6]]
    %v425 = vstv %s424
    %v426 = vmul.f32 %v326, %v425
    %v427 = vmul.f32 %v327, %v425
    %s428 = sld [smem:[#allocation4 + $0x6]]
    %v429 = vstv %s428
    %v430 = vadd.f32 %v426, %v429
    %v431 = vadd.f32 %v427, %v429
    %v432 = vmax.f32 %v430, 0.0
    %v433 = vmax.f32 %v431, 0.0
    %s434 = sld [smem:[#allocation6 + $0x6]]
    %v435 = vstv %s434
    %v436 = vmul.f32 %v432, %v435
    %v437 = vmul.f32 %v433, %v435
    %v438 = vadd.f32 %v422, %v436
    %v439 = vadd.f32 %v423, %v437
    %s440 = sld [smem:[#allocation2 + $0x7]]
    %v441 = vstv %s440
    %v442 = vmul.f32 %v326, %v441
    %v443 = vmul.f32 %v327, %v441
    %s444 = sld [smem:[#allocation4 + $0x7]]
    %v445 = vstv %s444
    %v446 = vadd.f32 %v442, %v445
    %v447 = vadd.f32 %v443, %v445
    %v448 = vmax.f32 %v446, 0.0
    %v449 = vmax.f32 %v447, 0.0
    %s450 = sld [smem:[#allocation6 + $0x7]]
    %v451 = vstv %s450
    %v452 = vmul.f32 %v448, %v451
    %v453 = vmul.f32 %v449, %v451
    %v454 = vadd.f32 %v438, %v452
    %v455 = vadd.f32 %v439, %v453
    %v456 = vadd.f32 %v326, %v454
    %v457 = vadd.f32 %v327, %v455
    %s458 = sld [smem:[#allocation7]]
    %v459 = vstv %s458
    %v460 = vadd.f32 %v456, %v459
    %v461 = vadd.f32 %v457, %v459
    %s462 = sld [smem:[#allocation2 + $0x80]]
    %v463 = vstv %s462
    %v464 = vmul.f32 %v224, %v463
    %v465 = vmul.f32 %v225, %v463
    %v466 = vmul.f32 %v226, %v463
    %v467 = vmul.f32 %v227, %v463
    %v468 = vmul.f32 %v228, %v463
    %v469 = vmul.f32 %v229, %v463
    %v470 = vmul.f32 %v230, %v463
    %v471 = vmul.f32 %v231, %v463
    %v472 = vmul.f32 %v232, %v463
    %v473 = vmul.f32 %v233, %v463
    %v474 = vmul.f32 %v234, %v463
    %v475 = vmul.f32 %v235, %v463
    %v476 = vmul.f32 %v236, %v463
    %v477 = vmul.f32 %v237, %v463
    %v478 = vmul.f32 %v238, %v463
    %v479 = vmul.f32 %v239, %v463
    %s480 = sld [smem:[#allocation4 + $0x80]]
    %v481 = vstv %s480
    %v482 = vadd.f32 %v464, %v481
    %v483 = vadd.f32 %v465, %v481
    %v484 = vadd.f32 %v466, %v481
    %v485 = vadd.f32 %v467, %v481
    %v486 = vadd.f32 %v468, %v481
    %v487 = vadd.f32 %v469, %v481
    %v488 = vadd.f32 %v470, %v481
    %v489 = vadd.f32 %v471, %v481
    %v490 = vadd.f32 %v472, %v481
    %v491 = vadd.f32 %v473, %v481
    %v492 = vadd.f32 %v474, %v481
    %v493 = vadd.f32 %v475, %v481
    %v494 = vadd.f32 %v476, %v481
    %v495 = vadd.f32 %v477, %v481
    %v496 = vadd.f32 %v478, %v481
    %v497 = vadd.f32 %v479, %v481
    %v498 = vmax.f32 %v482, 0.0
    %v499 = vmax.f32 %v483, 0.0
    %v500 = vmax.f32 %v484, 0.0
    %v501 = vmax.f32 %v485, 0.0
    %v502 = vmax.f32 %v486, 0.0
    %v503 = vmax.f32 %v487, 0.0
    %v504 = vmax.f32 %v488, 0.0
    %v505 = vmax.f32 %v489, 0.0
    %v506 = vmax.f32 %v490, 0.0
    %v507 = vmax.f32 %v491, 0.0
    %v508 = vmax.f32 %v492, 0.0
    %v509 = vmax.f32 %v493, 0.0
    %v510 = vmax.f32 %v494, 0.0
    %v511 = vmax.f32 %v495, 0.0
    %v512 = vmax.f32 %v496, 0.0
    %v513 = vmax.f32 %v497, 0.0
    %s514 = sld [smem:[#allocation6 + $0x80]]
    %v515 = vstv %s514
    %v516 = vmul.f32 %v498, %v515
    %v517 = vmul.f32 %v499, %v515
    %v518 = vmul.f32 %v500, %v515
    %v519 = vmul.f32 %v501, %v515
    %v520 = vmul.f32 %v502, %v515
    %v521 = vmul.f32 %v503, %v515
    %v522 = vmul.f32 %v504, %v515
    %v523 = vmul.f32 %v505, %v515
    %v524 = vmul.f32 %v506, %v515
    %v525 = vmul.f32 %v507, %v515
    %v526 = vmul.f32 %v508, %v515
    %v527 = vmul.f32 %v509, %v515
    %v528 = vmul.f32 %v510, %v515
    %v529 = vmul.f32 %v511, %v515
    %v530 = vmul.f32 %v512, %v515
    %v531 = vmul.f32 %v513, %v515
    %v532 = vadd.f32 %v516, 0.0
    %v533 = vadd.f32 %v517, 0.0
    %v534 = vadd.f32 %v518, 0.0
    %v535 = vadd.f32 %v519, 0.0
    %v536 = vadd.f32 %v520, 0.0
    %v537 = vadd.f32 %v521, 0.0
    %v538 = vadd.f32 %v522, 0.0
    %v539 = vadd.f32 %v523, 0.0
    %v540 = vadd.f32 %v524, 0.0
    %v541 = vadd.f32 %v525, 0.0
    %v542 = vadd.f32 %v526, 0.0
    %v543 = vadd.f32 %v527, 0.0
    %v544 = vadd.f32 %v528, 0.0
    %v545 = vadd.f32 %v529, 0.0
    %v546 = vadd.f32 %v530, 0.0
    %v547 = vadd.f32 %v531, 0.0
    %s548 = sld [smem:[#allocation2 + $0x81]]
    %v549 = vstv %s548
    %v550 = vmul.f32 %v224, %v549
    %v551 = vmul.f32 %v225, %v549
    %v552 = vmul.f32 %v226, %v549
    %v553 = vmul.f32 %v227, %v549
    %v554 = vmul.f32 %v228, %v549
    %v555 = vmul.f32 %v229, %v549
    %v556 = vmul.f32 %v230, %v549
    %v557 = vmul.f32 %v231, %v549
    %v558 = vmul.f32 %v232, %v549
    %v559 = vmul.f32 %v233, %v549
    %v560 = vmul.f32 %v234, %v549
    %v561 = vmul.f32 %v235, %v549
    %v562 = vmul.f32 %v236, %v549
    %v563 = vmul.f32 %v237, %v549
    %v564 = vmul.f32 %v238, %v549
    %v565 = vmul.f32 %v239, %v549
    %s566 = sld [smem:[#allocation4 + $0x81]]
    %v567 = vstv %s566
    %v568 = vadd.f32 %v550, %v567
    %v569 = vadd.f32 %v551, %v567
    %v570 = vadd.f32 %v552, %v567
    %v571 = vadd.f32 %v553, %v567
    %v572 = vadd.f32 %v554, %v567
    %v573 = vadd.f32 %v555, %v567
    %v574 = vadd.f32 %v556, %v567
    %v575 = vadd.f32 %v557, %v567
    %v576 = vadd.f32 %v558, %v567
    %v577 = vadd.f32 %v559, %v567
    %v578 = vadd.f32 %v560, %v567
    %v579 = vadd.f32 %v561, %v567
    %v580 = vadd.f32 %v562, %v567
    %v581 = vadd.f32 %v563, %v567
    %v582 = vadd.f32 %v564, %v567
    %v583 = vadd.f32 %v565, %v567
    %v584 = vmax.f32 %v568, 0.0
    %v585 = vmax.f32 %v569, 0.0
    %v586 = vmax.f32 %v570, 0.0
    %v587 = vmax.f32 %v571, 0.0
    %v588 = vmax.f32 %v572, 0.0
    %v589 = vmax.f32 %v573, 0.0
    %v590 = vmax.f32 %v574, 0.0
    %v591 = vmax.f32 %v575, 0.0
    %v592 = vmax.f32 %v576, 0.0
    %v593 = vmax.f32 %v577, 0.0
    %v594 = vmax.f32 %v578, 0.0
    %v595 = vmax.f32 %v579, 0.0
    %v596 = vmax.f32 %v580, 0.0
    %v597 = vmax.f32 %v581, 0.0
    %v598 = vmax.f32 %v582, 0.0
    %v599 = vmax.f32 %v583, 0.0
    %s600 = sld [smem:[#allocation6 + $0x81]]
    %v601 = vstv %s600
    %v602 = vmul.f32 %v584, %v601
    %v603 = vmul.f32 %v585, %v601
    %v604 = vmul.f32 %v586, %v601
    %v605 = vmul.f32 %v587, %v601
    %v606 = vmul.f32 %v588, %v601
    %v607 = vmul.f32 %v589, %v601
    %v608 = vmul.f32 %v590, %v601
    %v609 = vmul.f32 %v591, %v601
    %v610 = vmul.f32 %v592, %v601
    %v611 = vmul.f32 %v593, %v601
    %v612 = vmul.f32 %v594, %v601
    %v613 = vmul.f32 %v595, %v601
    %v614 = vmul.f32 %v596, %v601
    %v615 = vmul.f32 %v597, %v601
    %v616 = vmul.f32 %v598, %v601
    %v617 = vmul.f32 %v599, %v601
    %v618 = vadd.f32 %v532, %v602
    %v619 = vadd.f32 %v533, %v603
    %v620 = vadd.f32 %v534, %v604
    %v621 = vadd.f32 %v535, %v605
    %v622 = vadd.f32 %v536, %v606
    %v623 = vadd.f32 %v537, %v607
    %v624 = vadd.f32 %v538, %v608
    %v625 = vadd.f32 %v539, %v609
    %v626 = vadd.f32 %v540, %v610
    %v627 = vadd.f32 %v541, %v611
    %v628 = vadd.f32 %v542, %v612
    %v629 = vadd.f32 %v543, %v613
    %v630 = vadd.f32 %v544, %v614
    %v631 = vadd.f32 %v545, %v615
    %v632 = vadd.f32 %v546, %v616
    %v633 = vadd.f32 %v547, %v617
    %s634 = sld [smem:[#allocation2 + $0x82]]
    %v635 = vstv %s634
    %v636 = vmul.f32 %v224, %v635
    %v637 = vmul.f32 %v225, %v635
    %v638 = vmul.f32 %v226, %v635
    %v639 = vmul.f32 %v227, %v635
    %v640 = vmul.f32 %v228, %v635
    %v641 = vmul.f32 %v229, %v635
    %v642 = vmul.f32 %v230, %v635
    %v643 = vmul.f32 %v231, %v635
    %v644 = vmul.f32 %v232, %v635
    %v645 = vmul.f32 %v233, %v635
    %v646 = vmul.f32 %v234, %v635
    %v647 = vmul.f32 %v235, %v635
    %v648 = vmul.f32 %v236, %v635
    %v649 = vmul.f32 %v237, %v635
    %v650 = vmul.f32 %v238, %v635
    %v651 = vmul.f32 %v239, %v635
    %s652 = sld [smem:[#allocation4 + $0x82]]
    %v653 = vstv %s652
    %v654 = vadd.f32 %v636, %v653
    %v655 = vadd.f32 %v637, %v653
    %v656 = vadd.f32 %v638, %v653
    %v657 = vadd.f32 %v639, %v653
    %v658 = vadd.f32 %v640, %v653
    %v659 = vadd.f32 %v641, %v653
    %v660 = vadd.f32 %v642, %v653
    %v661 = vadd.f32 %v643, %v653
    %v662 = vadd.f32 %v644, %v653
    %v663 = vadd.f32 %v645, %v653
    %v664 = vadd.f32 %v646, %v653
    %v665 = vadd.f32 %v647, %v653
    %v666 = vadd.f32 %v648, %v653
    %v667 = vadd.f32 %v649, %v653
    %v668 = vadd.f32 %v650, %v653
    %v669 = vadd.f32 %v651, %v653
    %v670 = vmax.f32 %v654, 0.0
    %v671 = vmax.f32 %v655, 0.0
    %v672 = vmax.f32 %v656, 0.0
    %v673 = vmax.f32 %v657, 0.0
    %v674 = vmax.f32 %v658, 0.0
    %v675 = vmax.f32 %v659, 0.0
    %v676 = vmax.f32 %v660, 0.0
    %v677 = vmax.f32 %v661, 0.0
    %v678 = vmax.f32 %v662, 0.0
    %v679 = vmax.f32 %v663, 0.0
    %v680 = vmax.f32 %v664, 0.0
    %v681 = vmax.f32 %v665, 0.0
    %v682 = vmax.f32 %v666, 0.0
    %v683 = vmax.f32 %v667, 0.0
    %v684 = vmax.f32 %v668, 0.0
    %v685 = vmax.f32 %v669, 0.0
    %s686 = sld [smem:[#allocation6 + $0x82]]
    %v687 = vstv %s686
    %v688 = vmul.f32 %v670, %v687
    %v689 = vmul.f32 %v671, %v687
    %v690 = vmul.f32 %v672, %v687
    %v691 = vmul.f32 %v673, %v687
    %v692 = vmul.f32 %v674, %v687
    %v693 = vmul.f32 %v675, %v687
    %v694 = vmul.f32 %v676, %v687
    %v695 = vmul.f32 %v677, %v687
    %v696 = vmul.f32 %v678, %v687
    %v697 = vmul.f32 %v679, %v687
    %v698 = vmul.f32 %v680, %v687
    %v699 = vmul.f32 %v681, %v687
    %v700 = vmul.f32 %v682, %v687
    %v701 = vmul.f32 %v683, %v687
    %v702 = vmul.f32 %v684, %v687
    %v703 = vmul.f32 %v685, %v687
    %v704 = vadd.f32 %v618, %v688
    %v705 = vadd.f32 %v619, %v689
    %v706 = vadd.f32 %v620, %v690
    %v707 = vadd.f32 %v621, %v691
    %v708 = vadd.f32 %v622, %v692
    %v709 = vadd.f32 %v623, %v693
    %v710 = vadd.f32 %v624, %v694
    %v711 = vadd.f32 %v625, %v695
    %v712 = vadd.f32 %v626, %v696
    %v713 = vadd.f32 %v627, %v697
    %v714 = vadd.f32 %v628, %v698
    %v715 = vadd.f32 %v629, %v699
    %v716 = vadd.f32 %v630, %v700
    %v717 = vadd.f32 %v631, %v701
    %v718 = vadd.f32 %v632, %v702
    %v719 = vadd.f32 %v633, %v703
    %s720 = sld [smem:[#allocation2 + $0x83]]
    %v721 = vstv %s720
    %v722 = vmul.f32 %v224, %v721
    %v723 = vmul.f32 %v225, %v721
    %v724 = vmul.f32 %v226, %v721
    %v725 = vmul.f32 %v227, %v721
    %v726 = vmul.f32 %v228, %v721
    %v727 = vmul.f32 %v229, %v721
    %v728 = vmul.f32 %v230, %v721
    %v729 = vmul.f32 %v231, %v721
    %v730 = vmul.f32 %v232, %v721
    %v731 = vmul.f32 %v233, %v721
    %v732 = vmul.f32 %v234, %v721
    %v733 = vmul.f32 %v235, %v721
    %v734 = vmul.f32 %v236, %v721
    %v735 = vmul.f32 %v237, %v721
    %v736 = vmul.f32 %v238, %v721
    %v737 = vmul.f32 %v239, %v721
    %s738 = sld [smem:[#allocation4 + $0x83]]
    %v739 = vstv %s738
    %v740 = vadd.f32 %v722, %v739
    %v741 = vadd.f32 %v723, %v739
    %v742 = vadd.f32 %v724, %v739
    %v743 = vadd.f32 %v725, %v739
    %v744 = vadd.f32 %v726, %v739
    %v745 = vadd.f32 %v727, %v739
    %v746 = vadd.f32 %v728, %v739
    %v747 = vadd.f32 %v729, %v739
    %v748 = vadd.f32 %v730, %v739
    %v749 = vadd.f32 %v731, %v739
    %v750 = vadd.f32 %v732, %v739
    %v751 = vadd.f32 %v733, %v739
    %v752 = vadd.f32 %v734, %v739
    %v753 = vadd.f32 %v735, %v739
    %v754 = vadd.f32 %v736, %v739
    %v755 = vadd.f32 %v737, %v739
    %v756 = vmax.f32 %v740, 0.0
    %v757 = vmax.f32 %v741, 0.0
    %v758 = vmax.f32 %v742, 0.0
    %v759 = vmax.f32 %v743, 0.0
    %v760 = vmax.f32 %v744, 0.0
    %v761 = vmax.f32 %v745, 0.0
    %v762 = vmax.f32 %v746, 0.0
    %v763 = vmax.f32 %v747, 0.0
    %v764 = vmax.f32 %v748, 0.0
    %v765 = vmax.f32 %v749, 0.0
    %v766 = vmax.f32 %v750, 0.0
    %v767 = vmax.f32 %v751, 0.0
    %v768 = vmax.f32 %v752, 0.0
    %v769 = vmax.f32 %v753, 0.0
    %v770 = vmax.f32 %v754, 0.0
    %v771 = vmax.f32 %v755, 0.0
    %s772 = sld [smem:[#allocation6 + $0x83]]
    %v773 = vstv %s772
    %v774 = vmul.f32 %v756, %v773
    %v775 = vmul.f32 %v757, %v773
    %v776 = vmul.f32 %v758, %v773
    %v777 = vmul.f32 %v759, %v773
    %v778 = vmul.f32 %v760, %v773
    %v779 = vmul.f32 %v761, %v773
    %v780 = vmul.f32 %v762, %v773
    %v781 = vmul.f32 %v763, %v773
    %v782 = vmul.f32 %v764, %v773
    %v783 = vmul.f32 %v765, %v773
    %v784 = vmul.f32 %v766, %v773
    %v785 = vmul.f32 %v767, %v773
    %v786 = vmul.f32 %v768, %v773
    %v787 = vmul.f32 %v769, %v773
    %v788 = vmul.f32 %v770, %v773
    %v789 = vmul.f32 %v771, %v773
    %v790 = vadd.f32 %v704, %v774
    %v791 = vadd.f32 %v705, %v775
    %v792 = vadd.f32 %v706, %v776
    %v793 = vadd.f32 %v707, %v777
    %v794 = vadd.f32 %v708, %v778
    %v795 = vadd.f32 %v709, %v779
    %v796 = vadd.f32 %v710, %v780
    %v797 = vadd.f32 %v711, %v781
    %v798 = vadd.f32 %v712, %v782
    %v799 = vadd.f32 %v713, %v783
    %v800 = vadd.f32 %v714, %v784
    %v801 = vadd.f32 %v715, %v785
    %v802 = vadd.f32 %v716, %v786
    %v803 = vadd.f32 %v717, %v787
    %v804 = vadd.f32 %v718, %v788
    %v805 = vadd.f32 %v719, %v789
    %s806 = sld [smem:[#allocation2 + $0x84]]
    %v807 = vstv %s806
    %v808 = vmul.f32 %v224, %v807
    %v809 = vmul.f32 %v225, %v807
    %v810 = vmul.f32 %v226, %v807
    %v811 = vmul.f32 %v227, %v807
    %v812 = vmul.f32 %v228, %v807
    %v813 = vmul.f32 %v229, %v807
    %v814 = vmul.f32 %v230, %v807
    %v815 = vmul.f32 %v231, %v807
    %v816 = vmul.f32 %v232, %v807
    %v817 = vmul.f32 %v233, %v807
    %v818 = vmul.f32 %v234, %v807
    %v819 = vmul.f32 %v235, %v807
    %v820 = vmul.f32 %v236, %v807
    %v821 = vmul.f32 %v237, %v807
    %v822 = vmul.f32 %v238, %v807
    %v823 = vmul.f32 %v239, %v807
    %s824 = sld [smem:[#allocation4 + $0x84]]
    %v825 = vstv %s824
    %v826 = vadd.f32 %v808, %v825
    %v827 = vadd.f32 %v809, %v825
    %v828 = vadd.f32 %v810, %v825
    %v829 = vadd.f32 %v811, %v825
    %v830 = vadd.f32 %v812, %v825
    %v831 = vadd.f32 %v813, %v825
    %v832 = vadd.f32 %v814, %v825
    %v833 = vadd.f32 %v815, %v825
    %v834 = vadd.f32 %v816, %v825
    %v835 = vadd.f32 %v817, %v825
    %v836 = vadd.f32 %v818, %v825
    %v837 = vadd.f32 %v819, %v825
    %v838 = vadd.f32 %v820, %v825
    %v839 = vadd.f32 %v821, %v825
    %v840 = vadd.f32 %v822, %v825
    %v841 = vadd.f32 %v823, %v825
    %v842 = vmax.f32 %v826, 0.0
    %v843 = vmax.f32 %v827, 0.0
    %v844 = vmax.f32 %v828, 0.0
    %v845 = vmax.f32 %v829, 0.0
    %v846 = vmax.f32 %v830, 0.0
    %v847 = vmax.f32 %v831, 0.0
    %v848 = vmax.f32 %v832, 0.0
    %v849 = vmax.f32 %v833, 0.0
    %v850 = vmax.f32 %v834, 0.0
    %v851 = vmax.f32 %v835, 0.0
    %v852 = vmax.f32 %v836, 0.0
    %v853 = vmax.f32 %v837, 0.0
    %v854 = vmax.f32 %v838, 0.0
    %v855 = vmax.f32 %v839, 0.0
    %v856 = vmax.f32 %v840, 0.0
    %v857 = vmax.f32 %v841, 0.0
    %s858 = sld [smem:[#allocation6 + $0x84]]
    %v859 = vstv %s858
    %v860 = vmul.f32 %v842, %v859
    %v861 = vmul.f32 %v843, %v859
    %v862 = vmul.f32 %v844, %v859
    %v863 = vmul.f32 %v845, %v859
    %v864 = vmul.f32 %v846, %v859
    %v865 = vmul.f32 %v847, %v859
    %v866 = vmul.f32 %v848, %v859
    %v867 = vmul.f32 %v849, %v859
    %v868 = vmul.f32 %v850, %v859
    %v869 = vmul.f32 %v851, %v859
    %v870 = vmul.f32 %v852, %v859
    %v871 = vmul.f32 %v853, %v859
    %v872 = vmul.f32 %v854, %v859
    %v873 = vmul.f32 %v855, %v859
    %v874 = vmul.f32 %v856, %v859
    %v875 = vmul.f32 %v857, %v859
    %v876 = vadd.f32 %v790, %v860
    %v877 = vadd.f32 %v791, %v861
    %v878 = vadd.f32 %v792, %v862
    %v879 = vadd.f32 %v793, %v863
    %v880 = vadd.f32 %v794, %v864
    %v881 = vadd.f32 %v795, %v865
    %v882 = vadd.f32 %v796, %v866
    %v883 = vadd.f32 %v797, %v867
    %v884 = vadd.f32 %v798, %v868
    %v885 = vadd.f32 %v799, %v869
    %v886 = vadd.f32 %v800, %v870
    %v887 = vadd.f32 %v801, %v871
    %v888 = vadd.f32 %v802, %v872
    %v889 = vadd.f32 %v803, %v873
    %v890 = vadd.f32 %v804, %v874
    %v891 = vadd.f32 %v805, %v875
    %s892 = sld [smem:[#allocation2 + $0x85]]
    %v893 = vstv %s892
    %v894 = vmul.f32 %v224, %v893
    %v895 = vmul.f32 %v225, %v893
    %v896 = vmul.f32 %v226, %v893
    %v897 = vmul.f32 %v227, %v893
    %v898 = vmul.f32 %v228, %v893
    %v899 = vmul.f32 %v229, %v893
    %v900 = vmul.f32 %v230, %v893
    %v901 = vmul.f32 %v231, %v893
    %v902 = vmul.f32 %v232, %v893
    %v903 = vmul.f32 %v233, %v893
    %v904 = vmul.f32 %v234, %v893
    %v905 = vmul.f32 %v235, %v893
    %v906 = vmul.f32 %v236, %v893
    %v907 = vmul.f32 %v237, %v893
    %v908 = vmul.f32 %v238, %v893
    %v909 = vmul.f32 %v239, %v893
    %s910 = sld [smem:[#allocation4 + $0x85]]
    %v911 = vstv %s910
    %v912 = vadd.f32 %v894, %v911
    %v913 = vadd.f32 %v895, %v911
    %v914 = vadd.f32 %v896, %v911
    %v915 = vadd.f32 %v897, %v911
    %v916 = vadd.f32 %v898, %v911
    %v917 = vadd.f32 %v899, %v911
    %v918 = vadd.f32 %v900, %v911
    %v919 = vadd.f32 %v901, %v911
    %v920 = vadd.f32 %v902, %v911
    %v921 = vadd.f32 %v903, %v911
    %v922 = vadd.f32 %v904, %v911
    %v923 = vadd.f32 %v905, %v911
    %v924 = vadd.f32 %v906, %v911
    %v925 = vadd.f32 %v907, %v911
    %v926 = vadd.f32 %v908, %v911
    %v927 = vadd.f32 %v909, %v911
    %v928 = vmax.f32 %v912, 0.0
    %v929 = vmax.f32 %v913, 0.0
    %v930 = vmax.f32 %v914, 0.0
    %v931 = vmax.f32 %v915, 0.0
    %v932 = vmax.f32 %v916, 0.0
    %v933 = vmax.f32 %v917, 0.0
    %v934 = vmax.f32 %v918, 0.0
    %v935 = vmax.f32 %v919, 0.0
    %v936 = vmax.f32 %v920, 0.0
    %v937 = vmax.f32 %v921, 0.0
    %v938 = vmax.f32 %v922, 0.0
    %v939 = vmax.f32 %v923, 0.0
    %v940 = vmax.f32 %v924, 0.0
    %v941 = vmax.f32 %v925, 0.0
    %v942 = vmax.f32 %v926, 0.0
    %v943 = vmax.f32 %v927, 0.0
    %s944 = sld [smem:[#allocation6 + $0x85]]
    %v945 = vstv %s944
    %v946 = vmul.f32 %v928, %v945
    %v947 = vmul.f32 %v929, %v945
    %v948 = vmul.f32 %v930, %v945
    %v949 = vmul.f32 %v931, %v945
    %v950 = vmul.f32 %v932, %v945
    %v951 = vmul.f32 %v933, %v945
    %v952 = vmul.f32 %v934, %v945
    %v953 = vmul.f32 %v935, %v945
    %v954 = vmul.f32 %v936, %v945
    %v955 = vmul.f32 %v937, %v945
    %v956 = vmul.f32 %v938, %v945
    %v957 = vmul.f32 %v939, %v945
    %v958 = vmul.f32 %v940, %v945
    %v959 = vmul.f32 %v941, %v945
    %v960 = vmul.f32 %v942, %v945
    %v961 = vmul.f32 %v943, %v945
    %v962 = vadd.f32 %v876, %v946
    %v963 = vadd.f32 %v877, %v947
    %v964 = vadd.f32 %v878, %v948
    %v965 = vadd.f32 %v879, %v949
    %v966 = vadd.f32 %v880, %v950
    %v967 = vadd.f32 %v881, %v951
    %v968 = vadd.f32 %v882, %v952
    %v969 = vadd.f32 %v883, %v953
    %v970 = vadd.f32 %v884, %v954
    %v971 = vadd.f32 %v885, %v955
    %v972 = vadd.f32 %v886, %v956
    %v973 = vadd.f32 %v887, %v957
    %v974 = vadd.f32 %v888, %v958
    %v975 = vadd.f32 %v889, %v959
    %v976 = vadd.f32 %v890, %v960
    %v977 = vadd.f32 %v891, %v961
    %s978 = sld [smem:[#allocation2 + $0x86]]
    %v979 = vstv %s978
    %v980 = vmul.f32 %v224, %v979
    %v981 = vmul.f32 %v225, %v979
    %v982 = vmul.f32 %v226, %v979
    %v983 = vmul.f32 %v227, %v979
    %v984 = vmul.f32 %v228, %v979
    %v985 = vmul.f32 %v229, %v979
    %v986 = vmul.f32 %v230, %v979
    %v987 = vmul.f32 %v231, %v979
    %v988 = vmul.f32 %v232, %v979
    %v989 = vmul.f32 %v233, %v979
    %v990 = vmul.f32 %v234, %v979
    %v991 = vmul.f32 %v235, %v979
    %v992 = vmul.f32 %v236, %v979
    %v993 = vmul.f32 %v237, %v979
    %v994 = vmul.f32 %v238, %v979
    %v995 = vmul.f32 %v239, %v979
    %s996 = sld [smem:[#allocation4 + $0x86]]
    %v997 = vstv %s996
    %v998 = vadd.f32 %v980, %v997
    %v999 = vadd.f32 %v981, %v997
    %v1000 = vadd.f32 %v982, %v997
    %v1001 = vadd.f32 %v983, %v997
    %v1002 = vadd.f32 %v984, %v997
    %v1003 = vadd.f32 %v985, %v997
    %v1004 = vadd.f32 %v986, %v997
    %v1005 = vadd.f32 %v987, %v997
    %v1006 = vadd.f32 %v988, %v997
    %v1007 = vadd.f32 %v989, %v997
    %v1008 = vadd.f32 %v990, %v997
    %v1009 = vadd.f32 %v991, %v997
    %v1010 = vadd.f32 %v992, %v997
    %v1011 = vadd.f32 %v993, %v997
    %v1012 = vadd.f32 %v994, %v997
    %v1013 = vadd.f32 %v995, %v997
    %v1014 = vmax.f32 %v998, 0.0
    %v1015 = vmax.f32 %v999, 0.0
    %v1016 = vmax.f32 %v1000, 0.0
    %v1017 = vmax.f32 %v1001, 0.0
    %v1018 = vmax.f32 %v1002, 0.0
    %v1019 = vmax.f32 %v1003, 0.0
    %v1020 = vmax.f32 %v1004, 0.0
    %v1021 = vmax.f32 %v1005, 0.0
    %v1022 = vmax.f32 %v1006, 0.0
    %v1023 = vmax.f32 %v1007, 0.0
    %v1024 = vmax.f32 %v1008, 0.0
    %v1025 = vmax.f32 %v1009, 0.0
    %v1026 = vmax.f32 %v1010, 0.0
    %v1027 = vmax.f32 %v1011, 0.0
    %v1028 = vmax.f32 %v1012, 0.0
    %v1029 = vmax.f32 %v1013, 0.0
    %s1030 = sld [smem:[#allocation6 + $0x86]]
    %v1031 = vstv %s1030
    %v1032 = vmul.f32 %v1014, %v1031
    %v1033 = vmul.f32 %v1015, %v1031
    %v1034 = vmul.f32 %v1016, %v1031
    %v1035 = vmul.f32 %v1017, %v1031
    %v1036 = vmul.f32 %v1018, %v1031
    %v1037 = vmul.f32 %v1019, %v1031
    %v1038 = vmul.f32 %v1020, %v1031
    %v1039 = vmul.f32 %v1021, %v1031
    %v1040 = vmul.f32 %v1022, %v1031
    %v1041 = vmul.f32 %v1023, %v1031
    %v1042 = vmul.f32 %v1024, %v1031
    %v1043 = vmul.f32 %v1025, %v1031
    %v1044 = vmul.f32 %v1026, %v1031
    %v1045 = vmul.f32 %v1027, %v1031
    %v1046 = vmul.f32 %v1028, %v1031
    %v1047 = vmul.f32 %v1029, %v1031
    %v1048 = vadd.f32 %v962, %v1032
    %v1049 = vadd.f32 %v963, %v1033
    %v1050 = vadd.f32 %v964, %v1034
    %v1051 = vadd.f32 %v965, %v1035
    %v1052 = vadd.f32 %v966, %v1036
    %v1053 = vadd.f32 %v967, %v1037
    %v1054 = vadd.f32 %v968, %v1038
    %v1055 = vadd.f32 %v969, %v1039
    %v1056 = vadd.f32 %v970, %v1040
    %v1057 = vadd.f32 %v971, %v1041
    %v1058 = vadd.f32 %v972, %v1042
    %v1059 = vadd.f32 %v973, %v1043
    %v1060 = vadd.f32 %v974, %v1044
    %v1061 = vadd.f32 %v975, %v1045
    %v1062 = vadd.f32 %v976, %v1046
    %v1063 = vadd.f32 %v977, %v1047
    %s1064 = sld [smem:[#allocation2 + $0x87]]
    %v1065 = vstv %s1064
    %v1066 = vmul.f32 %v224, %v1065
    %v1067 = vmul.f32 %v225, %v1065
    %v1068 = vmul.f32 %v226, %v1065
    %v1069 = vmul.f32 %v227, %v1065
    %v1070 = vmul.f32 %v228, %v1065
    %v1071 = vmul.f32 %v229, %v1065
    %v1072 = vmul.f32 %v230, %v1065
    %v1073 = vmul.f32 %v231, %v1065
    %v1074 = vmul.f32 %v232, %v1065
    %v1075 = vmul.f32 %v233, %v1065
    %v1076 = vmul.f32 %v234, %v1065
    %v1077 = vmul.f32 %v235, %v1065
    %v1078 = vmul.f32 %v236, %v1065
    %v1079 = vmul.f32 %v237, %v1065
    %v1080 = vmul.f32 %v238, %v1065
    %v1081 = vmul.f32 %v239, %v1065
    %s1082 = sld [smem:[#allocation4 + $0x87]]
    %v1083 = vstv %s1082
    %v1084 = vadd.f32 %v1066, %v1083
    %v1085 = vadd.f32 %v1067, %v1083
    %v1086 = vadd.f32 %v1068, %v1083
    %v1087 = vadd.f32 %v1069, %v1083
    %v1088 = vadd.f32 %v1070, %v1083
    %v1089 = vadd.f32 %v1071, %v1083
    %v1090 = vadd.f32 %v1072, %v1083
    %v1091 = vadd.f32 %v1073, %v1083
    %v1092 = vadd.f32 %v1074, %v1083
    %v1093 = vadd.f32 %v1075, %v1083
    %v1094 = vadd.f32 %v1076, %v1083
    %v1095 = vadd.f32 %v1077, %v1083
    %v1096 = vadd.f32 %v1078, %v1083
    %v1097 = vadd.f32 %v1079, %v1083
    %v1098 = vadd.f32 %v1080, %v1083
    %v1099 = vadd.f32 %v1081, %v1083
    %v1100 = vmax.f32 %v1084, 0.0
    %v1101 = vmax.f32 %v1085, 0.0
    %v1102 = vmax.f32 %v1086, 0.0
    %v1103 = vmax.f32 %v1087, 0.0
    %v1104 = vmax.f32 %v1088, 0.0
    %v1105 = vmax.f32 %v1089, 0.0
    %v1106 = vmax.f32 %v1090, 0.0
    %v1107 = vmax.f32 %v1091, 0.0
    %v1108 = vmax.f32 %v1092, 0.0
    %v1109 = vmax.f32 %v1093, 0.0
    %v1110 = vmax.f32 %v1094, 0.0
    %v1111 = vmax.f32 %v1095, 0.0
    %v1112 = vmax.f32 %v1096, 0.0
    %v1113 = vmax.f32 %v1097, 0.0
    %v1114 = vmax.f32 %v1098, 0.0
    %v1115 = vmax.f32 %v1099, 0.0
    %s1116 = sld [smem:[#allocation6 + $0x87]]
    %v1117 = vstv %s1116
    %v1118 = vmul.f32 %v1100, %v1117
    %v1119 = vmul.f32 %v1101, %v1117
    %v1120 = vmul.f32 %v1102, %v1117
    %v1121 = vmul.f32 %v1103, %v1117
    %v1122 = vmul.f32 %v1104, %v1117
    %v1123 = vmul.f32 %v1105, %v1117
    %v1124 = vmul.f32 %v1106, %v1117
    %v1125 = vmul.f32 %v1107, %v1117
    %v1126 = vmul.f32 %v1108, %v1117
    %v1127 = vmul.f32 %v1109, %v1117
    %v1128 = vmul.f32 %v1110, %v1117
    %v1129 = vmul.f32 %v1111, %v1117
    %v1130 = vmul.f32 %v1112, %v1117
    %v1131 = vmul.f32 %v1113, %v1117
    %v1132 = vmul.f32 %v1114, %v1117
    %v1133 = vmul.f32 %v1115, %v1117
    %v1134 = vadd.f32 %v1048, %v1118
    %v1135 = vadd.f32 %v1049, %v1119
    %v1136 = vadd.f32 %v1050, %v1120
    %v1137 = vadd.f32 %v1051, %v1121
    %v1138 = vadd.f32 %v1052, %v1122
    %v1139 = vadd.f32 %v1053, %v1123
    %v1140 = vadd.f32 %v1054, %v1124
    %v1141 = vadd.f32 %v1055, %v1125
    %v1142 = vadd.f32 %v1056, %v1126
    %v1143 = vadd.f32 %v1057, %v1127
    %v1144 = vadd.f32 %v1058, %v1128
    %v1145 = vadd.f32 %v1059, %v1129
    %v1146 = vadd.f32 %v1060, %v1130
    %v1147 = vadd.f32 %v1061, %v1131
    %v1148 = vadd.f32 %v1062, %v1132
    %v1149 = vadd.f32 %v1063, %v1133
    %v1150 = vadd.f32 %v224, %v1134
    %v1151 = vadd.f32 %v225, %v1135
    %v1152 = vadd.f32 %v226, %v1136
    %v1153 = vadd.f32 %v227, %v1137
    %v1154 = vadd.f32 %v228, %v1138
    %v1155 = vadd.f32 %v229, %v1139
    %v1156 = vadd.f32 %v230, %v1140
    %v1157 = vadd.f32 %v231, %v1141
    %v1158 = vadd.f32 %v232, %v1142
    %v1159 = vadd.f32 %v233, %v1143
    %v1160 = vadd.f32 %v234, %v1144
    %v1161 = vadd.f32 %v235, %v1145
    %v1162 = vadd.f32 %v236, %v1146
    %v1163 = vadd.f32 %v237, %v1147
    %v1164 = vadd.f32 %v238, %v1148
    %v1165 = vadd.f32 %v239, %v1149
    %s1166 = sld [smem:[#allocation7 + $0x1]]
    %v1167 = vstv %s1166
    %v1168 = vadd.f32 %v1150, %v1167
    %v1169 = vadd.f32 %v1151, %v1167
    %v1170 = vadd.f32 %v1152, %v1167
    %v1171 = vadd.f32 %v1153, %v1167
    %v1172 = vadd.f32 %v1154, %v1167
    %v1173 = vadd.f32 %v1155, %v1167
    %v1174 = vadd.f32 %v1156, %v1167
    %v1175 = vadd.f32 %v1157, %v1167
    %v1176 = vadd.f32 %v1158, %v1167
    %v1177 = vadd.f32 %v1159, %v1167
    %v1178 = vadd.f32 %v1160, %v1167
    %v1179 = vadd.f32 %v1161, %v1167
    %v1180 = vadd.f32 %v1162, %v1167
    %v1181 = vadd.f32 %v1163, %v1167
    %v1182 = vadd.f32 %v1164, %v1167
    %v1183 = vadd.f32 %v1165, %v1167
    %s1184 = sld [smem:[#allocation2 + $0x100]]
    %v1185 = vstv %s1184
    %v1186 = vmul.f32 %v280, %v1185
    %v1187 = vmul.f32 %v281, %v1185
    %v1188 = vmul.f32 %v282, %v1185
    %v1189 = vmul.f32 %v283, %v1185
    %v1190 = vmul.f32 %v284, %v1185
    %v1191 = vmul.f32 %v285, %v1185
    %v1192 = vmul.f32 %v286, %v1185
    %v1193 = vmul.f32 %v287, %v1185
    %s1194 = sld [smem:[#allocation4 + $0x100]]
    %v1195 = vstv %s1194
    %v1196 = vadd.f32 %v1186, %v1195
    %v1197 = vadd.f32 %v1187, %v1195
    %v1198 = vadd.f32 %v1188, %v1195
    %v1199 = vadd.f32 %v1189, %v1195
    %v1200 = vadd.f32 %v1190, %v1195
    %v1201 = vadd.f32 %v1191, %v1195
    %v1202 = vadd.f32 %v1192, %v1195
    %v1203 = vadd.f32 %v1193, %v1195
    %v1204 = vmax.f32 %v1196, 0.0
    %v1205 = vmax.f32 %v1197, 0.0
    %v1206 = vmax.f32 %v1198, 0.0
    %v1207 = vmax.f32 %v1199, 0.0
    %v1208 = vmax.f32 %v1200, 0.0
    %v1209 = vmax.f32 %v1201, 0.0
    %v1210 = vmax.f32 %v1202, 0.0
    %v1211 = vmax.f32 %v1203, 0.0
    %s1212 = sld [smem:[#allocation6 + $0x100]]
    %v1213 = vstv %s1212
    %v1214 = vmul.f32 %v1204, %v1213
    %v1215 = vmul.f32 %v1205, %v1213
    %v1216 = vmul.f32 %v1206, %v1213
    %v1217 = vmul.f32 %v1207, %v1213
    %v1218 = vmul.f32 %v1208, %v1213
    %v1219 = vmul.f32 %v1209, %v1213
    %v1220 = vmul.f32 %v1210, %v1213
    %v1221 = vmul.f32 %v1211, %v1213
    %v1222 = vadd.f32 %v1214, 0.0
    %v1223 = vadd.f32 %v1215, 0.0
    %v1224 = vadd.f32 %v1216, 0.0
    %v1225 = vadd.f32 %v1217, 0.0
    %v1226 = vadd.f32 %v1218, 0.0
    %v1227 = vadd.f32 %v1219, 0.0
    %v1228 = vadd.f32 %v1220, 0.0
    %v1229 = vadd.f32 %v1221, 0.0
    %s1230 = sld [smem:[#allocation2 + $0x101]]
    %v1231 = vstv %s1230
    %v1232 = vmul.f32 %v280, %v1231
    %v1233 = vmul.f32 %v281, %v1231
    %v1234 = vmul.f32 %v282, %v1231
    %v1235 = vmul.f32 %v283, %v1231
    %v1236 = vmul.f32 %v284, %v1231
    %v1237 = vmul.f32 %v285, %v1231
    %v1238 = vmul.f32 %v286, %v1231
    %v1239 = vmul.f32 %v287, %v1231
    %s1240 = sld [smem:[#allocation4 + $0x101]]
    %v1241 = vstv %s1240
    %v1242 = vadd.f32 %v1232, %v1241
    %v1243 = vadd.f32 %v1233, %v1241
    %v1244 = vadd.f32 %v1234, %v1241
    %v1245 = vadd.f32 %v1235, %v1241
    %v1246 = vadd.f32 %v1236, %v1241
    %v1247 = vadd.f32 %v1237, %v1241
    %v1248 = vadd.f32 %v1238, %v1241
    %v1249 = vadd.f32 %v1239, %v1241
    %v1250 = vmax.f32 %v1242, 0.0
    %v1251 = vmax.f32 %v1243, 0.0
    %v1252 = vmax.f32 %v1244, 0.0
    %v1253 = vmax.f32 %v1245, 0.0
    %v1254 = vmax.f32 %v1246, 0.0
    %v1255 = vmax.f32 %v1247, 0.0
    %v1256 = vmax.f32 %v1248, 0.0
    %v1257 = vmax.f32 %v1249, 0.0
    %s1258 = sld [smem:[#allocation6 + $0x101]]
    %v1259 = vstv %s1258
    %v1260 = vmul.f32 %v1250, %v1259
    %v1261 = vmul.f32 %v1251, %v1259
    %v1262 = vmul.f32 %v1252, %v1259
    %v1263 = vmul.f32 %v1253, %v1259
    %v1264 = vmul.f32 %v1254, %v1259
    %v1265 = vmul.f32 %v1255, %v1259
    %v1266 = vmul.f32 %v1256, %v1259
    %v1267 = vmul.f32 %v1257, %v1259
    %v1268 = vadd.f32 %v1222, %v1260
    %v1269 = vadd.f32 %v1223, %v1261
    %v1270 = vadd.f32 %v1224, %v1262
    %v1271 = vadd.f32 %v1225, %v1263
    %v1272 = vadd.f32 %v1226, %v1264
    %v1273 = vadd.f32 %v1227, %v1265
    %v1274 = vadd.f32 %v1228, %v1266
    %v1275 = vadd.f32 %v1229, %v1267
    %s1276 = sld [smem:[#allocation2 + $0x102]]
    %v1277 = vstv %s1276
    %v1278 = vmul.f32 %v280, %v1277
    %v1279 = vmul.f32 %v281, %v1277
    %v1280 = vmul.f32 %v282, %v1277
    %v1281 = vmul.f32 %v283, %v1277
    %v1282 = vmul.f32 %v284, %v1277
    %v1283 = vmul.f32 %v285, %v1277
    %v1284 = vmul.f32 %v286, %v1277
    %v1285 = vmul.f32 %v287, %v1277
    %s1286 = sld [smem:[#allocation4 + $0x102]]
    %v1287 = vstv %s1286
    %v1288 = vadd.f32 %v1278, %v1287
    %v1289 = vadd.f32 %v1279, %v1287
    %v1290 = vadd.f32 %v1280, %v1287
    %v1291 = vadd.f32 %v1281, %v1287
    %v1292 = vadd.f32 %v1282, %v1287
    %v1293 = vadd.f32 %v1283, %v1287
    %v1294 = vadd.f32 %v1284, %v1287
    %v1295 = vadd.f32 %v1285, %v1287
    %v1296 = vmax.f32 %v1288, 0.0
    %v1297 = vmax.f32 %v1289, 0.0
    %v1298 = vmax.f32 %v1290, 0.0
    %v1299 = vmax.f32 %v1291, 0.0
    %v1300 = vmax.f32 %v1292, 0.0
    %v1301 = vmax.f32 %v1293, 0.0
    %v1302 = vmax.f32 %v1294, 0.0
    %v1303 = vmax.f32 %v1295, 0.0
    %s1304 = sld [smem:[#allocation6 + $0x102]]
    %v1305 = vstv %s1304
    %v1306 = vmul.f32 %v1296, %v1305
    %v1307 = vmul.f32 %v1297, %v1305
    %v1308 = vmul.f32 %v1298, %v1305
    %v1309 = vmul.f32 %v1299, %v1305
    %v1310 = vmul.f32 %v1300, %v1305
    %v1311 = vmul.f32 %v1301, %v1305
    %v1312 = vmul.f32 %v1302, %v1305
    %v1313 = vmul.f32 %v1303, %v1305
    %v1314 = vadd.f32 %v1268, %v1306
    %v1315 = vadd.f32 %v1269, %v1307
    %v1316 = vadd.f32 %v1270, %v1308
    %v1317 = vadd.f32 %v1271, %v1309
    %v1318 = vadd.f32 %v1272, %v1310
    %v1319 = vadd.f32 %v1273, %v1311
    %v1320 = vadd.f32 %v1274, %v1312
    %v1321 = vadd.f32 %v1275, %v1313
    %s1322 = sld [smem:[#allocation2 + $0x103]]
    %v1323 = vstv %s1322
    %v1324 = vmul.f32 %v280, %v1323
    %v1325 = vmul.f32 %v281, %v1323
    %v1326 = vmul.f32 %v282, %v1323
    %v1327 = vmul.f32 %v283, %v1323
    %v1328 = vmul.f32 %v284, %v1323
    %v1329 = vmul.f32 %v285, %v1323
    %v1330 = vmul.f32 %v286, %v1323
    %v1331 = vmul.f32 %v287, %v1323
    %s1332 = sld [smem:[#allocation4 + $0x103]]
    %v1333 = vstv %s1332
    %v1334 = vadd.f32 %v1324, %v1333
    %v1335 = vadd.f32 %v1325, %v1333
    %v1336 = vadd.f32 %v1326, %v1333
    %v1337 = vadd.f32 %v1327, %v1333
    %v1338 = vadd.f32 %v1328, %v1333
    %v1339 = vadd.f32 %v1329, %v1333
    %v1340 = vadd.f32 %v1330, %v1333
    %v1341 = vadd.f32 %v1331, %v1333
    %v1342 = vmax.f32 %v1334, 0.0
    %v1343 = vmax.f32 %v1335, 0.0
    %v1344 = vmax.f32 %v1336, 0.0
    %v1345 = vmax.f32 %v1337, 0.0
    %v1346 = vmax.f32 %v1338, 0.0
    %v1347 = vmax.f32 %v1339, 0.0
    %v1348 = vmax.f32 %v1340, 0.0
    %v1349 = vmax.f32 %v1341, 0.0
    %s1350 = sld [smem:[#allocation6 + $0x103]]
    %v1351 = vstv %s1350
    %v1352 = vmul.f32 %v1342, %v1351
    %v1353 = vmul.f32 %v1343, %v1351
    %v1354 = vmul.f32 %v1344, %v1351
    %v1355 = vmul.f32 %v1345, %v1351
    %v1356 = vmul.f32 %v1346, %v1351
    %v1357 = vmul.f32 %v1347, %v1351
    %v1358 = vmul.f32 %v1348, %v1351
    %v1359 = vmul.f32 %v1349, %v1351
    %v1360 = vadd.f32 %v1314, %v1352
    %v1361 = vadd.f32 %v1315, %v1353
    %v1362 = vadd.f32 %v1316, %v1354
    %v1363 = vadd.f32 %v1317, %v1355
    %v1364 = vadd.f32 %v1318, %v1356
    %v1365 = vadd.f32 %v1319, %v1357
    %v1366 = vadd.f32 %v1320, %v1358
    %v1367 = vadd.f32 %v1321, %v1359
    %s1368 = sld [smem:[#allocation2 + $0x104]]
    %v1369 = vstv %s1368
    %v1370 = vmul.f32 %v280, %v1369
    %v1371 = vmul.f32 %v281, %v1369
    %v1372 = vmul.f32 %v282, %v1369
    %v1373 = vmul.f32 %v283, %v1369
    %v1374 = vmul.f32 %v284, %v1369
    %v1375 = vmul.f32 %v285, %v1369
    %v1376 = vmul.f32 %v286, %v1369
    %v1377 = vmul.f32 %v287, %v1369
    %s1378 = sld [smem:[#allocation4 + $0x104]]
    %v1379 = vstv %s1378
    %v1380 = vadd.f32 %v1370, %v1379
    %v1381 = vadd.f32 %v1371, %v1379
    %v1382 = vadd.f32 %v1372, %v1379
    %v1383 = vadd.f32 %v1373, %v1379
    %v1384 = vadd.f32 %v1374, %v1379
    %v1385 = vadd.f32 %v1375, %v1379
    %v1386 = vadd.f32 %v1376, %v1379
    %v1387 = vadd.f32 %v1377, %v1379
    %v1388 = vmax.f32 %v1380, 0.0
    %v1389 = vmax.f32 %v1381, 0.0
    %v1390 = vmax.f32 %v1382, 0.0
    %v1391 = vmax.f32 %v1383, 0.0
    %v1392 = vmax.f32 %v1384, 0.0
    %v1393 = vmax.f32 %v1385, 0.0
    %v1394 = vmax.f32 %v1386, 0.0
    %v1395 = vmax.f32 %v1387, 0.0
    %s1396 = sld [smem:[#allocation6 + $0x104]]
    %v1397 = vstv %s1396
    %v1398 = vmul.f32 %v1388, %v1397
    %v1399 = vmul.f32 %v1389, %v1397
    %v1400 = vmul.f32 %v1390, %v1397
    %v1401 = vmul.f32 %v1391, %v1397
    %v1402 = vmul.f32 %v1392, %v1397
    %v1403 = vmul.f32 %v1393, %v1397
    %v1404 = vmul.f32 %v1394, %v1397
    %v1405 = vmul.f32 %v1395, %v1397
    %v1406 = vadd.f32 %v1360, %v1398
    %v1407 = vadd.f32 %v1361, %v1399
    %v1408 = vadd.f32 %v1362, %v1400
    %v1409 = vadd.f32 %v1363, %v1401
    %v1410 = vadd.f32 %v1364, %v1402
    %v1411 = vadd.f32 %v1365, %v1403
    %v1412 = vadd.f32 %v1366, %v1404
    %v1413 = vadd.f32 %v1367, %v1405
    %s1414 = sld [smem:[#allocation2 + $0x105]]
    %v1415 = vstv %s1414
    %v1416 = vmul.f32 %v280, %v1415
    %v1417 = vmul.f32 %v281, %v1415
    %v1418 = vmul.f32 %v282, %v1415
    %v1419 = vmul.f32 %v283, %v1415
    %v1420 = vmul.f32 %v284, %v1415
    %v1421 = vmul.f32 %v285, %v1415
    %v1422 = vmul.f32 %v286, %v1415
    %v1423 = vmul.f32 %v287, %v1415
    %s1424 = sld [smem:[#allocation4 + $0x105]]
    %v1425 = vstv %s1424
    %v1426 = vadd.f32 %v1416, %v1425
    %v1427 = vadd.f32 %v1417, %v1425
    %v1428 = vadd.f32 %v1418, %v1425
    %v1429 = vadd.f32 %v1419, %v1425
    %v1430 = vadd.f32 %v1420, %v1425
    %v1431 = vadd.f32 %v1421, %v1425
    %v1432 = vadd.f32 %v1422, %v1425
    %v1433 = vadd.f32 %v1423, %v1425
    %v1434 = vmax.f32 %v1426, 0.0
    %v1435 = vmax.f32 %v1427, 0.0
    %v1436 = vmax.f32 %v1428, 0.0
    %v1437 = vmax.f32 %v1429, 0.0
    %v1438 = vmax.f32 %v1430, 0.0
    %v1439 = vmax.f32 %v1431, 0.0
    %v1440 = vmax.f32 %v1432, 0.0
    %v1441 = vmax.f32 %v1433, 0.0
    %s1442 = sld [smem:[#allocation6 + $0x105]]
    %v1443 = vstv %s1442
    %v1444 = vmul.f32 %v1434, %v1443
    %v1445 = vmul.f32 %v1435, %v1443
    %v1446 = vmul.f32 %v1436, %v1443
    %v1447 = vmul.f32 %v1437, %v1443
    %v1448 = vmul.f32 %v1438, %v1443
    %v1449 = vmul.f32 %v1439, %v1443
    %v1450 = vmul.f32 %v1440, %v1443
    %v1451 = vmul.f32 %v1441, %v1443
    %v1452 = vadd.f32 %v1406, %v1444
    %v1453 = vadd.f32 %v1407, %v1445
    %v1454 = vadd.f32 %v1408, %v1446
    %v1455 = vadd.f32 %v1409, %v1447
    %v1456 = vadd.f32 %v1410, %v1448
    %v1457 = vadd.f32 %v1411, %v1449
    %v1458 = vadd.f32 %v1412, %v1450
    %v1459 = vadd.f32 %v1413, %v1451
    %s1460 = sld [smem:[#allocation2 + $0x106]]
    %v1461 = vstv %s1460
    %v1462 = vmul.f32 %v280, %v1461
    %v1463 = vmul.f32 %v281, %v1461
    %v1464 = vmul.f32 %v282, %v1461
    %v1465 = vmul.f32 %v283, %v1461
    %v1466 = vmul.f32 %v284, %v1461
    %v1467 = vmul.f32 %v285, %v1461
    %v1468 = vmul.f32 %v286, %v1461
    %v1469 = vmul.f32 %v287, %v1461
    %s1470 = sld [smem:[#allocation4 + $0x106]]
    %v1471 = vstv %s1470
    %v1472 = vadd.f32 %v1462, %v1471
    %v1473 = vadd.f32 %v1463, %v1471
    %v1474 = vadd.f32 %v1464, %v1471
    %v1475 = vadd.f32 %v1465, %v1471
    %v1476 = vadd.f32 %v1466, %v1471
    %v1477 = vadd.f32 %v1467, %v1471
    %v1478 = vadd.f32 %v1468, %v1471
    %v1479 = vadd.f32 %v1469, %v1471
    %v1480 = vmax.f32 %v1472, 0.0
    %v1481 = vmax.f32 %v1473, 0.0
    %v1482 = vmax.f32 %v1474, 0.0
    %v1483 = vmax.f32 %v1475, 0.0
    %v1484 = vmax.f32 %v1476, 0.0
    %v1485 = vmax.f32 %v1477, 0.0
    %v1486 = vmax.f32 %v1478, 0.0
    %v1487 = vmax.f32 %v1479, 0.0
    %s1488 = sld [smem:[#allocation6 + $0x106]]
    %v1489 = vstv %s1488
    %v1490 = vmul.f32 %v1480, %v1489
    %v1491 = vmul.f32 %v1481, %v1489
    %v1492 = vmul.f32 %v1482, %v1489
    %v1493 = vmul.f32 %v1483, %v1489
    %v1494 = vmul.f32 %v1484, %v1489
    %v1495 = vmul.f32 %v1485, %v1489
    %v1496 = vmul.f32 %v1486, %v1489
    %v1497 = vmul.f32 %v1487, %v1489
    %v1498 = vadd.f32 %v1452, %v1490
    %v1499 = vadd.f32 %v1453, %v1491
    %v1500 = vadd.f32 %v1454, %v1492
    %v1501 = vadd.f32 %v1455, %v1493
    %v1502 = vadd.f32 %v1456, %v1494
    %v1503 = vadd.f32 %v1457, %v1495
    %v1504 = vadd.f32 %v1458, %v1496
    %v1505 = vadd.f32 %v1459, %v1497
    %s1506 = sld [smem:[#allocation2 + $0x107]]
    %v1507 = vstv %s1506
    %v1508 = vmul.f32 %v280, %v1507
    %v1509 = vmul.f32 %v281, %v1507
    %v1510 = vmul.f32 %v282, %v1507
    %v1511 = vmul.f32 %v283, %v1507
    %v1512 = vmul.f32 %v284, %v1507
    %v1513 = vmul.f32 %v285, %v1507
    %v1514 = vmul.f32 %v286, %v1507
    %v1515 = vmul.f32 %v287, %v1507
    %s1516 = sld [smem:[#allocation4 + $0x107]]
    %v1517 = vstv %s1516
    %v1518 = vadd.f32 %v1508, %v1517
    %v1519 = vadd.f32 %v1509, %v1517
    %v1520 = vadd.f32 %v1510, %v1517
    %v1521 = vadd.f32 %v1511, %v1517
    %v1522 = vadd.f32 %v1512, %v1517
    %v1523 = vadd.f32 %v1513, %v1517
    %v1524 = vadd.f32 %v1514, %v1517
    %v1525 = vadd.f32 %v1515, %v1517
    %v1526 = vmax.f32 %v1518, 0.0
    %v1527 = vmax.f32 %v1519, 0.0
    %v1528 = vmax.f32 %v1520, 0.0
    %v1529 = vmax.f32 %v1521, 0.0
    %v1530 = vmax.f32 %v1522, 0.0
    %v1531 = vmax.f32 %v1523, 0.0
    %v1532 = vmax.f32 %v1524, 0.0
    %v1533 = vmax.f32 %v1525, 0.0
    %s1534 = sld [smem:[#allocation6 + $0x107]]
    %v1535 = vstv %s1534
    %v1536 = vmul.f32 %v1526, %v1535
    %v1537 = vmul.f32 %v1527, %v1535
    %v1538 = vmul.f32 %v1528, %v1535
    %v1539 = vmul.f32 %v1529, %v1535
    %v1540 = vmul.f32 %v1530, %v1535
    %v1541 = vmul.f32 %v1531, %v1535
    %v1542 = vmul.f32 %v1532, %v1535
    %v1543 = vmul.f32 %v1533, %v1535
    %v1544 = vadd.f32 %v1498, %v1536
    %v1545 = vadd.f32 %v1499, %v1537
    %v1546 = vadd.f32 %v1500, %v1538
    %v1547 = vadd.f32 %v1501, %v1539
    %v1548 = vadd.f32 %v1502, %v1540
    %v1549 = vadd.f32 %v1503, %v1541
    %v1550 = vadd.f32 %v1504, %v1542
    %v1551 = vadd.f32 %v1505, %v1543
    %v1552 = vadd.f32 %v280, %v1544
    %v1553 = vadd.f32 %v281, %v1545
    %v1554 = vadd.f32 %v282, %v1546
    %v1555 = vadd.f32 %v283, %v1547
    %v1556 = vadd.f32 %v284, %v1548
    %v1557 = vadd.f32 %v285, %v1549
    %v1558 = vadd.f32 %v286, %v1550
    %v1559 = vadd.f32 %v287, %v1551
    %s1560 = sld [smem:[#allocation7 + $0x2]]
    %v1561 = vstv %s1560
    %v1562 = vadd.f32 %v1552, %v1561
    %v1563 = vadd.f32 %v1553, %v1561
    %v1564 = vadd.f32 %v1554, %v1561
    %v1565 = vadd.f32 %v1555, %v1561
    %v1566 = vadd.f32 %v1556, %v1561
    %v1567 = vadd.f32 %v1557, %v1561
    %v1568 = vadd.f32 %v1558, %v1561
    %v1569 = vadd.f32 %v1559, %v1561
    %s1570 = sld [smem:[#allocation2 + $0x180]]
    %v1571 = vstv %s1570
    %v1572 = vmul.f32 %v308, %v1571
    %v1573 = vmul.f32 %v309, %v1571
    %v1574 = vmul.f32 %v310, %v1571
    %v1575 = vmul.f32 %v311, %v1571
    %s1576 = sld [smem:[#allocation4 + $0x180]]
    %v1577 = vstv %s1576
    %v1578 = vadd.f32 %v1572, %v1577
    %v1579 = vadd.f32 %v1573, %v1577
    %v1580 = vadd.f32 %v1574, %v1577
    %v1581 = vadd.f32 %v1575, %v1577
    %v1582 = vmax.f32 %v1578, 0.0
    %v1583 = vmax.f32 %v1579, 0.0
    %v1584 = vmax.f32 %v1580, 0.0
    %v1585 = vmax.f32 %v1581, 0.0
    %s1586 = sld [smem:[#allocation6 + $0x180]]
    %v1587 = vstv %s1586
    %v1588 = vmul.f32 %v1582, %v1587
    %v1589 = vmul.f32 %v1583, %v1587
    %v1590 = vmul.f32 %v1584, %v1587
    %v1591 = vmul.f32 %v1585, %v1587
    %v1592 = vadd.f32 %v1588, 0.0
    %v1593 = vadd.f32 %v1589, 0.0
    %v1594 = vadd.f32 %v1590, 0.0
    %v1595 = vadd.f32 %v1591, 0.0
    %s1596 = sld [smem:[#allocation2 + $0x181]]
    %v1597 = vstv %s1596
    %v1598 = vmul.f32 %v308, %v1597
    %v1599 = vmul.f32 %v309, %v1597
    %v1600 = vmul.f32 %v310, %v1597
    %v1601 = vmul.f32 %v311, %v1597
    %s1602 = sld [smem:[#allocation4 + $0x181]]
    %v1603 = vstv %s1602
    %v1604 = vadd.f32 %v1598, %v1603
    %v1605 = vadd.f32 %v1599, %v1603
    %v1606 = vadd.f32 %v1600, %v1603
    %v1607 = vadd.f32 %v1601, %v1603
    %v1608 = vmax.f32 %v1604, 0.0
    %v1609 = vmax.f32 %v1605, 0.0
    %v1610 = vmax.f32 %v1606, 0.0
    %v1611 = vmax.f32 %v1607, 0.0
    %s1612 = sld [smem:[#allocation6 + $0x181]]
    %v1613 = vstv %s1612
    %v1614 = vmul.f32 %v1608, %v1613
    %v1615 = vmul.f32 %v1609, %v1613
    %v1616 = vmul.f32 %v1610, %v1613
    %v1617 = vmul.f32 %v1611, %v1613
    %v1618 = vadd.f32 %v1592, %v1614
    %v1619 = vadd.f32 %v1593, %v1615
    %v1620 = vadd.f32 %v1594, %v1616
    %v1621 = vadd.f32 %v1595, %v1617
    %s1622 = sld [smem:[#allocation2 + $0x182]]
    %v1623 = vstv %s1622
    %v1624 = vmul.f32 %v308, %v1623
    %v1625 = vmul.f32 %v309, %v1623
    %v1626 = vmul.f32 %v310, %v1623
    %v1627 = vmul.f32 %v311, %v1623
    %s1628 = sld [smem:[#allocation4 + $0x182]]
    %v1629 = vstv %s1628
    %v1630 = vadd.f32 %v1624, %v1629
    %v1631 = vadd.f32 %v1625, %v1629
    %v1632 = vadd.f32 %v1626, %v1629
    %v1633 = vadd.f32 %v1627, %v1629
    %v1634 = vmax.f32 %v1630, 0.0
    %v1635 = vmax.f32 %v1631, 0.0
    %v1636 = vmax.f32 %v1632, 0.0
    %v1637 = vmax.f32 %v1633, 0.0
    %s1638 = sld [smem:[#allocation6 + $0x182]]
    %v1639 = vstv %s1638
    %v1640 = vmul.f32 %v1634, %v1639
    %v1641 = vmul.f32 %v1635, %v1639
    %v1642 = vmul.f32 %v1636, %v1639
    %v1643 = vmul.f32 %v1637, %v1639
    %v1644 = vadd.f32 %v1618, %v1640
    %v1645 = vadd.f32 %v1619, %v1641
    %v1646 = vadd.f32 %v1620, %v1642
    %v1647 = vadd.f32 %v1621, %v1643
    %s1648 = sld [smem:[#allocation2 + $0x183]]
    %v1649 = vstv %s1648
    %v1650 = vmul.f32 %v308, %v1649
    %v1651 = vmul.f32 %v309, %v1649
    %v1652 = vmul.f32 %v310, %v1649
    %v1653 = vmul.f32 %v311, %v1649
    %s1654 = sld [smem:[#allocation4 + $0x183]]
    %v1655 = vstv %s1654
    %v1656 = vadd.f32 %v1650, %v1655
    %v1657 = vadd.f32 %v1651, %v1655
    %v1658 = vadd.f32 %v1652, %v1655
    %v1659 = vadd.f32 %v1653, %v1655
    %v1660 = vmax.f32 %v1656, 0.0
    %v1661 = vmax.f32 %v1657, 0.0
    %v1662 = vmax.f32 %v1658, 0.0
    %v1663 = vmax.f32 %v1659, 0.0
    %s1664 = sld [smem:[#allocation6 + $0x183]]
    %v1665 = vstv %s1664
    %v1666 = vmul.f32 %v1660, %v1665
    %v1667 = vmul.f32 %v1661, %v1665
    %v1668 = vmul.f32 %v1662, %v1665
    %v1669 = vmul.f32 %v1663, %v1665
    %v1670 = vadd.f32 %v1644, %v1666
    %v1671 = vadd.f32 %v1645, %v1667
    %v1672 = vadd.f32 %v1646, %v1668
    %v1673 = vadd.f32 %v1647, %v1669
    %s1674 = sld [smem:[#allocation2 + $0x184]]
    %v1675 = vstv %s1674
    %v1676 = vmul.f32 %v308, %v1675
    %v1677 = vmul.f32 %v309, %v1675
    %v1678 = vmul.f32 %v310, %v1675
    %v1679 = vmul.f32 %v311, %v1675
    %s1680 = sld [smem:[#allocation4 + $0x184]]
    %v1681 = vstv %s1680
    %v1682 = vadd.f32 %v1676, %v1681
    %v1683 = vadd.f32 %v1677, %v1681
    %v1684 = vadd.f32 %v1678, %v1681
    %v1685 = vadd.f32 %v1679, %v1681
    %v1686 = vmax.f32 %v1682, 0.0
    %v1687 = vmax.f32 %v1683, 0.0
    %v1688 = vmax.f32 %v1684, 0.0
    %v1689 = vmax.f32 %v1685, 0.0
    %s1690 = sld [smem:[#allocation6 + $0x184]]
    %v1691 = vstv %s1690
    %v1692 = vmul.f32 %v1686, %v1691
    %v1693 = vmul.f32 %v1687, %v1691
    %v1694 = vmul.f32 %v1688, %v1691
    %v1695 = vmul.f32 %v1689, %v1691
    %v1696 = vadd.f32 %v1670, %v1692
    %v1697 = vadd.f32 %v1671, %v1693
    %v1698 = vadd.f32 %v1672, %v1694
    %v1699 = vadd.f32 %v1673, %v1695
    %s1700 = sld [smem:[#allocation2 + $0x185]]
    %v1701 = vstv %s1700
    %v1702 = vmul.f32 %v308, %v1701
    %v1703 = vmul.f32 %v309, %v1701
    %v1704 = vmul.f32 %v310, %v1701
    %v1705 = vmul.f32 %v311, %v1701
    %s1706 = sld [smem:[#allocation4 + $0x185]]
    %v1707 = vstv %s1706
    %v1708 = vadd.f32 %v1702, %v1707
    %v1709 = vadd.f32 %v1703, %v1707
    %v1710 = vadd.f32 %v1704, %v1707
    %v1711 = vadd.f32 %v1705, %v1707
    %v1712 = vmax.f32 %v1708, 0.0
    %v1713 = vmax.f32 %v1709, 0.0
    %v1714 = vmax.f32 %v1710, 0.0
    %v1715 = vmax.f32 %v1711, 0.0
    %s1716 = sld [smem:[#allocation6 + $0x185]]
    %v1717 = vstv %s1716
    %v1718 = vmul.f32 %v1712, %v1717
    %v1719 = vmul.f32 %v1713, %v1717
    %v1720 = vmul.f32 %v1714, %v1717
    %v1721 = vmul.f32 %v1715, %v1717
    %v1722 = vadd.f32 %v1696, %v1718
    %v1723 = vadd.f32 %v1697, %v1719
    %v1724 = vadd.f32 %v1698, %v1720
    %v1725 = vadd.f32 %v1699, %v1721
    %s1726 = sld [smem:[#allocation2 + $0x186]]
    %v1727 = vstv %s1726
    %v1728 = vmul.f32 %v308, %v1727
    %v1729 = vmul.f32 %v309, %v1727
    %v1730 = vmul.f32 %v310, %v1727
    %v1731 = vmul.f32 %v311, %v1727
    %s1732 = sld [smem:[#allocation4 + $0x186]]
    %v1733 = vstv %s1732
    %v1734 = vadd.f32 %v1728, %v1733
    %v1735 = vadd.f32 %v1729, %v1733
    %v1736 = vadd.f32 %v1730, %v1733
    %v1737 = vadd.f32 %v1731, %v1733
    %v1738 = vmax.f32 %v1734, 0.0
    %v1739 = vmax.f32 %v1735, 0.0
    %v1740 = vmax.f32 %v1736, 0.0
    %v1741 = vmax.f32 %v1737, 0.0
    %s1742 = sld [smem:[#allocation6 + $0x186]]
    %v1743 = vstv %s1742
    %v1744 = vmul.f32 %v1738, %v1743
    %v1745 = vmul.f32 %v1739, %v1743
    %v1746 = vmul.f32 %v1740, %v1743
    %v1747 = vmul.f32 %v1741, %v1743
    %v1748 = vadd.f32 %v1722, %v1744
    %v1749 = vadd.f32 %v1723, %v1745
    %v1750 = vadd.f32 %v1724, %v1746
    %v1751 = vadd.f32 %v1725, %v1747
    %s1752 = sld [smem:[#allocation2 + $0x187]]
    %v1753 = vstv %s1752
    %v1754 = vmul.f32 %v308, %v1753
    %v1755 = vmul.f32 %v309, %v1753
    %v1756 = vmul.f32 %v310, %v1753
    %v1757 = vmul.f32 %v311, %v1753
    %s1758 = sld [smem:[#allocation4 + $0x187]]
    %v1759 = vstv %s1758
    %v1760 = vadd.f32 %v1754, %v1759
    %v1761 = vadd.f32 %v1755, %v1759
    %v1762 = vadd.f32 %v1756, %v1759
    %v1763 = vadd.f32 %v1757, %v1759
    %v1764 = vmax.f32 %v1760, 0.0
    %v1765 = vmax.f32 %v1761, 0.0
    %v1766 = vmax.f32 %v1762, 0.0
    %v1767 = vmax.f32 %v1763, 0.0
    %s1768 = sld [smem:[#allocation6 + $0x187]]
    %v1769 = vstv %s1768
    %v1770 = vmul.f32 %v1764, %v1769
    %v1771 = vmul.f32 %v1765, %v1769
    %v1772 = vmul.f32 %v1766, %v1769
    %v1773 = vmul.f32 %v1767, %v1769
    %v1774 = vadd.f32 %v1748, %v1770
    %v1775 = vadd.f32 %v1749, %v1771
    %v1776 = vadd.f32 %v1750, %v1772
    %v1777 = vadd.f32 %v1751, %v1773
    %v1778 = vadd.f32 %v308, %v1774
    %v1779 = vadd.f32 %v309, %v1775
    %v1780 = vadd.f32 %v310, %v1776
    %v1781 = vadd.f32 %v311, %v1777
    %s1782 = sld [smem:[#allocation7 + $0x3]]
    %v1783 = vstv %s1782
    %v1784 = vadd.f32 %v1778, %v1783
    %v1785 = vadd.f32 %v1779, %v1783
    %v1786 = vadd.f32 %v1780, %v1783
    %v1787 = vadd.f32 %v1781, %v1783
    %s1788 = sld [smem:[#allocation2 + $0x200]]
    %v1789 = vstv %s1788
    %v1790 = vmul.f32 %v322, %v1789
    %v1791 = vmul.f32 %v323, %v1789
    %s1792 = sld [smem:[#allocation4 + $0x200]]
    %v1793 = vstv %s1792
    %v1794 = vadd.f32 %v1790, %v1793
    %v1795 = vadd.f32 %v1791, %v1793
    %v1796 = vmax.f32 %v1794, 0.0
    %v1797 = vmax.f32 %v1795, 0.0
    %s1798 = sld [smem:[#allocation6 + $0x200]]
    %v1799 = vstv %s1798
    %v1800 = vmul.f32 %v1796, %v1799
    %v1801 = vmul.f32 %v1797, %v1799
    %v1802 = vadd.f32 %v1800, 0.0
    %v1803 = vadd.f32 %v1801, 0.0
    %s1804 = sld [smem:[#allocation2 + $0x201]]
    %v1805 = vstv %s1804
    %v1806 = vmul.f32 %v322, %v1805
    %v1807 = vmul.f32 %v323, %v1805
    %s1808 = sld [smem:[#allocation4 + $0x201]]
    %v1809 = vstv %s1808
    %v1810 = vadd.f32 %v1806, %v1809
    %v1811 = vadd.f32 %v1807, %v1809
    %v1812 = vmax.f32 %v1810, 0.0
    %v1813 = vmax.f32 %v1811, 0.0
    %s1814 = sld [smem:[#allocation6 + $0x201]]
    %v1815 = vstv %s1814
    %v1816 = vmul.f32 %v1812, %v1815
    %v1817 = vmul.f32 %v1813, %v1815
    %v1818 = vadd.f32 %v1802, %v1816
    %v1819 = vadd.f32 %v1803, %v1817
    %s1820 = sld [smem:[#allocation2 + $0x202]]
    %v1821 = vstv %s1820
    %v1822 = vmul.f32 %v322, %v1821
    %v1823 = vmul.f32 %v323, %v1821
    %s1824 = sld [smem:[#allocation4 + $0x202]]
    %v1825 = vstv %s1824
    %v1826 = vadd.f32 %v1822, %v1825
    %v1827 = vadd.f32 %v1823, %v1825
    %v1828 = vmax.f32 %v1826, 0.0
    %v1829 = vmax.f32 %v1827, 0.0
    %s1830 = sld [smem:[#allocation6 + $0x202]]
    %v1831 = vstv %s1830
    %v1832 = vmul.f32 %v1828, %v1831
    %v1833 = vmul.f32 %v1829, %v1831
    %v1834 = vadd.f32 %v1818, %v1832
    %v1835 = vadd.f32 %v1819, %v1833
    %s1836 = sld [smem:[#allocation2 + $0x203]]
    %v1837 = vstv %s1836
    %v1838 = vmul.f32 %v322, %v1837
    %v1839 = vmul.f32 %v323, %v1837
    %s1840 = sld [smem:[#allocation4 + $0x203]]
    %v1841 = vstv %s1840
    %v1842 = vadd.f32 %v1838, %v1841
    %v1843 = vadd.f32 %v1839, %v1841
    %v1844 = vmax.f32 %v1842, 0.0
    %v1845 = vmax.f32 %v1843, 0.0
    %s1846 = sld [smem:[#allocation6 + $0x203]]
    %v1847 = vstv %s1846
    %v1848 = vmul.f32 %v1844, %v1847
    %v1849 = vmul.f32 %v1845, %v1847
    %v1850 = vadd.f32 %v1834, %v1848
    %v1851 = vadd.f32 %v1835, %v1849
    %s1852 = sld [smem:[#allocation2 + $0x204]]
    %v1853 = vstv %s1852
    %v1854 = vmul.f32 %v322, %v1853
    %v1855 = vmul.f32 %v323, %v1853
    %s1856 = sld [smem:[#allocation4 + $0x204]]
    %v1857 = vstv %s1856
    %v1858 = vadd.f32 %v1854, %v1857
    %v1859 = vadd.f32 %v1855, %v1857
    %v1860 = vmax.f32 %v1858, 0.0
    %v1861 = vmax.f32 %v1859, 0.0
    %s1862 = sld [smem:[#allocation6 + $0x204]]
    %v1863 = vstv %s1862
    %v1864 = vmul.f32 %v1860, %v1863
    %v1865 = vmul.f32 %v1861, %v1863
    %v1866 = vadd.f32 %v1850, %v1864
    %v1867 = vadd.f32 %v1851, %v1865
    %s1868 = sld [smem:[#allocation2 + $0x205]]
    %v1869 = vstv %s1868
    %v1870 = vmul.f32 %v322, %v1869
    %v1871 = vmul.f32 %v323, %v1869
    %s1872 = sld [smem:[#allocation4 + $0x205]]
    %v1873 = vstv %s1872
    %v1874 = vadd.f32 %v1870, %v1873
    %v1875 = vadd.f32 %v1871, %v1873
    %v1876 = vmax.f32 %v1874, 0.0
    %v1877 = vmax.f32 %v1875, 0.0
    %s1878 = sld [smem:[#allocation6 + $0x205]]
    %v1879 = vstv %s1878
    %v1880 = vmul.f32 %v1876, %v1879
    %v1881 = vmul.f32 %v1877, %v1879
    %v1882 = vadd.f32 %v1866, %v1880
    %v1883 = vadd.f32 %v1867, %v1881
    %s1884 = sld [smem:[#allocation2 + $0x206]]
    %v1885 = vstv %s1884
    %v1886 = vmul.f32 %v322, %v1885
    %v1887 = vmul.f32 %v323, %v1885
    %s1888 = sld [smem:[#allocation4 + $0x206]]
    %v1889 = vstv %s1888
    %v1890 = vadd.f32 %v1886, %v1889
    %v1891 = vadd.f32 %v1887, %v1889
    %v1892 = vmax.f32 %v1890, 0.0
    %v1893 = vmax.f32 %v1891, 0.0
    %s1894 = sld [smem:[#allocation6 + $0x206]]
    %v1895 = vstv %s1894
    %v1896 = vmul.f32 %v1892, %v1895
    %v1897 = vmul.f32 %v1893, %v1895
    %v1898 = vadd.f32 %v1882, %v1896
    %v1899 = vadd.f32 %v1883, %v1897
    %s1900 = sld [smem:[#allocation2 + $0x207]]
    %v1901 = vstv %s1900
    %v1902 = vmul.f32 %v322, %v1901
    %v1903 = vmul.f32 %v323, %v1901
    %s1904 = sld [smem:[#allocation4 + $0x207]]
    %v1905 = vstv %s1904
    %v1906 = vadd.f32 %v1902, %v1905
    %v1907 = vadd.f32 %v1903, %v1905
    %v1908 = vmax.f32 %v1906, 0.0
    %v1909 = vmax.f32 %v1907, 0.0
    %s1910 = sld [smem:[#allocation6 + $0x207]]
    %v1911 = vstv %s1910
    %v1912 = vmul.f32 %v1908, %v1911
    %v1913 = vmul.f32 %v1909, %v1911
    %v1914 = vadd.f32 %v1898, %v1912
    %v1915 = vadd.f32 %v1899, %v1913
    %v1916 = vadd.f32 %v322, %v1914
    %v1917 = vadd.f32 %v323, %v1915
    %s1918 = sld [smem:[#allocation7 + $0x4]]
    %v1919 = vstv %s1918
    %v1920 = vadd.f32 %v1916, %v1919
    %v1921 = vadd.f32 %v1917, %v1919
    %v1922 = vadd.f32 %v460, %v1920
    %v1923 = vadd.f32 %v461, %v1921
    %v1924 = vmul.f32 %v1922, 0.70710677
    %v1925 = vmul.f32 %v1923, 0.70710677
    %v1926 = vsub.f32 %v460, %v1920
    %v1927 = vsub.f32 %v461, %v1921
    %v1928 = vmul.f32 %v1926, 0.70710677
    %v1929 = vmul.f32 %v1927, 0.70710677
    %v1932 = vlaneseq
    %v1933 = vshrl.u32 %v1932, 7
    %v1934 = vsub.s32 0, %v1933
    %v1935 = vrot.slane %v1928, %v1934
    %v1936 = vlaneseq
    %v1937 = vshrl.u32 %v1936, 7
    %v1938 = vsub.s32 0, %v1937
    %v1939 = vrot.slane %v1929, %v1938
    %vm1942 = vcmask 1040384
    %v1943 = vsel %vm1942, %v1924, %v1935
    %v1944 = vsel %vm1942, %v1925, %v1939
    %vm1949 = vcmask 1044484
    %v1950 = vsel %vm1949, %v1784, %v1784
    %vm1951 = vcmask 1046534
    %v1952 = vsel %vm1951, %v1784, %v1950
    %v1953 = vrot.slane %v1785, 7
    %vm1954 = vcmask 1041409
    %v1955 = vsel %vm1954, %v1953, %v1952
    %vm1956 = vcmask 1043459
    %v1957 = vsel %vm1956, %v1953, %v1955
    %vm1958 = vcmask 1045509
    %v1959 = vsel %vm1958, %v1953, %v1957
    %vm1960 = vcmask 1047559
    %v1961 = vsel %vm1960, %v1953, %v1959
    %v1962 = vsel %vm1949, %v1786, %v1786
    %v1963 = vsel %vm1951, %v1786, %v1962
    %v1964 = vrot.slane %v1787, 7
    %v1965 = vsel %vm1954, %v1964, %v1963
    %v1966 = vsel %vm1956, %v1964, %v1965
    %v1967 = vsel %vm1958, %v1964, %v1966
    %v1968 = vsel %vm1960, %v1964, %v1967
    %v1971 = vadd.f32 %v1943, %v1961
    %v1972 = vadd.f32 %v1944, %v1968
    %v1973 = vmul.f32 %v1971, 0.70710677
    %v1974 = vmul.f32 %v1972, 0.70710677
    %v1975 = vsub.f32 %v1943, %v1961
    %v1976 = vsub.f32 %v1944, %v1968
    %v1977 = vmul.f32 %v1975, 0.70710677
    %v1978 = vmul.f32 %v1976, 0.70710677
    %v1982 = vunpack.c.l.s4 1966171168
    %v1983 = vunpack.c.0.s8 %v1982
    %v1984 = vlaneseq
    %v1985 = vshrl.u32 %v1984, 7
    %v1986 = vsub.s32 %v1983, %v1985
    %v1987 = vrot.slane %v1973, %v1986
    %v1988 = vcombine.high %v1987, %v1987
    %v1990 = vunpack.c.l.s4 1966171168
    %v1991 = vunpack.c.0.s8 %v1990
    %v1992 = vlaneseq
    %v1993 = vshrl.u32 %v1992, 7
    %v1994 = vsub.s32 %v1991, %v1993
    %v1995 = vrot.slane %v1974, %v1994
    %v1996 = vcombine.high %v1995, %v1995
    %v2004 = vunpack.c.l.s4 1966171168
    %v2005 = vunpack.c.0.s8 %v2004
    %v2006 = vlaneseq
    %v2007 = vshrl.u32 %v2006, 7
    %v2008 = vsub.s32 %v2005, %v2007
    %v2009 = vrot.slane %v1977, %v2008
    %v2010 = vcombine.high %v2009, %v2009
    %v2012 = vunpack.c.l.s4 1966171168
    %v2013 = vunpack.c.0.s8 %v2012
    %v2014 = vlaneseq
    %v2015 = vshrl.u32 %v2014, 7
    %v2016 = vsub.s32 %v2013, %v2015
    %v2017 = vrot.slane %v1978, %v2016
    %v2018 = vcombine.high %v2017, %v2017
    %v2019 = vlaneseq
    %v2020 = vshrl.u32 %v2019, 7
    %v2021 = vsub.s32 0, %v2020
    %v2022 = vrot.slane %v2009, %v2021
    %v2023 = vlaneseq
    %v2024 = vshrl.u32 %v2023, 7
    %v2025 = vsub.s32 0, %v2024
    %v2026 = vrot.slane %v2010, %v2025
    %v2027 = vlaneseq
    %v2028 = vshrl.u32 %v2027, 7
    %v2029 = vsub.s32 0, %v2028
    %v2030 = vrot.slane %v2017, %v2029
    %v2031 = vlaneseq
    %v2032 = vshrl.u32 %v2031, 7
    %v2033 = vsub.s32 0, %v2032
    %v2034 = vrot.slane %v2018, %v2033
    %v2039 = vsel %vm1942, %v1987, %v2022
    %v2040 = vsel %vm1942, %v1988, %v2026
    %v2041 = vsel %vm1942, %v1995, %v2030
    %v2042 = vsel %vm1942, %v1996, %v2034
    %v2051 = vsel %vm1949, %v1562, %v1562
    %v2052 = vsel %vm1951, %v1562, %v2051
    %v2053 = vrot.slane %v1563, 7
    %v2054 = vsel %vm1954, %v2053, %v2052
    %v2055 = vsel %vm1956, %v2053, %v2054
    %v2056 = vsel %vm1958, %v2053, %v2055
    %v2057 = vsel %vm1960, %v2053, %v2056
    %v2058 = vsel %vm1949, %v1564, %v1564
    %v2059 = vsel %vm1951, %v1564, %v2058
    %v2060 = vrot.slane %v1565, 7
    %v2061 = vsel %vm1954, %v2060, %v2059
    %v2062 = vsel %vm1956, %v2060, %v2061
    %v2063 = vsel %vm1958, %v2060, %v2062
    %v2064 = vsel %vm1960, %v2060, %v2063
    %v2065 = vsel %vm1949, %v1566, %v1566
    %v2066 = vsel %vm1951, %v1566, %v2065
    %v2067 = vrot.slane %v1567, 7
    %v2068 = vsel %vm1954, %v2067, %v2066
    %v2069 = vsel %vm1956, %v2067, %v2068
    %v2070 = vsel %vm1958, %v2067, %v2069
    %v2071 = vsel %vm1960, %v2067, %v2070
    %v2072 = vsel %vm1949, %v1568, %v1568
    %v2073 = vsel %vm1951, %v1568, %v2072
    %v2074 = vrot.slane %v1569, 7
    %v2075 = vsel %vm1954, %v2074, %v2073
    %v2076 = vsel %vm1956, %v2074, %v2075
    %v2077 = vsel %vm1958, %v2074, %v2076
    %v2078 = vsel %vm1960, %v2074, %v2077
    %v2083 = vadd.f32 %v2039, %v2057
    %v2084 = vadd.f32 %v2040, %v2064
    %v2085 = vadd.f32 %v2041, %v2071
    %v2086 = vadd.f32 %v2042, %v2078
    %v2087 = vmul.f32 %v2083, 0.70710677
    %v2088 = vmul.f32 %v2084, 0.70710677
    %v2089 = vmul.f32 %v2085, 0.70710677
    %v2090 = vmul.f32 %v2086, 0.70710677
    %v2091 = vsub.f32 %v2039, %v2057
    %v2092 = vsub.f32 %v2040, %v2064
    %v2093 = vsub.f32 %v2041, %v2071
    %v2094 = vsub.f32 %v2042, %v2078
    %v2095 = vmul.f32 %v2091, 0.70710677
    %v2096 = vmul.f32 %v2092, 0.70710677
    %v2097 = vmul.f32 %v2093, 0.70710677
    %v2098 = vmul.f32 %v2094, 0.70710677
    %v2104 = vunpack.c.l.s4 1966171168
    %v2105 = vunpack.c.0.s8 %v2104
    %v2106 = vlaneseq
    %v2107 = vshrl.u32 %v2106, 7
    %v2108 = vsub.s32 %v2105, %v2107
    %v2109 = vrot.slane %v2087, %v2108
    %v2110 = vcombine.high %v2109, %v2109
    %v2112 = vunpack.c.l.s4 1966171168
    %v2113 = vunpack.c.0.s8 %v2112
    %v2114 = vlaneseq
    %v2115 = vshrl.u32 %v2114, 7
    %v2116 = vsub.s32 %v2113, %v2115
    %v2117 = vrot.slane %v2088, %v2116
    %v2118 = vcombine.high %v2117, %v2117
    %v2120 = vunpack.c.l.s4 1966171168
    %v2121 = vunpack.c.0.s8 %v2120
    %v2122 = vlaneseq
    %v2123 = vshrl.u32 %v2122, 7
    %v2124 = vsub.s32 %v2121, %v2123
    %v2125 = vrot.slane %v2089, %v2124
    %v2126 = vcombine.high %v2125, %v2125
    %v2128 = vunpack.c.l.s4 1966171168
    %v2129 = vunpack.c.0.s8 %v2128
    %v2130 = vlaneseq
    %v2131 = vshrl.u32 %v2130, 7
    %v2132 = vsub.s32 %v2129, %v2131
    %v2133 = vrot.slane %v2090, %v2132
    %v2134 = vcombine.high %v2133, %v2133
    %v2148 = vunpack.c.l.s4 1966171168
    %v2149 = vunpack.c.0.s8 %v2148
    %v2150 = vlaneseq
    %v2151 = vshrl.u32 %v2150, 7
    %v2152 = vsub.s32 %v2149, %v2151
    %v2153 = vrot.slane %v2095, %v2152
    %v2154 = vcombine.high %v2153, %v2153
    %v2156 = vunpack.c.l.s4 1966171168
    %v2157 = vunpack.c.0.s8 %v2156
    %v2158 = vlaneseq
    %v2159 = vshrl.u32 %v2158, 7
    %v2160 = vsub.s32 %v2157, %v2159
    %v2161 = vrot.slane %v2096, %v2160
    %v2162 = vcombine.high %v2161, %v2161
    %v2164 = vunpack.c.l.s4 1966171168
    %v2165 = vunpack.c.0.s8 %v2164
    %v2166 = vlaneseq
    %v2167 = vshrl.u32 %v2166, 7
    %v2168 = vsub.s32 %v2165, %v2167
    %v2169 = vrot.slane %v2097, %v2168
    %v2170 = vcombine.high %v2169, %v2169
    %v2172 = vunpack.c.l.s4 1966171168
    %v2173 = vunpack.c.0.s8 %v2172
    %v2174 = vlaneseq
    %v2175 = vshrl.u32 %v2174, 7
    %v2176 = vsub.s32 %v2173, %v2175
    %v2177 = vrot.slane %v2098, %v2176
    %v2178 = vcombine.high %v2177, %v2177
    %v2179 = vlaneseq
    %v2180 = vshrl.u32 %v2179, 7
    %v2181 = vsub.s32 0, %v2180
    %v2182 = vrot.slane %v2153, %v2181
    %v2183 = vlaneseq
    %v2184 = vshrl.u32 %v2183, 7
    %v2185 = vsub.s32 0, %v2184
    %v2186 = vrot.slane %v2154, %v2185
    %v2187 = vlaneseq
    %v2188 = vshrl.u32 %v2187, 7
    %v2189 = vsub.s32 0, %v2188
    %v2190 = vrot.slane %v2161, %v2189
    %v2191 = vlaneseq
    %v2192 = vshrl.u32 %v2191, 7
    %v2193 = vsub.s32 0, %v2192
    %v2194 = vrot.slane %v2162, %v2193
    %v2195 = vlaneseq
    %v2196 = vshrl.u32 %v2195, 7
    %v2197 = vsub.s32 0, %v2196
    %v2198 = vrot.slane %v2169, %v2197
    %v2199 = vlaneseq
    %v2200 = vshrl.u32 %v2199, 7
    %v2201 = vsub.s32 0, %v2200
    %v2202 = vrot.slane %v2170, %v2201
    %v2203 = vlaneseq
    %v2204 = vshrl.u32 %v2203, 7
    %v2205 = vsub.s32 0, %v2204
    %v2206 = vrot.slane %v2177, %v2205
    %v2207 = vlaneseq
    %v2208 = vshrl.u32 %v2207, 7
    %v2209 = vsub.s32 0, %v2208
    %v2210 = vrot.slane %v2178, %v2209
    %v2219 = vsel %vm1942, %v2109, %v2182
    %v2220 = vsel %vm1942, %v2110, %v2186
    %v2221 = vsel %vm1942, %v2117, %v2190
    %v2222 = vsel %vm1942, %v2118, %v2194
    %v2223 = vsel %vm1942, %v2125, %v2198
    %v2224 = vsel %vm1942, %v2126, %v2202
    %v2225 = vsel %vm1942, %v2133, %v2206
    %v2226 = vsel %vm1942, %v2134, %v2210
    %v2243 = vsel %vm1949, %v1168, %v1168
    %v2244 = vsel %vm1951, %v1168, %v2243
    %v2245 = vrot.slane %v1169, 7
    %v2246 = vsel %vm1954, %v2245, %v2244
    %v2247 = vsel %vm1956, %v2245, %v2246
    %v2248 = vsel %vm1958, %v2245, %v2247
    %v2249 = vsel %vm1960, %v2245, %v2248
    %v2250 = vsel %vm1949, %v1170, %v1170
    %v2251 = vsel %vm1951, %v1170, %v2250
    %v2252 = vrot.slane %v1171, 7
    %v2253 = vsel %vm1954, %v2252, %v2251
    %v2254 = vsel %vm1956, %v2252, %v2253
    %v2255 = vsel %vm1958, %v2252, %v2254
    %v2256 = vsel %vm1960, %v2252, %v2255
    %v2257 = vsel %vm1949, %v1172, %v1172
    %v2258 = vsel %vm1951, %v1172, %v2257
    %v2259 = vrot.slane %v1173, 7
    %v2260 = vsel %vm1954, %v2259, %v2258
    %v2261 = vsel %vm1956, %v2259, %v2260
    %v2262 = vsel %vm1958, %v2259, %v2261
    %v2263 = vsel %vm1960, %v2259, %v2262
    %v2264 = vsel %vm1949, %v1174, %v1174
    %v2265 = vsel %vm1951, %v1174, %v2264
    %v2266 = vrot.slane %v1175, 7
    %v2267 = vsel %vm1954, %v2266, %v2265
    %v2268 = vsel %vm1956, %v2266, %v2267
    %v2269 = vsel %vm1958, %v2266, %v2268
    %v2270 = vsel %vm1960, %v2266, %v2269
    %v2271 = vsel %vm1949, %v1176, %v1176
    %v2272 = vsel %vm1951, %v1176, %v2271
    %v2273 = vrot.slane %v1177, 7
    %v2274 = vsel %vm1954, %v2273, %v2272
    %v2275 = vsel %vm1956, %v2273, %v2274
    %v2276 = vsel %vm1958, %v2273, %v2275
    %v2277 = vsel %vm1960, %v2273, %v2276
    %v2278 = vsel %vm1949, %v1178, %v1178
    %v2279 = vsel %vm1951, %v1178, %v2278
    %v2280 = vrot.slane %v1179, 7
    %v2281 = vsel %vm1954, %v2280, %v2279
    %v2282 = vsel %vm1956, %v2280, %v2281
    %v2283 = vsel %vm1958, %v2280, %v2282
    %v2284 = vsel %vm1960, %v2280, %v2283
    %v2285 = vsel %vm1949, %v1180, %v1180
    %v2286 = vsel %vm1951, %v1180, %v2285
    %v2287 = vrot.slane %v1181, 7
    %v2288 = vsel %vm1954, %v2287, %v2286
    %v2289 = vsel %vm1956, %v2287, %v2288
    %v2290 = vsel %vm1958, %v2287, %v2289
    %v2291 = vsel %vm1960, %v2287, %v2290
    %v2292 = vsel %vm1949, %v1182, %v1182
    %v2293 = vsel %vm1951, %v1182, %v2292
    %v2294 = vrot.slane %v1183, 7
    %v2295 = vsel %vm1954, %v2294, %v2293
    %v2296 = vsel %vm1956, %v2294, %v2295
    %v2297 = vsel %vm1958, %v2294, %v2296
    %v2298 = vsel %vm1960, %v2294, %v2297
    %v2307 = vadd.f32 %v2219, %v2249
    %v2308 = vadd.f32 %v2220, %v2256
    %v2309 = vadd.f32 %v2221, %v2263
    %v2310 = vadd.f32 %v2222, %v2270
    %v2311 = vadd.f32 %v2223, %v2277
    %v2312 = vadd.f32 %v2224, %v2284
    %v2313 = vadd.f32 %v2225, %v2291
    %v2314 = vadd.f32 %v2226, %v2298
    %v2315 = vmul.f32 %v2307, 0.70710677
    %v2316 = vmul.f32 %v2308, 0.70710677
    %v2317 = vmul.f32 %v2309, 0.70710677
    %v2318 = vmul.f32 %v2310, 0.70710677
    %v2319 = vmul.f32 %v2311, 0.70710677
    %v2320 = vmul.f32 %v2312, 0.70710677
    %v2321 = vmul.f32 %v2313, 0.70710677
    %v2322 = vmul.f32 %v2314, 0.70710677
    %v2323 = vsub.f32 %v2219, %v2249
    %v2324 = vsub.f32 %v2220, %v2256
    %v2325 = vsub.f32 %v2221, %v2263
    %v2326 = vsub.f32 %v2222, %v2270
    %v2327 = vsub.f32 %v2223, %v2277
    %v2328 = vsub.f32 %v2224, %v2284
    %v2329 = vsub.f32 %v2225, %v2291
    %v2330 = vsub.f32 %v2226, %v2298
    %v2331 = vmul.f32 %v2323, 0.70710677
    %v2332 = vmul.f32 %v2324, 0.70710677
    %v2333 = vmul.f32 %v2325, 0.70710677
    %v2334 = vmul.f32 %v2326, 0.70710677
    %v2335 = vmul.f32 %v2327, 0.70710677
    %v2336 = vmul.f32 %v2328, 0.70710677
    %v2337 = vmul.f32 %v2329, 0.70710677
    %v2338 = vmul.f32 %v2330, 0.70710677
    %v2348 = vunpack.c.l.s4 1966171168
    %v2349 = vunpack.c.0.s8 %v2348
    %v2350 = vlaneseq
    %v2351 = vshrl.u32 %v2350, 7
    %v2352 = vsub.s32 %v2349, %v2351
    %v2353 = vrot.slane %v2315, %v2352
    %v2354 = vcombine.high %v2353, %v2353
    %v2356 = vunpack.c.l.s4 1966171168
    %v2357 = vunpack.c.0.s8 %v2356
    %v2358 = vlaneseq
    %v2359 = vshrl.u32 %v2358, 7
    %v2360 = vsub.s32 %v2357, %v2359
    %v2361 = vrot.slane %v2316, %v2360
    %v2362 = vcombine.high %v2361, %v2361
    %v2364 = vunpack.c.l.s4 1966171168
    %v2365 = vunpack.c.0.s8 %v2364
    %v2366 = vlaneseq
    %v2367 = vshrl.u32 %v2366, 7
    %v2368 = vsub.s32 %v2365, %v2367
    %v2369 = vrot.slane %v2317, %v2368
    %v2370 = vcombine.high %v2369, %v2369
    %v2372 = vunpack.c.l.s4 1966171168
    %v2373 = vunpack.c.0.s8 %v2372
    %v2374 = vlaneseq
    %v2375 = vshrl.u32 %v2374, 7
    %v2376 = vsub.s32 %v2373, %v2375
    %v2377 = vrot.slane %v2318, %v2376
    %v2378 = vcombine.high %v2377, %v2377
    %v2380 = vunpack.c.l.s4 1966171168
    %v2381 = vunpack.c.0.s8 %v2380
    %v2382 = vlaneseq
    %v2383 = vshrl.u32 %v2382, 7
    %v2384 = vsub.s32 %v2381, %v2383
    %v2385 = vrot.slane %v2319, %v2384
    %v2386 = vcombine.high %v2385, %v2385
    %v2388 = vunpack.c.l.s4 1966171168
    %v2389 = vunpack.c.0.s8 %v2388
    %v2390 = vlaneseq
    %v2391 = vshrl.u32 %v2390, 7
    %v2392 = vsub.s32 %v2389, %v2391
    %v2393 = vrot.slane %v2320, %v2392
    %v2394 = vcombine.high %v2393, %v2393
    %v2396 = vunpack.c.l.s4 1966171168
    %v2397 = vunpack.c.0.s8 %v2396
    %v2398 = vlaneseq
    %v2399 = vshrl.u32 %v2398, 7
    %v2400 = vsub.s32 %v2397, %v2399
    %v2401 = vrot.slane %v2321, %v2400
    %v2402 = vcombine.high %v2401, %v2401
    %v2404 = vunpack.c.l.s4 1966171168
    %v2405 = vunpack.c.0.s8 %v2404
    %v2406 = vlaneseq
    %v2407 = vshrl.u32 %v2406, 7
    %v2408 = vsub.s32 %v2405, %v2407
    %v2409 = vrot.slane %v2322, %v2408
    %v2410 = vcombine.high %v2409, %v2409
    %v2436 = vunpack.c.l.s4 1966171168
    %v2437 = vunpack.c.0.s8 %v2436
    %v2438 = vlaneseq
    %v2439 = vshrl.u32 %v2438, 7
    %v2440 = vsub.s32 %v2437, %v2439
    %v2441 = vrot.slane %v2331, %v2440
    %v2442 = vcombine.high %v2441, %v2441
    %v2444 = vunpack.c.l.s4 1966171168
    %v2445 = vunpack.c.0.s8 %v2444
    %v2446 = vlaneseq
    %v2447 = vshrl.u32 %v2446, 7
    %v2448 = vsub.s32 %v2445, %v2447
    %v2449 = vrot.slane %v2332, %v2448
    %v2450 = vcombine.high %v2449, %v2449
    %v2452 = vunpack.c.l.s4 1966171168
    %v2453 = vunpack.c.0.s8 %v2452
    %v2454 = vlaneseq
    %v2455 = vshrl.u32 %v2454, 7
    %v2456 = vsub.s32 %v2453, %v2455
    %v2457 = vrot.slane %v2333, %v2456
    %v2458 = vcombine.high %v2457, %v2457
    %v2460 = vunpack.c.l.s4 1966171168
    %v2461 = vunpack.c.0.s8 %v2460
    %v2462 = vlaneseq
    %v2463 = vshrl.u32 %v2462, 7
    %v2464 = vsub.s32 %v2461, %v2463
    %v2465 = vrot.slane %v2334, %v2464
    %v2466 = vcombine.high %v2465, %v2465
    %v2468 = vunpack.c.l.s4 1966171168
    %v2469 = vunpack.c.0.s8 %v2468
    %v2470 = vlaneseq
    %v2471 = vshrl.u32 %v2470, 7
    %v2472 = vsub.s32 %v2469, %v2471
    %v2473 = vrot.slane %v2335, %v2472
    %v2474 = vcombine.high %v2473, %v2473
    %v2476 = vunpack.c.l.s4 1966171168
    %v2477 = vunpack.c.0.s8 %v2476
    %v2478 = vlaneseq
    %v2479 = vshrl.u32 %v2478, 7
    %v2480 = vsub.s32 %v2477, %v2479
    %v2481 = vrot.slane %v2336, %v2480
    %v2482 = vcombine.high %v2481, %v2481
    %v2484 = vunpack.c.l.s4 1966171168
    %v2485 = vunpack.c.0.s8 %v2484
    %v2486 = vlaneseq
    %v2487 = vshrl.u32 %v2486, 7
    %v2488 = vsub.s32 %v2485, %v2487
    %v2489 = vrot.slane %v2337, %v2488
    %v2490 = vcombine.high %v2489, %v2489
    %v2492 = vunpack.c.l.s4 1966171168
    %v2493 = vunpack.c.0.s8 %v2492
    %v2494 = vlaneseq
    %v2495 = vshrl.u32 %v2494, 7
    %v2496 = vsub.s32 %v2493, %v2495
    %v2497 = vrot.slane %v2338, %v2496
    %v2498 = vcombine.high %v2497, %v2497
    %v2499 = vlaneseq
    %v2500 = vshrl.u32 %v2499, 7
    %v2501 = vsub.s32 0, %v2500
    %v2502 = vrot.slane %v2441, %v2501
    %v2503 = vlaneseq
    %v2504 = vshrl.u32 %v2503, 7
    %v2505 = vsub.s32 0, %v2504
    %v2506 = vrot.slane %v2442, %v2505
    %v2507 = vlaneseq
    %v2508 = vshrl.u32 %v2507, 7
    %v2509 = vsub.s32 0, %v2508
    %v2510 = vrot.slane %v2449, %v2509
    %v2511 = vlaneseq
    %v2512 = vshrl.u32 %v2511, 7
    %v2513 = vsub.s32 0, %v2512
    %v2514 = vrot.slane %v2450, %v2513
    %v2515 = vlaneseq
    %v2516 = vshrl.u32 %v2515, 7
    %v2517 = vsub.s32 0, %v2516
    %v2518 = vrot.slane %v2457, %v2517
    %v2519 = vlaneseq
    %v2520 = vshrl.u32 %v2519, 7
    %v2521 = vsub.s32 0, %v2520
    %v2522 = vrot.slane %v2458, %v2521
    %v2523 = vlaneseq
    %v2524 = vshrl.u32 %v2523, 7
    %v2525 = vsub.s32 0, %v2524
    %v2526 = vrot.slane %v2465, %v2525
    %v2527 = vlaneseq
    %v2528 = vshrl.u32 %v2527, 7
    %v2529 = vsub.s32 0, %v2528
    %v2530 = vrot.slane %v2466, %v2529
    %v2531 = vlaneseq
    %v2532 = vshrl.u32 %v2531, 7
    %v2533 = vsub.s32 0, %v2532
    %v2534 = vrot.slane %v2473, %v2533
    %v2535 = vlaneseq
    %v2536 = vshrl.u32 %v2535, 7
    %v2537 = vsub.s32 0, %v2536
    %v2538 = vrot.slane %v2474, %v2537
    %v2539 = vlaneseq
    %v2540 = vshrl.u32 %v2539, 7
    %v2541 = vsub.s32 0, %v2540
    %v2542 = vrot.slane %v2481, %v2541
    %v2543 = vlaneseq
    %v2544 = vshrl.u32 %v2543, 7
    %v2545 = vsub.s32 0, %v2544
    %v2546 = vrot.slane %v2482, %v2545
    %v2547 = vlaneseq
    %v2548 = vshrl.u32 %v2547, 7
    %v2549 = vsub.s32 0, %v2548
    %v2550 = vrot.slane %v2489, %v2549
    %v2551 = vlaneseq
    %v2552 = vshrl.u32 %v2551, 7
    %v2553 = vsub.s32 0, %v2552
    %v2554 = vrot.slane %v2490, %v2553
    %v2555 = vlaneseq
    %v2556 = vshrl.u32 %v2555, 7
    %v2557 = vsub.s32 0, %v2556
    %v2558 = vrot.slane %v2497, %v2557
    %v2559 = vlaneseq
    %v2560 = vshrl.u32 %v2559, 7
    %v2561 = vsub.s32 0, %v2560
    %v2562 = vrot.slane %v2498, %v2561
    %v2579 = vsel %vm1942, %v2353, %v2502
    %v2580 = vsel %vm1942, %v2354, %v2506
    %v2581 = vsel %vm1942, %v2361, %v2510
    %v2582 = vsel %vm1942, %v2362, %v2514
    %v2583 = vsel %vm1942, %v2369, %v2518
    %v2584 = vsel %vm1942, %v2370, %v2522
    %v2585 = vsel %vm1942, %v2377, %v2526
    %v2586 = vsel %vm1942, %v2378, %v2530
    %v2587 = vsel %vm1942, %v2385, %v2534
    %v2588 = vsel %vm1942, %v2386, %v2538
    %v2589 = vsel %vm1942, %v2393, %v2542
    %v2590 = vsel %vm1942, %v2394, %v2546
    %v2591 = vsel %vm1942, %v2401, %v2550
    %v2592 = vsel %vm1942, %v2402, %v2554
    %v2593 = vsel %vm1942, %v2409, %v2558
    %v2594 = vsel %vm1942, %v2410, %v2562
    %v2611 = vcombine.low %v2579, %v2580
    %v2612 = vcombine.low %v2581, %v2582
    %v2614 = vunpack.c.l.s4 1983009808
    %v2615 = vunpack.c.0.s8 %v2614
    %v2616 = vlaneseq
    %v2617 = vshrl.u32 %v2616, 7
    %v2618 = vsub.s32 %v2615, %v2617
    %v2619 = vrot.slane %v2611, %v2618
    %v2621 = vunpack.c.l.s4 1983009808
    %v2622 = vunpack.c.0.s8 %v2621
    %v2623 = vlaneseq
    %v2624 = vshrl.u32 %v2623, 7
    %v2625 = vsub.s32 %v2622, %v2624
    %v2626 = vrot.slane %v2612, %v2625
    %v2627 = vcombine.low %v2619, %v2626
    %v2628 = vcombine.low %v2583, %v2584
    %v2629 = vcombine.low %v2585, %v2586
    %v2631 = vunpack.c.l.s4 1983009808
    %v2632 = vunpack.c.0.s8 %v2631
    %v2633 = vlaneseq
    %v2634 = vshrl.u32 %v2633, 7
    %v2635 = vsub.s32 %v2632, %v2634
    %v2636 = vrot.slane %v2628, %v2635
    %v2638 = vunpack.c.l.s4 1983009808
    %v2639 = vunpack.c.0.s8 %v2638
    %v2640 = vlaneseq
    %v2641 = vshrl.u32 %v2640, 7
    %v2642 = vsub.s32 %v2639, %v2641
    %v2643 = vrot.slane %v2629, %v2642
    %v2644 = vcombine.low %v2636, %v2643
    %v2645 = vcombine.low %v2587, %v2588
    %v2646 = vcombine.low %v2589, %v2590
    %v2648 = vunpack.c.l.s4 1983009808
    %v2649 = vunpack.c.0.s8 %v2648
    %v2650 = vlaneseq
    %v2651 = vshrl.u32 %v2650, 7
    %v2652 = vsub.s32 %v2649, %v2651
    %v2653 = vrot.slane %v2645, %v2652
    %v2655 = vunpack.c.l.s4 1983009808
    %v2656 = vunpack.c.0.s8 %v2655
    %v2657 = vlaneseq
    %v2658 = vshrl.u32 %v2657, 7
    %v2659 = vsub.s32 %v2656, %v2658
    %v2660 = vrot.slane %v2646, %v2659
    %v2661 = vcombine.low %v2653, %v2660
    %v2662 = vcombine.low %v2591, %v2592
    %v2663 = vcombine.low %v2593, %v2594
    %v2665 = vunpack.c.l.s4 1983009808
    %v2666 = vunpack.c.0.s8 %v2665
    %v2667 = vlaneseq
    %v2668 = vshrl.u32 %v2667, 7
    %v2669 = vsub.s32 %v2666, %v2668
    %v2670 = vrot.slane %v2662, %v2669
    %v2672 = vunpack.c.l.s4 1983009808
    %v2673 = vunpack.c.0.s8 %v2672
    %v2674 = vlaneseq
    %v2675 = vshrl.u32 %v2674, 7
    %v2676 = vsub.s32 %v2673, %v2675
    %v2677 = vrot.slane %v2663, %v2676
    %v2678 = vcombine.low %v2670, %v2677
    %2683 = vst [vmem:[%s5] sm:$0xff] %v2627
    %2684 = vst [vmem:[%s5 + $0x8] sm:$0xff] %v2644
    %2685 = vst [vmem:[%s5 + $0x10] sm:$0xff] %v2661
    %2686 = vst [vmem:[%s5 + $0x18] sm:$0xff] %v2678
    // Predicated region
    $region38: #{haar_learnable_nn_1d.1} parent=1 // pred_check
      _
    $region39: #{haar_learnable_nn_1d.1} parent=1 // pred_check_branch
      %2688 = sbr.rel (0) target = $region41
    $region40: #{haar_learnable_nn_1d.1} parent=1 // pred_region
      _
    $region41: #{haar_learnable_nn_1d.1} parent=1 // pred_fallthru
      _
    // Predicated region
    $region42: #{haar_learnable_nn_1d.1} parent=1 // pred_check
      _
    $region43: #{haar_learnable_nn_1d.1} parent=1 // pred_check_branch
      %2690 = sbr.rel (0) target = $region45
    $region44: #{haar_learnable_nn_1d.1} parent=1 // pred_region
      _
    $region45: #{haar_learnable_nn_1d.1} parent=1 // pred_fallthru
      _
    %2691 = vsyncpa [#allocation3], 1
    %2692 = vsyncpa [#allocation5], 1
    %2693 = vsyncpa [#allocation8], 1

</llo_original>
